<compile_context>
chip_gen: v5e
topology: v5e:2x2
jax: 0.10.0
libtpu: 0.0.40
codegen_flags: <defaults>
</compile_context>

<pallas_src>
import functools

import jax
import jax.numpy as jnp
from jax.experimental import pallas as pl
from jax.experimental.pallas import tpu as pltpu

TILE_B = 256      # batch tile: fills MXU rows, multiple of (8,128) sublane/lane grid
K_PAD = 896       # 784 padded up to 7 * 128 lanes
OUT_PAD = 128     # 10 padded to one full lane register (lane-dense stores)


def mlp_kernel(x_ref, w1_ref, b1_ref, w2_ref, b2_ref, w3_ref, b3_ref,
               w4_ref, b4_ref, o_ref):
    # Layer 1: (TILE_B, 896)bf16 @ (896, 512)bf16 -> f32 acc; bias + ReLU in f32
    h = jnp.dot(x_ref[...], w1_ref[...], preferred_element_type=jnp.float32)
    h = jnp.maximum(h + b1_ref[...], 0.0)
    # Layer 2: (TILE_B, 512) @ (512, 128)
    h = jnp.dot(h.astype(jnp.bfloat16), w2_ref[...],
                preferred_element_type=jnp.float32)
    h = jnp.maximum(h + b2_ref[...], 0.0)
    # Layer 3: (TILE_B, 128) @ (128, 64)
    h = jnp.dot(h.astype(jnp.bfloat16), w3_ref[...],
                preferred_element_type=jnp.float32)
    h = jnp.maximum(h + b3_ref[...], 0.0)
    # Layer 4: (TILE_B, 64) @ (64, 128)  (output padded to 128 lanes, no ReLU)
    h = jnp.dot(h.astype(jnp.bfloat16), w4_ref[...],
                preferred_element_type=jnp.float32)
    o_ref[...] = (h + b4_ref[...]).astype(o_ref.dtype)


def prepare_params(params):
    """Cast weights to bf16 and apply the static K / output-lane padding once."""
    (w1, b1), (w2, b2), (w3, b3), (w4, b4) = params
    in_f, out_f = w1.shape[0], w4.shape[1]
    w1p = jnp.zeros((K_PAD, w1.shape[1]), jnp.bfloat16)
    w1p = w1p.at[:in_f, :].set(w1.astype(jnp.bfloat16))
    w4p = jnp.zeros((w4.shape[0], OUT_PAD), jnp.bfloat16)
    w4p = w4p.at[:, :out_f].set(w4.astype(jnp.bfloat16))
    b4p = jnp.zeros((1, OUT_PAD), jnp.float32).at[:, :out_f].set(b4)
    return (w1p, b1.astype(jnp.float32),
            w2.astype(jnp.bfloat16), b2.astype(jnp.float32),
            w3.astype(jnp.bfloat16), b3.astype(jnp.float32),
            w4p, b4p)


@functools.partial(jax.jit, static_argnums=(2,))
def linear_model_forward(x, prepared, out_features):
    """x: (B, C, H, W) float32 NCHW. Returns (B, out_features) float32."""
    B = x.shape[0]
    x_flat = x.reshape(B, -1)                 # torch.flatten(x, 1)
    in_f = x_flat.shape[1]
    B_pad = pl.cdiv(B, TILE_B) * TILE_B

    # Pad batch to a multiple of TILE_B and K to 896; cast to bf16 for the MXU.
    x_pad = jnp.zeros((B_pad, K_PAD), jnp.bfloat16)
    x_pad = x_pad.at[:B, :in_f].set(x_flat.astype(jnp.bfloat16))

    w1, b1, w2, b2, w3, b3, w4, b4 = prepared

    # Constant block index => weights stay resident in VMEM across batch tiles.
    def resident(a):
        return pl.BlockSpec(a.shape, lambda i: (0,) * a.ndim)

    out = pl.pallas_call(
        mlp_kernel,
        out_shape=jax.ShapeDtypeStruct((B_pad, OUT_PAD), jnp.float32),
        grid=(B_pad // TILE_B,),
        in_specs=[
            pl.BlockSpec((TILE_B, K_PAD), lambda i: (i, 0)),   # x: streamed
            resident(w1), resident(b1),
            resident(w2), resident(b2),
            resident(w3), resident(b3),
            resident(w4), resident(b4),
        ],
        out_specs=pl.BlockSpec((TILE_B, OUT_PAD), lambda i: (i, 0)),
        compiler_params=pltpu.CompilerParams(
            dimension_semantics=("parallel",),   # megacore sharding on v7x
            vmem_limit_bytes=16 << 20,
        ),
    )(x_pad, w1, b1, w2, b2, w3, b3, w4, b4)

    return out[:B, :out_features]


def init_params(key, in_features, out_features):
    """Deterministic init mimicking nn.Linear's U(-1/sqrt(fan_in), +1/sqrt(fan_in)).
    Weights stored as (in, out) float32; biases as (1, out) float32."""
    dims = [in_features, 512, 128, 64, out_features]
    params = []
    for i in range(4):
        fan_in, fan_out = dims[i], dims[i + 1]
        key, kw, kb = jax.random.split(key, 3)
        bound = 1.0 / jnp.sqrt(jnp.float32(fan_in))
        w = jax.random.uniform(kw, (fan_in, fan_out), jnp.float32, -bound, bound)
        b = jax.random.uniform(kb, (1, fan_out), jnp.float32, -bound, bound)
        params.append((w, b))
    return params


def reference_forward(x, params):
    """Pure-JAX reference on the same bf16-input / f32-accumulate compute path."""
    h = x.reshape(x.shape[0], -1)
    for i, (w, b) in enumerate(params):
        h = jnp.dot(h.astype(jnp.bfloat16), w.astype(jnp.bfloat16),
                    preferred_element_type=jnp.float32) + b
        if i < 3:
            h = jnp.maximum(h, 0.0)
    return h


if __name__ == "__main__":
    key = jax.random.PRNGKey(0)
    B, C, H, W = 512, 1, 28, 28        # FashionMNIST-style input, 2 batch tiles
    in_features = C * H * W            # 784
    out_features = 10

    k_x, k_p = jax.random.split(key)
    x = jax.random.normal(k_x, (B, C, H, W), jnp.float32)
    params = init_params(k_p, in_features, out_features)
    prepared = prepare_params(params)

    out = linear_model_forward(x, prepared, out_features)
    out = jax.block_until_ready(out)

    ref = reference_forward(x, params)
    assert out.shape == (B, out_features), out.shape
    assert jnp.allclose(out, ref, atol=1e-2, rtol=1e-2), "mismatch vs reference"

    print("KERNEL_OK")
</pallas_src>

<mosaic_0001>
module attributes {stable_mosaic.version = 11 : i64} {
  func.func @mlp_kernel(%arg0: i32, %arg1: memref<256x896xbf16, #tpu.memory_space<vmem>>, %arg2: memref<896x512xbf16, #tpu.memory_space<vmem>>, %arg3: memref<1x512xf32, #tpu.memory_space<vmem>>, %arg4: memref<512x128xbf16, #tpu.memory_space<vmem>>, %arg5: memref<1x128xf32, #tpu.memory_space<vmem>>, %arg6: memref<128x64xbf16, #tpu.memory_space<vmem>>, %arg7: memref<1x64xf32, #tpu.memory_space<vmem>>, %arg8: memref<64x128xbf16, #tpu.memory_space<vmem>>, %arg9: memref<1x128xf32, #tpu.memory_space<vmem>>, %arg10: memref<256x128xf32, #tpu.memory_space<vmem>>) attributes {dimension_semantics = [#tpu.dimension_semantics<parallel>], iteration_bounds = array<i64: 2>, scalar_prefetch = 0 : i64, scratch_operands = 0 : i64, tpu.core_type = #tpu.core_type<tc>, window_params = [{transform_indices = @transform_0, window_bounds = array<i64: 256, 896>}, {pipeline_mode = #tpu.pipeline_mode<synchronous>, transform_indices = @transform_1, window_bounds = array<i64: 896, 512>}, {pipeline_mode = #tpu.pipeline_mode<synchronous>, transform_indices = @transform_2, window_bounds = array<i64: 1, 512>}, {pipeline_mode = #tpu.pipeline_mode<synchronous>, transform_indices = @transform_3, window_bounds = array<i64: 512, 128>}, {pipeline_mode = #tpu.pipeline_mode<synchronous>, transform_indices = @transform_4, window_bounds = array<i64: 1, 128>}, {pipeline_mode = #tpu.pipeline_mode<synchronous>, transform_indices = @transform_5, window_bounds = array<i64: 128, 64>}, {pipeline_mode = #tpu.pipeline_mode<synchronous>, transform_indices = @transform_6, window_bounds = array<i64: 1, 64>}, {pipeline_mode = #tpu.pipeline_mode<synchronous>, transform_indices = @transform_7, window_bounds = array<i64: 64, 128>}, {pipeline_mode = #tpu.pipeline_mode<synchronous>, transform_indices = @transform_8, window_bounds = array<i64: 1, 128>}, {transform_indices = @transform_9, window_bounds = array<i64: 256, 128>}]} {
    %c0 = arith.constant 0 : index
    %c0_0 = arith.constant 0 : index
    %0 = vector.load %arg1[%c0, %c0_0] : memref<256x896xbf16, #tpu.memory_space<vmem>>, vector<256x896xbf16>
    %c0_1 = arith.constant 0 : index
    %c0_2 = arith.constant 0 : index
    %1 = vector.load %arg2[%c0_1, %c0_2] : memref<896x512xbf16, #tpu.memory_space<vmem>>, vector<896x512xbf16>
    %cst = arith.constant dense<0.000000e+00> : vector<256x512xf32>
    %2 = tpu.matmul %0, %1, %cst {dimension_numbers = #tpu.dot_dimension_numbers<[1], [0], [0], [1], [0, 0, 1, 1], [], []>} : vector<256x896xbf16>, vector<896x512xbf16>, vector<256x512xf32> -> vector<256x512xf32>
    %c0_3 = arith.constant 0 : index
    %c0_4 = arith.constant 0 : index
    %3 = vector.load %arg3[%c0_3, %c0_4] : memref<1x512xf32, #tpu.memory_space<vmem>>, vector<1x512xf32>
    %4 = vector.broadcast %3 : vector<1x512xf32> to vector<256x512xf32>
    %5 = arith.addf %2, %4 : vector<256x512xf32>
    %cst_5 = arith.constant 0.000000e+00 : f32
    %6 = vector.broadcast %cst_5 : f32 to vector<256x512xf32>
    %7 = arith.maximumf %5, %6 : vector<256x512xf32>
    %8 = arith.truncf %7 : vector<256x512xf32> to vector<256x512xbf16>
    %c0_6 = arith.constant 0 : index
    %c0_7 = arith.constant 0 : index
    %9 = vector.load %arg4[%c0_6, %c0_7] : memref<512x128xbf16, #tpu.memory_space<vmem>>, vector<512x128xbf16>
    %cst_8 = arith.constant dense<0.000000e+00> : vector<256x128xf32>
    %10 = tpu.matmul %8, %9, %cst_8 {dimension_numbers = #tpu.dot_dimension_numbers<[1], [0], [0], [1], [0, 0, 1, 1], [], []>} : vector<256x512xbf16>, vector<512x128xbf16>, vector<256x128xf32> -> vector<256x128xf32>
    %c0_9 = arith.constant 0 : index
    %c0_10 = arith.constant 0 : index
    %11 = vector.load %arg5[%c0_9, %c0_10] : memref<1x128xf32, #tpu.memory_space<vmem>>, vector<1x128xf32>
    %12 = vector.broadcast %11 : vector<1x128xf32> to vector<256x128xf32>
    %13 = arith.addf %10, %12 : vector<256x128xf32>
    %cst_11 = arith.constant 0.000000e+00 : f32
    %14 = vector.broadcast %cst_11 : f32 to vector<256x128xf32>
    %15 = arith.maximumf %13, %14 : vector<256x128xf32>
    %16 = arith.truncf %15 : vector<256x128xf32> to vector<256x128xbf16>
    %c0_12 = arith.constant 0 : index
    %c0_13 = arith.constant 0 : index
    %17 = vector.load %arg6[%c0_12, %c0_13] : memref<128x64xbf16, #tpu.memory_space<vmem>>, vector<128x64xbf16>
    %cst_14 = arith.constant dense<0.000000e+00> : vector<256x64xf32>
    %18 = tpu.matmul %16, %17, %cst_14 {dimension_numbers = #tpu.dot_dimension_numbers<[1], [0], [0], [1], [0, 0, 1, 1], [], []>} : vector<256x128xbf16>, vector<128x64xbf16>, vector<256x64xf32> -> vector<256x64xf32>
    %c0_15 = arith.constant 0 : index
    %c0_16 = arith.constant 0 : index
    %19 = vector.load %arg7[%c0_15, %c0_16] : memref<1x64xf32, #tpu.memory_space<vmem>>, vector<1x64xf32>
    %20 = vector.broadcast %19 : vector<1x64xf32> to vector<256x64xf32>
    %21 = arith.addf %18, %20 : vector<256x64xf32>
    %cst_17 = arith.constant 0.000000e+00 : f32
    %22 = vector.broadcast %cst_17 : f32 to vector<256x64xf32>
    %23 = arith.maximumf %21, %22 : vector<256x64xf32>
    %24 = arith.truncf %23 : vector<256x64xf32> to vector<256x64xbf16>
    %c0_18 = arith.constant 0 : index
    %c0_19 = arith.constant 0 : index
    %25 = vector.load %arg8[%c0_18, %c0_19] : memref<64x128xbf16, #tpu.memory_space<vmem>>, vector<64x128xbf16>
    %cst_20 = arith.constant dense<0.000000e+00> : vector<256x128xf32>
    %26 = tpu.matmul %24, %25, %cst_20 {dimension_numbers = #tpu.dot_dimension_numbers<[1], [0], [0], [1], [0, 0, 1, 1], [], []>} : vector<256x64xbf16>, vector<64x128xbf16>, vector<256x128xf32> -> vector<256x128xf32>
    %c0_21 = arith.constant 0 : index
    %c0_22 = arith.constant 0 : index
    %27 = vector.load %arg9[%c0_21, %c0_22] : memref<1x128xf32, #tpu.memory_space<vmem>>, vector<1x128xf32>
    %28 = vector.broadcast %27 : vector<1x128xf32> to vector<256x128xf32>
    %29 = arith.addf %26, %28 : vector<256x128xf32>
    %c0_23 = arith.constant 0 : index
    %c0_24 = arith.constant 0 : index
    %30 = vector.load %arg10[%c0_23, %c0_24] : memref<256x128xf32, #tpu.memory_space<vmem>>, vector<256x128xf32>
    tpu.vector_store %arg10[%c0_23, %c0_24], %29 {strides = array<i32>} : memref<256x128xf32, #tpu.memory_space<vmem>>, vector<256x128xf32>,
    return
  }
  func.func @transform_0(%arg0: i32) -> (i32, i32) {
    %c0_i32 = arith.constant 0 : i32
    %c0_i32_0 = arith.constant 0 : i32
    return %arg0, %c0_i32 : i32, i32
  }
  func.func @transform_1(%arg0: i32) -> (i32, i32) {
    %c0_i32 = arith.constant 0 : i32
    %c0_i32_0 = arith.constant 0 : i32
    %c0_i32_1 = arith.constant 0 : i32
    return %c0_i32, %c0_i32_0 : i32, i32
  }
  func.func @transform_2(%arg0: i32) -> (i32, i32) {
    %c0_i32 = arith.constant 0 : i32
    %c0_i32_0 = arith.constant 0 : i32
    %c0_i32_1 = arith.constant 0 : i32
    return %c0_i32, %c0_i32_0 : i32, i32
  }
  func.func @transform_3(%arg0: i32) -> (i32, i32) {
    %c0_i32 = arith.constant 0 : i32
    %c0_i32_0 = arith.constant 0 : i32
    %c0_i32_1 = arith.constant 0 : i32
    return %c0_i32, %c0_i32_0 : i32, i32
  }
  func.func @transform_4(%arg0: i32) -> (i32, i32) {
    %c0_i32 = arith.constant 0 : i32
    %c0_i32_0 = arith.constant 0 : i32
    %c0_i32_1 = arith.constant 0 : i32
    return %c0_i32, %c0_i32_0 : i32, i32
  }
  func.func @transform_5(%arg0: i32) -> (i32, i32) {
    %c0_i32 = arith.constant 0 : i32
    %c0_i32_0 = arith.constant 0 : i32
    %c0_i32_1 = arith.constant 0 : i32
    return %c0_i32, %c0_i32_0 : i32, i32
  }
  func.func @transform_6(%arg0: i32) -> (i32, i32) {
    %c0_i32 = arith.constant 0 : i32
    %c0_i32_0 = arith.constant 0 : i32
    %c0_i32_1 = arith.constant 0 : i32
    return %c0_i32, %c0_i32_0 : i32, i32
  }
  func.func @transform_7(%arg0: i32) -> (i32, i32) {
    %c0_i32 = arith.constant 0 : i32
    %c0_i32_0 = arith.constant 0 : i32
    %c0_i32_1 = arith.constant 0 : i32
    return %c0_i32, %c0_i32_0 : i32, i32
  }
  func.func @transform_8(%arg0: i32) -> (i32, i32) {
    %c0_i32 = arith.constant 0 : i32
    %c0_i32_0 = arith.constant 0 : i32
    %c0_i32_1 = arith.constant 0 : i32
    return %c0_i32, %c0_i32_0 : i32, i32
  }
  func.func @transform_9(%arg0: i32) -> (i32, i32) {
    %c0_i32 = arith.constant 0 : i32
    %c0_i32_0 = arith.constant 0 : i32
    return %arg0, %c0_i32 : i32, i32
  }
}

</mosaic_0001>

<llo_original>
// kernel: linear_model_forward.1
$region0: #{linear_model_forward.1}
  #allocation0 [shape = 'u32[]', space=smem, size = 0x4, offset = 0x4, fixed_abs, tag = 'smem constant byte address 0x4 - core index']
  #allocation1 [shape = 'u32[72,128]{1,0:T(1,128)}', space=vmem, size = 0x9000, scoped, tag = 'internal scratch']
  %s0 = inlined_call_operand.vmem [shape: bf16[512,896], index: 0, kind: input, shape index: {}]
  %s1 = inlined_call_operand.vmem [shape: bf16[896,512], index: 1, kind: input, shape index: {}]
  %s2 = inlined_call_operand.vmem [shape: f32[1,512], index: 2, kind: input, shape index: {}]
  %s3 = inlined_call_operand.vmem [shape: bf16[512,128], index: 3, kind: input, shape index: {}]
  %s4 = inlined_call_operand.vmem [shape: f32[1,128], index: 4, kind: input, shape index: {}]
  %s5 = inlined_call_operand.vmem [shape: bf16[128,64], index: 5, kind: input, shape index: {}]
  %s6 = inlined_call_operand.vmem [shape: f32[1,64], index: 6, kind: input, shape index: {}]
  %s7 = inlined_call_operand.vmem [shape: bf16[64,128], index: 7, kind: input, shape index: {}]
  %s8 = inlined_call_operand.vmem [shape: f32[1,128], index: 8, kind: input, shape index: {}]
  %s9 = inlined_call_operand.vmem [shape: f32[512,128], index: 9, kind: output, shape index: {}]
  %s10 = sld [smem:[#allocation0]]
  $region69: #{linear_model_forward.1} parent=0
    _
  %s12 = ssub.s32 1, %s10
  %s13 = scalar_select 0, %s12, %s10
  loop: start=0, step=1, limit=4
  $region2: #{linear_model_forward.1} parent=0 // loop_pre_header
    _
  $region3: #{linear_model_forward.1} parent=0 // loop_header
    %s15 = sphi 0, %s19
    %p16 = scmp.ge.s32.totalorder %s15, 4
    %s25 = sphi 0, %s27
    %s28 = sphi 0, %s25
    %s29 = sphi 0, %s28
    %s45 = sphi 0, %s29
    %s49 = sphi 0, %s49
    %s51 = sphi 0, %s49
    %s52 = sphi 0, %s51
    %s66 = sphi 0, %s52
    %s70 = sphi 0, %s70
    %s72 = sphi 0, %s70
    %s73 = sphi 0, %s72
    %s87 = sphi 0, %s73
    %s91 = sphi 0, %s91
    %s93 = sphi 0, %s91
    %s94 = sphi 0, %s93
    %s108 = sphi 0, %s94
    %s112 = sphi 0, %s112
    %s114 = sphi 0, %s112
    %s115 = sphi 0, %s114
    %s129 = sphi 0, %s115
    %s133 = sphi 0, %s133
    %s135 = sphi 0, %s133
    %s136 = sphi 0, %s135
    %s150 = sphi 0, %s136
    %s154 = sphi 0, %s154
    %s156 = sphi 0, %s154
    %s157 = sphi 0, %s156
    %s171 = sphi 0, %s157
    %s175 = sphi 0, %s175
    %s177 = sphi 0, %s175
    %s178 = sphi 0, %s177
    %s192 = sphi 0, %s178
    %s196 = sphi 0, %s196
    %s198 = sphi 0, %s196
    %s199 = sphi 0, %s198
    %s213 = sphi 0, %s199
    %s219 = sphi 0, %s221
    %s222 = sphi 0, %s219
    %s223 = sphi 0, %s222
    %s239 = sphi 0, %s223
  $region4: #{linear_model_forward.1} parent=0 // loop_header_branch
    %18 = sbr.rel (%p16) target = $region8
  $region5: #{linear_model_forward.1} parent=0 // loop_body
    %s20 = ssub.s32 %s15, 1
    %s21 = ssub.s32 %s15, 2
    %s22 = sadd.s32 %s15, 1
    %s23 = ssub.s32 %s15, %s22
    %p24 = scmp.eq.s32.totalorder %s23, 0
    %s26 = sadd.s32 %s25, 1
    %s27 = scalar_select %p24, %s25, %s26
    %p30 = pneg %p24
    %p31 = scmp.eq.s32.totalorder %s15, 1
    %p32 = por %p30, %p31
    %p33 = scmp.ne.s32.totalorder %s25, %s28
    %p34 = scmp.eq.s32.totalorder %s15, 0
    %p35 = por %p33, %p34
    %p36 = scmp.ne.s32.totalorder %s25, %s28
    %p37 = scmp.eq.s32.totalorder %s20, 1
    %p38 = por %p36, %p37
    %p39 = scmp.ne.s32.totalorder %s28, %s29
    %p40 = scmp.eq.s32.totalorder %s20, 0
    %p41 = por %p39, %p40
    %p42 = scmp.ne.s32.totalorder %s28, %s29
    %p43 = scmp.eq.s32.totalorder %s21, 1
    %p44 = por %p42, %p43
    %p46 = scmp.ne.s32.totalorder %s29, %s45
    %p47 = scmp.eq.s32.totalorder %s21, 0
    %p48 = por %p46, %p47
    %s50 = sadd.s32 %s49, 1
    %p53 = scmp.eq.s32.totalorder %s15, 1
    %p54 = scmp.ne.s32.totalorder %s49, %s51
    %p55 = scmp.eq.s32.totalorder %s15, 0
    %p56 = por %p54, %p55
    %p57 = scmp.ne.s32.totalorder %s49, %s51
    %p58 = scmp.eq.s32.totalorder %s20, 1
    %p59 = por %p57, %p58
    %p60 = scmp.ne.s32.totalorder %s51, %s52
    %p61 = scmp.eq.s32.totalorder %s20, 0
    %p62 = por %p60, %p61
    %p63 = scmp.ne.s32.totalorder %s51, %s52
    %p64 = scmp.eq.s32.totalorder %s21, 1
    %p65 = por %p63, %p64
    %p67 = scmp.ne.s32.totalorder %s52, %s66
    %p68 = scmp.eq.s32.totalorder %s21, 0
    %p69 = por %p67, %p68
    %s71 = sadd.s32 %s70, 1
    %p74 = scmp.eq.s32.totalorder %s15, 1
    %p75 = scmp.ne.s32.totalorder %s70, %s72
    %p76 = scmp.eq.s32.totalorder %s15, 0
    %p77 = por %p75, %p76
    %p78 = scmp.ne.s32.totalorder %s70, %s72
    %p79 = scmp.eq.s32.totalorder %s20, 1
    %p80 = por %p78, %p79
    %p81 = scmp.ne.s32.totalorder %s72, %s73
    %p82 = scmp.eq.s32.totalorder %s20, 0
    %p83 = por %p81, %p82
    %p84 = scmp.ne.s32.totalorder %s72, %s73
    %p85 = scmp.eq.s32.totalorder %s21, 1
    %p86 = por %p84, %p85
    %p88 = scmp.ne.s32.totalorder %s73, %s87
    %p89 = scmp.eq.s32.totalorder %s21, 0
    %p90 = por %p88, %p89
    %s92 = sadd.s32 %s91, 1
    %p95 = scmp.eq.s32.totalorder %s15, 1
    %p96 = scmp.ne.s32.totalorder %s91, %s93
    %p97 = scmp.eq.s32.totalorder %s15, 0
    %p98 = por %p96, %p97
    %p99 = scmp.ne.s32.totalorder %s91, %s93
    %p100 = scmp.eq.s32.totalorder %s20, 1
    %p101 = por %p99, %p100
    %p102 = scmp.ne.s32.totalorder %s93, %s94
    %p103 = scmp.eq.s32.totalorder %s20, 0
    %p104 = por %p102, %p103
    %p105 = scmp.ne.s32.totalorder %s93, %s94
    %p106 = scmp.eq.s32.totalorder %s21, 1
    %p107 = por %p105, %p106
    %p109 = scmp.ne.s32.totalorder %s94, %s108
    %p110 = scmp.eq.s32.totalorder %s21, 0
    %p111 = por %p109, %p110
    %s113 = sadd.s32 %s112, 1
    %p116 = scmp.eq.s32.totalorder %s15, 1
    %p117 = scmp.ne.s32.totalorder %s112, %s114
    %p118 = scmp.eq.s32.totalorder %s15, 0
    %p119 = por %p117, %p118
    %p120 = scmp.ne.s32.totalorder %s112, %s114
    %p121 = scmp.eq.s32.totalorder %s20, 1
    %p122 = por %p120, %p121
    %p123 = scmp.ne.s32.totalorder %s114, %s115
    %p124 = scmp.eq.s32.totalorder %s20, 0
    %p125 = por %p123, %p124
    %p126 = scmp.ne.s32.totalorder %s114, %s115
    %p127 = scmp.eq.s32.totalorder %s21, 1
    %p128 = por %p126, %p127
    %p130 = scmp.ne.s32.totalorder %s115, %s129
    %p131 = scmp.eq.s32.totalorder %s21, 0
    %p132 = por %p130, %p131
    %s134 = sadd.s32 %s133, 1
    %p137 = scmp.eq.s32.totalorder %s15, 1
    %p138 = scmp.ne.s32.totalorder %s133, %s135
    %p139 = scmp.eq.s32.totalorder %s15, 0
    %p140 = por %p138, %p139
    %p141 = scmp.ne.s32.totalorder %s133, %s135
    %p142 = scmp.eq.s32.totalorder %s20, 1
    %p143 = por %p141, %p142
    %p144 = scmp.ne.s32.totalorder %s135, %s136
    %p145 = scmp.eq.s32.totalorder %s20, 0
    %p146 = por %p144, %p145
    %p147 = scmp.ne.s32.totalorder %s135, %s136
    %p148 = scmp.eq.s32.totalorder %s21, 1
    %p149 = por %p147, %p148
    %p151 = scmp.ne.s32.totalorder %s136, %s150
    %p152 = scmp.eq.s32.totalorder %s21, 0
    %p153 = por %p151, %p152
    %s155 = sadd.s32 %s154, 1
    %p158 = scmp.eq.s32.totalorder %s15, 1
    %p159 = scmp.ne.s32.totalorder %s154, %s156
    %p160 = scmp.eq.s32.totalorder %s15, 0
    %p161 = por %p159, %p160
    %p162 = scmp.ne.s32.totalorder %s154, %s156
    %p163 = scmp.eq.s32.totalorder %s20, 1
    %p164 = por %p162, %p163
    %p165 = scmp.ne.s32.totalorder %s156, %s157
    %p166 = scmp.eq.s32.totalorder %s20, 0
    %p167 = por %p165, %p166
    %p168 = scmp.ne.s32.totalorder %s156, %s157
    %p169 = scmp.eq.s32.totalorder %s21, 1
    %p170 = por %p168, %p169
    %p172 = scmp.ne.s32.totalorder %s157, %s171
    %p173 = scmp.eq.s32.totalorder %s21, 0
    %p174 = por %p172, %p173
    %s176 = sadd.s32 %s175, 1
    %p179 = scmp.eq.s32.totalorder %s15, 1
    %p180 = scmp.ne.s32.totalorder %s175, %s177
    %p181 = scmp.eq.s32.totalorder %s15, 0
    %p182 = por %p180, %p181
    %p183 = scmp.ne.s32.totalorder %s175, %s177
    %p184 = scmp.eq.s32.totalorder %s20, 1
    %p185 = por %p183, %p184
    %p186 = scmp.ne.s32.totalorder %s177, %s178
    %p187 = scmp.eq.s32.totalorder %s20, 0
    %p188 = por %p186, %p187
    %p189 = scmp.ne.s32.totalorder %s177, %s178
    %p190 = scmp.eq.s32.totalorder %s21, 1
    %p191 = por %p189, %p190
    %p193 = scmp.ne.s32.totalorder %s178, %s192
    %p194 = scmp.eq.s32.totalorder %s21, 0
    %p195 = por %p193, %p194
    %s197 = sadd.s32 %s196, 1
    %p200 = scmp.eq.s32.totalorder %s15, 1
    %p201 = scmp.ne.s32.totalorder %s196, %s198
    %p202 = scmp.eq.s32.totalorder %s15, 0
    %p203 = por %p201, %p202
    %p204 = scmp.ne.s32.totalorder %s196, %s198
    %p205 = scmp.eq.s32.totalorder %s20, 1
    %p206 = por %p204, %p205
    %p207 = scmp.ne.s32.totalorder %s198, %s199
    %p208 = scmp.eq.s32.totalorder %s20, 0
    %p209 = por %p207, %p208
    %p210 = scmp.ne.s32.totalorder %s198, %s199
    %p211 = scmp.eq.s32.totalorder %s21, 1
    %p212 = por %p210, %p211
    %p214 = scmp.ne.s32.totalorder %s199, %s213
    %p215 = scmp.eq.s32.totalorder %s21, 0
    %p216 = por %p214, %p215
    %s217 = ssub.s32 %s15, %s22
    %p218 = scmp.eq.s32.totalorder %s217, 0
    %s220 = sadd.s32 %s219, 1
    %s221 = scalar_select %p218, %s219, %s220
    %p224 = pneg %p218
    %p225 = scmp.eq.s32.totalorder %s15, 1
    %p226 = por %p224, %p225
    %p227 = scmp.ne.s32.totalorder %s219, %s222
    %p228 = scmp.eq.s32.totalorder %s15, 0
    %p229 = por %p227, %p228
    %p230 = scmp.ne.s32.totalorder %s219, %s222
    %p231 = scmp.eq.s32.totalorder %s20, 1
    %p232 = por %p230, %p231
    %p233 = scmp.ne.s32.totalorder %s222, %s223
    %p234 = scmp.eq.s32.totalorder %s20, 0
    %p235 = por %p233, %p234
    %p236 = scmp.ne.s32.totalorder %s222, %s223
    %p237 = scmp.eq.s32.totalorder %s21, 1
    %p238 = por %p236, %p237
    %p240 = scmp.ne.s32.totalorder %s223, %s239
    %p241 = scmp.eq.s32.totalorder %s21, 0
    %p242 = por %p240, %p241
    %p243 = scmp.le.s32.totalorder 1, %s15
    %p244 = scmp.lt.s32.totalorder %s15, 3
    %p245 = pnand %p243, %p244
    %p246 = pneg %p245
    // Predicated region
    $region9: #{linear_model_forward.1} parent=5 // pred_check
      _
    $region10: #{linear_model_forward.1} parent=5 // pred_check_branch
      %248 = sbr.rel (%p245) target = $region12
    $region11: #{linear_model_forward.1} parent=5 // pred_region
      %s249 = ssub.s32 %s15, 1
      // Predicated region
      $region13: #{linear_model_forward.1} parent=11 // pred_check
        %p250 = pneg %p62
      $region14: #{linear_model_forward.1} parent=11 // pred_check_branch
        %252 = sbr.rel (%p250) target = $region16
      $region15: #{linear_model_forward.1} parent=11 // pred_region
        _
      $region16: #{linear_model_forward.1} parent=11 // pred_fallthru
        _
      // Predicated region
      $region17: #{linear_model_forward.1} parent=11 // pred_check
        %p253 = pneg %p83
      $region18: #{linear_model_forward.1} parent=11 // pred_check_branch
        %255 = sbr.rel (%p253) target = $region20
      $region19: #{linear_model_forward.1} parent=11 // pred_region
        _
      $region20: #{linear_model_forward.1} parent=11 // pred_fallthru
        _
      // Predicated region
      $region21: #{linear_model_forward.1} parent=11 // pred_check
        %p256 = pneg %p104
      $region22: #{linear_model_forward.1} parent=11 // pred_check_branch
        %258 = sbr.rel (%p256) target = $region24
      $region23: #{linear_model_forward.1} parent=11 // pred_region
        _
      $region24: #{linear_model_forward.1} parent=11 // pred_fallthru
        _
      // Predicated region
      $region25: #{linear_model_forward.1} parent=11 // pred_check
        %p259 = pneg %p125
      $region26: #{linear_model_forward.1} parent=11 // pred_check_branch
        %261 = sbr.rel (%p259) target = $region28
      $region27: #{linear_model_forward.1} parent=11 // pred_region
        _
      $region28: #{linear_model_forward.1} parent=11 // pred_fallthru
        _
      // Predicated region
      $region29: #{linear_model_forward.1} parent=11 // pred_check
        %p262 = pneg %p146
      $region30: #{linear_model_forward.1} parent=11 // pred_check_branch
        %264 = sbr.rel (%p262) target = $region32
      $region31: #{linear_model_forward.1} parent=11 // pred_region
        _
      $region32: #{linear_model_forward.1} parent=11 // pred_fallthru
        _
      // Predicated region
      $region33: #{linear_model_forward.1} parent=11 // pred_check
        %p265 = pneg %p167
      $region34: #{linear_model_forward.1} parent=11 // pred_check_branch
        %267 = sbr.rel (%p265) target = $region36
      $region35: #{linear_model_forward.1} parent=11 // pred_region
        _
      $region36: #{linear_model_forward.1} parent=11 // pred_fallthru
        _
      // Predicated region
      $region37: #{linear_model_forward.1} parent=11 // pred_check
        %p268 = pneg %p188
      $region38: #{linear_model_forward.1} parent=11 // pred_check_branch
        %270 = sbr.rel (%p268) target = $region40
      $region39: #{linear_model_forward.1} parent=11 // pred_region
        _
      $region40: #{linear_model_forward.1} parent=11 // pred_fallthru
        _
      // Predicated region
      $region41: #{linear_model_forward.1} parent=11 // pred_check
        %p271 = pneg %p209
      $region42: #{linear_model_forward.1} parent=11 // pred_check_branch
        %273 = sbr.rel (%p271) target = $region44
      $region43: #{linear_model_forward.1} parent=11 // pred_region
        _
      $region44: #{linear_model_forward.1} parent=11 // pred_fallthru
        _
    $region12: #{linear_model_forward.1} parent=5 // pred_fallthru
      _
    %p274 = scmp.lt.s32.totalorder %s15, 2
    // Predicated region
    $region45: #{linear_model_forward.1} parent=5 // pred_check
      %p275 = pneg %p274
    $region46: #{linear_model_forward.1} parent=5 // pred_check_branch
      %277 = sbr.rel (%p275) target = $region48
    $region47: #{linear_model_forward.1} parent=5 // pred_region
      // Predicated region
      $region49: #{linear_model_forward.1} parent=47 // pred_check
        %p278 = pneg %p35
      $region50: #{linear_model_forward.1} parent=47 // pred_check_branch
        %280 = sbr.rel (%p278) target = $region52
      $region51: #{linear_model_forward.1} parent=47 // pred_region
        %s281 = smul.u32 32, %s15
        %p282 = scmp.lt.s32.totalorder %s281, 63
        %s283 = scalar_select %p282, %s281, 63
        %s284 = smul.addr %s283, 7
        %s285 = smul.addr %s284, 4
        %s286 = scalar_lea.vmem %s0, %s285
        %s287 = smul.u32 32, %s15
      $region52: #{linear_model_forward.1} parent=47 // pred_fallthru
        _
    $region48: #{linear_model_forward.1} parent=5 // pred_fallthru
      _
    %p288 = scmp.le.s32.totalorder 1, %s15
    %p289 = scmp.lt.s32.totalorder %s15, 3
    %p290 = pnand %p288, %p289
    %p291 = pneg %p290
    // Predicated region
    $region53: #{linear_model_forward.1} parent=5 // pred_check
      _
    $region54: #{linear_model_forward.1} parent=5 // pred_check_branch
      %293 = sbr.rel (%p290) target = $region56
    $region55: #{linear_model_forward.1} parent=5 // pred_region
      %s294 = ssub.s32 %s15, 1
      %s295 = smul.u32 32, %s20
      %p296 = scmp.lt.s32.totalorder %s295, 63
      %s297 = scalar_select %p296, %s295, 63
      %s298 = smul.addr %s297, 7
      %s299 = smul.addr %s298, 4
      %s300 = scalar_lea.vmem %s0, %s299
      %p301 = pneg %p41
      %p302 = pneg %p38
      %p303 = pneg %p62
      %p304 = pneg %p59
      %p305 = pneg %p83
      %p306 = pneg %p80
      %p307 = pneg %p104
      %p308 = pneg %p101
      %p309 = pneg %p125
      %p310 = pneg %p122
      %p311 = pneg %p146
      %p312 = pneg %p143
      %p313 = pneg %p167
      %p314 = pneg %p164
      %p315 = pneg %p188
      %p316 = pneg %p185
      %p317 = pneg %p209
      %p318 = pneg %p206
      %p319 = pneg %p235
      %p320 = pneg %p232
      %s321 = smul.u32 32, %s20
      %p322 = scmp.lt.s32.totalorder %s321, 63
      %s323 = scalar_select %p322, %s321, 63
      %s324 = smul.addr %s323, 8
      %s325 = scalar_lea.vmem %s9, %s324
      %s326 = smul.u32 32, %s20
      %p327 = scmp.lt.s32.totalorder %s326, 63
      %s328 = scalar_select %p327, %s326, 63
      %s329 = smul.addr %s328, 7
      %s330 = smul.addr %s329, 4
      %s331 = scalar_lea.vmem %s0, %s330
      %s332 = smul.u32 32, %s20
      %s333 = smul.u32 32, %s20
      %p334 = scmp.lt.s32.totalorder %s333, 63
      %s335 = scalar_select %p334, %s333, 63
      %s336 = smul.addr %s335, 8
      %s337 = scalar_lea.vmem %s9, %s336
      %s338 = smul.u32 32, %s20
      %v340 = vld [vmem:[%s331] sm:$0xff]
      %v341 = vld [vmem:[%s331 + $0x8] sm:$0xff]
      %v342 = vld [vmem:[%s331 + $0x10] sm:$0xff]
      %v343 = vld [vmem:[%s331 + $0x18] sm:$0xf]
      %v344 = vld [vmem:[%s331 + $0x1c] sm:$0xff]
      %v345 = vld [vmem:[%s331 + $0x24] sm:$0xff]
      %v346 = vld [vmem:[%s331 + $0x2c] sm:$0xff]
      %v347 = vld [vmem:[%s331 + $0x34] sm:$0xf]
      %v348 = vld [vmem:[%s331 + $0x38] sm:$0xff]
      %v349 = vld [vmem:[%s331 + $0x40] sm:$0xff]
      %v350 = vld [vmem:[%s331 + $0x48] sm:$0xff]
      %v351 = vld [vmem:[%s331 + $0x50] sm:$0xf]
      %v352 = vld [vmem:[%s331 + $0x54] sm:$0xff]
      %v353 = vld [vmem:[%s331 + $0x5c] sm:$0xff]
      %v354 = vld [vmem:[%s331 + $0x64] sm:$0xff]
      %v355 = vld [vmem:[%s331 + $0x6c] sm:$0xf]
      %v356 = vld [vmem:[%s331 + $0x70] sm:$0xff]
      %v357 = vld [vmem:[%s331 + $0x78] sm:$0xff]
      %v358 = vld [vmem:[%s331 + $0x80] sm:$0xff]
      %v359 = vld [vmem:[%s331 + $0x88] sm:$0xf]
      %v360 = vld [vmem:[%s331 + $0x8c] sm:$0xff]
      %v361 = vld [vmem:[%s331 + $0x94] sm:$0xff]
      %v362 = vld [vmem:[%s331 + $0x9c] sm:$0xff]
      %v363 = vld [vmem:[%s331 + $0xa4] sm:$0xf]
      %v364 = vld [vmem:[%s331 + $0xa8] sm:$0xff]
      %v365 = vld [vmem:[%s331 + $0xb0] sm:$0xff]
      %v366 = vld [vmem:[%s331 + $0xb8] sm:$0xff]
      %v367 = vld [vmem:[%s331 + $0xc0] sm:$0xf]
      %v368 = vld [vmem:[%s331 + $0xc4] sm:$0xff]
      %v369 = vld [vmem:[%s331 + $0xcc] sm:$0xff]
      %v370 = vld [vmem:[%s331 + $0xd4] sm:$0xff]
      %v371 = vld [vmem:[%s331 + $0xdc] sm:$0xf]
      %v372 = vld [vmem:[%s331 + $0xe0] sm:$0xff]
      %v373 = vld [vmem:[%s331 + $0xe8] sm:$0xff]
      %v374 = vld [vmem:[%s331 + $0xf0] sm:$0xff]
      %v375 = vld [vmem:[%s331 + $0xf8] sm:$0xf]
      %v376 = vld [vmem:[%s331 + $0xfc] sm:$0xff]
      %v377 = vld [vmem:[%s331 + $0x104] sm:$0xff]
      %v378 = vld [vmem:[%s331 + $0x10c] sm:$0xff]
      %v379 = vld [vmem:[%s331 + $0x114] sm:$0xf]
      %v380 = vld [vmem:[%s331 + $0x118] sm:$0xff]
      %v381 = vld [vmem:[%s331 + $0x120] sm:$0xff]
      %v382 = vld [vmem:[%s331 + $0x128] sm:$0xff]
      %v383 = vld [vmem:[%s331 + $0x130] sm:$0xf]
      %v384 = vld [vmem:[%s331 + $0x134] sm:$0xff]
      %v385 = vld [vmem:[%s331 + $0x13c] sm:$0xff]
      %v386 = vld [vmem:[%s331 + $0x144] sm:$0xff]
      %v387 = vld [vmem:[%s331 + $0x14c] sm:$0xf]
      %v388 = vld [vmem:[%s331 + $0x150] sm:$0xff]
      %v389 = vld [vmem:[%s331 + $0x158] sm:$0xff]
      %v390 = vld [vmem:[%s331 + $0x160] sm:$0xff]
      %v391 = vld [vmem:[%s331 + $0x168] sm:$0xf]
      %v392 = vld [vmem:[%s331 + $0x16c] sm:$0xff]
      %v393 = vld [vmem:[%s331 + $0x174] sm:$0xff]
      %v394 = vld [vmem:[%s331 + $0x17c] sm:$0xff]
      %v395 = vld [vmem:[%s331 + $0x184] sm:$0xf]
      %v396 = vld [vmem:[%s331 + $0x188] sm:$0xff]
      %v397 = vld [vmem:[%s331 + $0x190] sm:$0xff]
      %v398 = vld [vmem:[%s331 + $0x198] sm:$0xff]
      %v399 = vld [vmem:[%s331 + $0x1a0] sm:$0xf]
      %v400 = vld [vmem:[%s331 + $0x1a4] sm:$0xff]
      %v401 = vld [vmem:[%s331 + $0x1ac] sm:$0xff]
      %v402 = vld [vmem:[%s331 + $0x1b4] sm:$0xff]
      %v403 = vld [vmem:[%s331 + $0x1bc] sm:$0xf]
      %v404 = vld [vmem:[%s331 + $0x1c0] sm:$0xff]
      %v405 = vld [vmem:[%s331 + $0x1c8] sm:$0xff]
      %v406 = vld [vmem:[%s331 + $0x1d0] sm:$0xff]
      %v407 = vld [vmem:[%s331 + $0x1d8] sm:$0xf]
      %v408 = vld [vmem:[%s331 + $0x1dc] sm:$0xff]
      %v409 = vld [vmem:[%s331 + $0x1e4] sm:$0xff]
      %v410 = vld [vmem:[%s331 + $0x1ec] sm:$0xff]
      %v411 = vld [vmem:[%s331 + $0x1f4] sm:$0xf]
      %v412 = vld [vmem:[%s331 + $0x1f8] sm:$0xff]
      %v413 = vld [vmem:[%s331 + $0x200] sm:$0xff]
      %v414 = vld [vmem:[%s331 + $0x208] sm:$0xff]
      %v415 = vld [vmem:[%s331 + $0x210] sm:$0xf]
      %v416 = vld [vmem:[%s331 + $0x214] sm:$0xff]
      %v417 = vld [vmem:[%s331 + $0x21c] sm:$0xff]
      %v418 = vld [vmem:[%s331 + $0x224] sm:$0xff]
      %v419 = vld [vmem:[%s331 + $0x22c] sm:$0xf]
      %v420 = vld [vmem:[%s331 + $0x230] sm:$0xff]
      %v421 = vld [vmem:[%s331 + $0x238] sm:$0xff]
      %v422 = vld [vmem:[%s331 + $0x240] sm:$0xff]
      %v423 = vld [vmem:[%s331 + $0x248] sm:$0xf]
      %v424 = vld [vmem:[%s331 + $0x24c] sm:$0xff]
      %v425 = vld [vmem:[%s331 + $0x254] sm:$0xff]
      %v426 = vld [vmem:[%s331 + $0x25c] sm:$0xff]
      %v427 = vld [vmem:[%s331 + $0x264] sm:$0xf]
      %v428 = vld [vmem:[%s331 + $0x268] sm:$0xff]
      %v429 = vld [vmem:[%s331 + $0x270] sm:$0xff]
      %v430 = vld [vmem:[%s331 + $0x278] sm:$0xff]
      %v431 = vld [vmem:[%s331 + $0x280] sm:$0xf]
      %v432 = vld [vmem:[%s331 + $0x284] sm:$0xff]
      %v433 = vld [vmem:[%s331 + $0x28c] sm:$0xff]
      %v434 = vld [vmem:[%s331 + $0x294] sm:$0xff]
      %v435 = vld [vmem:[%s331 + $0x29c] sm:$0xf]
      %v436 = vld [vmem:[%s331 + $0x2a0] sm:$0xff]
      %v437 = vld [vmem:[%s331 + $0x2a8] sm:$0xff]
      %v438 = vld [vmem:[%s331 + $0x2b0] sm:$0xff]
      %v439 = vld [vmem:[%s331 + $0x2b8] sm:$0xf]
      %v440 = vld [vmem:[%s331 + $0x2bc] sm:$0xff]
      %v441 = vld [vmem:[%s331 + $0x2c4] sm:$0xff]
      %v442 = vld [vmem:[%s331 + $0x2cc] sm:$0xff]
      %v443 = vld [vmem:[%s331 + $0x2d4] sm:$0xf]
      %v444 = vld [vmem:[%s331 + $0x2d8] sm:$0xff]
      %v445 = vld [vmem:[%s331 + $0x2e0] sm:$0xff]
      %v446 = vld [vmem:[%s331 + $0x2e8] sm:$0xff]
      %v447 = vld [vmem:[%s331 + $0x2f0] sm:$0xf]
      %v448 = vld [vmem:[%s331 + $0x2f4] sm:$0xff]
      %v449 = vld [vmem:[%s331 + $0x2fc] sm:$0xff]
      %v450 = vld [vmem:[%s331 + $0x304] sm:$0xff]
      %v451 = vld [vmem:[%s331 + $0x30c] sm:$0xf]
      %v452 = vld [vmem:[%s331 + $0x310] sm:$0xff]
      %v453 = vld [vmem:[%s331 + $0x318] sm:$0xff]
      %v454 = vld [vmem:[%s331 + $0x320] sm:$0xff]
      %v455 = vld [vmem:[%s331 + $0x328] sm:$0xf]
      %v456 = vld [vmem:[%s331 + $0x32c] sm:$0xff]
      %v457 = vld [vmem:[%s331 + $0x334] sm:$0xff]
      %v458 = vld [vmem:[%s331 + $0x33c] sm:$0xff]
      %v459 = vld [vmem:[%s331 + $0x344] sm:$0xf]
      %v460 = vld [vmem:[%s331 + $0x348] sm:$0xff]
      %v461 = vld [vmem:[%s331 + $0x350] sm:$0xff]
      %v462 = vld [vmem:[%s331 + $0x358] sm:$0xff]
      %v463 = vld [vmem:[%s331 + $0x360] sm:$0xf]
      %v464 = vld [vmem:[%s331 + $0x364] sm:$0xff]
      %v465 = vld [vmem:[%s331 + $0x36c] sm:$0xff]
      %v466 = vld [vmem:[%s331 + $0x374] sm:$0xff]
      %v467 = vld [vmem:[%s331 + $0x37c] sm:$0xf]
      %v468 = vld [vmem:[%s1] sm:$0xff]
      %v469 = vld [vmem:[%s1 + $0x8] sm:$0xff]
      %v470 = vld [vmem:[%s1 + $0x10] sm:$0xff]
      %v471 = vld [vmem:[%s1 + $0x18] sm:$0xff]
      %v472 = vld [vmem:[%s1 + $0x20] sm:$0xff]
      %v473 = vld [vmem:[%s1 + $0x28] sm:$0xff]
      %v474 = vld [vmem:[%s1 + $0x30] sm:$0xff]
      %v475 = vld [vmem:[%s1 + $0x38] sm:$0xff]
      %v476 = vld [vmem:[%s1 + $0x40] sm:$0xff]
      %v477 = vld [vmem:[%s1 + $0x48] sm:$0xff]
      %v478 = vld [vmem:[%s1 + $0x50] sm:$0xff]
      %v479 = vld [vmem:[%s1 + $0x58] sm:$0xff]
      %v480 = vld [vmem:[%s1 + $0x60] sm:$0xff]
      %v481 = vld [vmem:[%s1 + $0x68] sm:$0xff]
      %v482 = vld [vmem:[%s1 + $0x70] sm:$0xff]
      %v483 = vld [vmem:[%s1 + $0x78] sm:$0xff]
      %v484 = vld [vmem:[%s1 + $0x80] sm:$0xff]
      %v485 = vld [vmem:[%s1 + $0x88] sm:$0xff]
      %v486 = vld [vmem:[%s1 + $0x90] sm:$0xff]
      %v487 = vld [vmem:[%s1 + $0x98] sm:$0xff]
      %v488 = vld [vmem:[%s1 + $0xa0] sm:$0xff]
      %v489 = vld [vmem:[%s1 + $0xa8] sm:$0xff]
      %v490 = vld [vmem:[%s1 + $0xb0] sm:$0xff]
      %v491 = vld [vmem:[%s1 + $0xb8] sm:$0xff]
      %v492 = vld [vmem:[%s1 + $0xc0] sm:$0xff]
      %v493 = vld [vmem:[%s1 + $0xc8] sm:$0xff]
      %v494 = vld [vmem:[%s1 + $0xd0] sm:$0xff]
      %v495 = vld [vmem:[%s1 + $0xd8] sm:$0xff]
      %v496 = vld [vmem:[%s1 + $0xe0] sm:$0xff]
      %v497 = vld [vmem:[%s1 + $0xe8] sm:$0xff]
      %v498 = vld [vmem:[%s1 + $0xf0] sm:$0xff]
      %v499 = vld [vmem:[%s1 + $0xf8] sm:$0xff]
      %v500 = vld [vmem:[%s1 + $0x100] sm:$0xff]
      %v501 = vld [vmem:[%s1 + $0x108] sm:$0xff]
      %v502 = vld [vmem:[%s1 + $0x110] sm:$0xff]
      %v503 = vld [vmem:[%s1 + $0x118] sm:$0xff]
      %v504 = vld [vmem:[%s1 + $0x120] sm:$0xff]
      %v505 = vld [vmem:[%s1 + $0x128] sm:$0xff]
      %v506 = vld [vmem:[%s1 + $0x130] sm:$0xff]
      %v507 = vld [vmem:[%s1 + $0x138] sm:$0xff]
      %v508 = vld [vmem:[%s1 + $0x140] sm:$0xff]
      %v509 = vld [vmem:[%s1 + $0x148] sm:$0xff]
      %v510 = vld [vmem:[%s1 + $0x150] sm:$0xff]
      %v511 = vld [vmem:[%s1 + $0x158] sm:$0xff]
      %v512 = vld [vmem:[%s1 + $0x160] sm:$0xff]
      %v513 = vld [vmem:[%s1 + $0x168] sm:$0xff]
      %v514 = vld [vmem:[%s1 + $0x170] sm:$0xff]
      %v515 = vld [vmem:[%s1 + $0x178] sm:$0xff]
      %v516 = vld [vmem:[%s1 + $0x180] sm:$0xff]
      %v517 = vld [vmem:[%s1 + $0x188] sm:$0xff]
      %v518 = vld [vmem:[%s1 + $0x190] sm:$0xff]
      %v519 = vld [vmem:[%s1 + $0x198] sm:$0xff]
      %v520 = vld [vmem:[%s1 + $0x1a0] sm:$0xff]
      %v521 = vld [vmem:[%s1 + $0x1a8] sm:$0xff]
      %v522 = vld [vmem:[%s1 + $0x1b0] sm:$0xff]
      %v523 = vld [vmem:[%s1 + $0x1b8] sm:$0xff]
      %v524 = vld [vmem:[%s1 + $0x1c0] sm:$0xff]
      %v525 = vld [vmem:[%s1 + $0x1c8] sm:$0xff]
      %v526 = vld [vmem:[%s1 + $0x1d0] sm:$0xff]
      %v527 = vld [vmem:[%s1 + $0x1d8] sm:$0xff]
      %v528 = vld [vmem:[%s1 + $0x1e0] sm:$0xff]
      %v529 = vld [vmem:[%s1 + $0x1e8] sm:$0xff]
      %v530 = vld [vmem:[%s1 + $0x1f0] sm:$0xff]
      %v531 = vld [vmem:[%s1 + $0x1f8] sm:$0xff]
      %v532 = vld [vmem:[%s1 + $0x200] sm:$0xff]
      %v533 = vld [vmem:[%s1 + $0x208] sm:$0xff]
      %v534 = vld [vmem:[%s1 + $0x210] sm:$0xff]
      %v535 = vld [vmem:[%s1 + $0x218] sm:$0xff]
      %v536 = vld [vmem:[%s1 + $0x220] sm:$0xff]
      %v537 = vld [vmem:[%s1 + $0x228] sm:$0xff]
      %v538 = vld [vmem:[%s1 + $0x230] sm:$0xff]
      %v539 = vld [vmem:[%s1 + $0x238] sm:$0xff]
      %v540 = vld [vmem:[%s1 + $0x240] sm:$0xff]
      %v541 = vld [vmem:[%s1 + $0x248] sm:$0xff]
      %v542 = vld [vmem:[%s1 + $0x250] sm:$0xff]
      %v543 = vld [vmem:[%s1 + $0x258] sm:$0xff]
      %v544 = vld [vmem:[%s1 + $0x260] sm:$0xff]
      %v545 = vld [vmem:[%s1 + $0x268] sm:$0xff]
      %v546 = vld [vmem:[%s1 + $0x270] sm:$0xff]
      %v547 = vld [vmem:[%s1 + $0x278] sm:$0xff]
      %v548 = vld [vmem:[%s1 + $0x280] sm:$0xff]
      %v549 = vld [vmem:[%s1 + $0x288] sm:$0xff]
      %v550 = vld [vmem:[%s1 + $0x290] sm:$0xff]
      %v551 = vld [vmem:[%s1 + $0x298] sm:$0xff]
      %v552 = vld [vmem:[%s1 + $0x2a0] sm:$0xff]
      %v553 = vld [vmem:[%s1 + $0x2a8] sm:$0xff]
      %v554 = vld [vmem:[%s1 + $0x2b0] sm:$0xff]
      %v555 = vld [vmem:[%s1 + $0x2b8] sm:$0xff]
      %v556 = vld [vmem:[%s1 + $0x2c0] sm:$0xff]
      %v557 = vld [vmem:[%s1 + $0x2c8] sm:$0xff]
      %v558 = vld [vmem:[%s1 + $0x2d0] sm:$0xff]
      %v559 = vld [vmem:[%s1 + $0x2d8] sm:$0xff]
      %v560 = vld [vmem:[%s1 + $0x2e0] sm:$0xff]
      %v561 = vld [vmem:[%s1 + $0x2e8] sm:$0xff]
      %v562 = vld [vmem:[%s1 + $0x2f0] sm:$0xff]
      %v563 = vld [vmem:[%s1 + $0x2f8] sm:$0xff]
      %v564 = vld [vmem:[%s1 + $0x300] sm:$0xff]
      %v565 = vld [vmem:[%s1 + $0x308] sm:$0xff]
      %v566 = vld [vmem:[%s1 + $0x310] sm:$0xff]
      %v567 = vld [vmem:[%s1 + $0x318] sm:$0xff]
      %v568 = vld [vmem:[%s1 + $0x320] sm:$0xff]
      %v569 = vld [vmem:[%s1 + $0x328] sm:$0xff]
      %v570 = vld [vmem:[%s1 + $0x330] sm:$0xff]
      %v571 = vld [vmem:[%s1 + $0x338] sm:$0xff]
      %v572 = vld [vmem:[%s1 + $0x340] sm:$0xff]
      %v573 = vld [vmem:[%s1 + $0x348] sm:$0xff]
      %v574 = vld [vmem:[%s1 + $0x350] sm:$0xff]
      %v575 = vld [vmem:[%s1 + $0x358] sm:$0xff]
      %v576 = vld [vmem:[%s1 + $0x360] sm:$0xff]
      %v577 = vld [vmem:[%s1 + $0x368] sm:$0xff]
      %v578 = vld [vmem:[%s1 + $0x370] sm:$0xff]
      %v579 = vld [vmem:[%s1 + $0x378] sm:$0xff]
      %v580 = vld [vmem:[%s1 + $0x380] sm:$0xff]
      %v581 = vld [vmem:[%s1 + $0x388] sm:$0xff]
      %v582 = vld [vmem:[%s1 + $0x390] sm:$0xff]
      %v583 = vld [vmem:[%s1 + $0x398] sm:$0xff]
      %v584 = vld [vmem:[%s1 + $0x3a0] sm:$0xff]
      %v585 = vld [vmem:[%s1 + $0x3a8] sm:$0xff]
      %v586 = vld [vmem:[%s1 + $0x3b0] sm:$0xff]
      %v587 = vld [vmem:[%s1 + $0x3b8] sm:$0xff]
      %v588 = vld [vmem:[%s1 + $0x3c0] sm:$0xff]
      %v589 = vld [vmem:[%s1 + $0x3c8] sm:$0xff]
      %v590 = vld [vmem:[%s1 + $0x3d0] sm:$0xff]
      %v591 = vld [vmem:[%s1 + $0x3d8] sm:$0xff]
      %v592 = vld [vmem:[%s1 + $0x3e0] sm:$0xff]
      %v593 = vld [vmem:[%s1 + $0x3e8] sm:$0xff]
      %v594 = vld [vmem:[%s1 + $0x3f0] sm:$0xff]
      %v595 = vld [vmem:[%s1 + $0x3f8] sm:$0xff]
      %v596 = vld [vmem:[%s1 + $0x400] sm:$0xff]
      %v597 = vld [vmem:[%s1 + $0x408] sm:$0xff]
      %v598 = vld [vmem:[%s1 + $0x410] sm:$0xff]
      %v599 = vld [vmem:[%s1 + $0x418] sm:$0xff]
      %v600 = vld [vmem:[%s1 + $0x420] sm:$0xff]
      %v601 = vld [vmem:[%s1 + $0x428] sm:$0xff]
      %v602 = vld [vmem:[%s1 + $0x430] sm:$0xff]
      %v603 = vld [vmem:[%s1 + $0x438] sm:$0xff]
      %v604 = vld [vmem:[%s1 + $0x440] sm:$0xff]
      %v605 = vld [vmem:[%s1 + $0x448] sm:$0xff]
      %v606 = vld [vmem:[%s1 + $0x450] sm:$0xff]
      %v607 = vld [vmem:[%s1 + $0x458] sm:$0xff]
      %v608 = vld [vmem:[%s1 + $0x460] sm:$0xff]
      %v609 = vld [vmem:[%s1 + $0x468] sm:$0xff]
      %v610 = vld [vmem:[%s1 + $0x470] sm:$0xff]
      %v611 = vld [vmem:[%s1 + $0x478] sm:$0xff]
      %v612 = vld [vmem:[%s1 + $0x480] sm:$0xff]
      %v613 = vld [vmem:[%s1 + $0x488] sm:$0xff]
      %v614 = vld [vmem:[%s1 + $0x490] sm:$0xff]
      %v615 = vld [vmem:[%s1 + $0x498] sm:$0xff]
      %v616 = vld [vmem:[%s1 + $0x4a0] sm:$0xff]
      %v617 = vld [vmem:[%s1 + $0x4a8] sm:$0xff]
      %v618 = vld [vmem:[%s1 + $0x4b0] sm:$0xff]
      %v619 = vld [vmem:[%s1 + $0x4b8] sm:$0xff]
      %v620 = vld [vmem:[%s1 + $0x4c0] sm:$0xff]
      %v621 = vld [vmem:[%s1 + $0x4c8] sm:$0xff]
      %v622 = vld [vmem:[%s1 + $0x4d0] sm:$0xff]
      %v623 = vld [vmem:[%s1 + $0x4d8] sm:$0xff]
      %v624 = vld [vmem:[%s1 + $0x4e0] sm:$0xff]
      %v625 = vld [vmem:[%s1 + $0x4e8] sm:$0xff]
      %v626 = vld [vmem:[%s1 + $0x4f0] sm:$0xff]
      %v627 = vld [vmem:[%s1 + $0x4f8] sm:$0xff]
      %v628 = vld [vmem:[%s1 + $0x500] sm:$0xff]
      %v629 = vld [vmem:[%s1 + $0x508] sm:$0xff]
      %v630 = vld [vmem:[%s1 + $0x510] sm:$0xff]
      %v631 = vld [vmem:[%s1 + $0x518] sm:$0xff]
      %v632 = vld [vmem:[%s1 + $0x520] sm:$0xff]
      %v633 = vld [vmem:[%s1 + $0x528] sm:$0xff]
      %v634 = vld [vmem:[%s1 + $0x530] sm:$0xff]
      %v635 = vld [vmem:[%s1 + $0x538] sm:$0xff]
      %v636 = vld [vmem:[%s1 + $0x540] sm:$0xff]
      %v637 = vld [vmem:[%s1 + $0x548] sm:$0xff]
      %v638 = vld [vmem:[%s1 + $0x550] sm:$0xff]
      %v639 = vld [vmem:[%s1 + $0x558] sm:$0xff]
      %v640 = vld [vmem:[%s1 + $0x560] sm:$0xff]
      %v641 = vld [vmem:[%s1 + $0x568] sm:$0xff]
      %v642 = vld [vmem:[%s1 + $0x570] sm:$0xff]
      %v643 = vld [vmem:[%s1 + $0x578] sm:$0xff]
      %v644 = vld [vmem:[%s1 + $0x580] sm:$0xff]
      %v645 = vld [vmem:[%s1 + $0x588] sm:$0xff]
      %v646 = vld [vmem:[%s1 + $0x590] sm:$0xff]
      %v647 = vld [vmem:[%s1 + $0x598] sm:$0xff]
      %v648 = vld [vmem:[%s1 + $0x5a0] sm:$0xff]
      %v649 = vld [vmem:[%s1 + $0x5a8] sm:$0xff]
      %v650 = vld [vmem:[%s1 + $0x5b0] sm:$0xff]
      %v651 = vld [vmem:[%s1 + $0x5b8] sm:$0xff]
      %v652 = vld [vmem:[%s1 + $0x5c0] sm:$0xff]
      %v653 = vld [vmem:[%s1 + $0x5c8] sm:$0xff]
      %v654 = vld [vmem:[%s1 + $0x5d0] sm:$0xff]
      %v655 = vld [vmem:[%s1 + $0x5d8] sm:$0xff]
      %v656 = vld [vmem:[%s1 + $0x5e0] sm:$0xff]
      %v657 = vld [vmem:[%s1 + $0x5e8] sm:$0xff]
      %v658 = vld [vmem:[%s1 + $0x5f0] sm:$0xff]
      %v659 = vld [vmem:[%s1 + $0x5f8] sm:$0xff]
      %v660 = vld [vmem:[%s1 + $0x600] sm:$0xff]
      %v661 = vld [vmem:[%s1 + $0x608] sm:$0xff]
      %v662 = vld [vmem:[%s1 + $0x610] sm:$0xff]
      %v663 = vld [vmem:[%s1 + $0x618] sm:$0xff]
      %v664 = vld [vmem:[%s1 + $0x620] sm:$0xff]
      %v665 = vld [vmem:[%s1 + $0x628] sm:$0xff]
      %v666 = vld [vmem:[%s1 + $0x630] sm:$0xff]
      %v667 = vld [vmem:[%s1 + $0x638] sm:$0xff]
      %v668 = vld [vmem:[%s1 + $0x640] sm:$0xff]
      %v669 = vld [vmem:[%s1 + $0x648] sm:$0xff]
      %v670 = vld [vmem:[%s1 + $0x650] sm:$0xff]
      %v671 = vld [vmem:[%s1 + $0x658] sm:$0xff]
      %v672 = vld [vmem:[%s1 + $0x660] sm:$0xff]
      %v673 = vld [vmem:[%s1 + $0x668] sm:$0xff]
      %v674 = vld [vmem:[%s1 + $0x670] sm:$0xff]
      %v675 = vld [vmem:[%s1 + $0x678] sm:$0xff]
      %v676 = vld [vmem:[%s1 + $0x680] sm:$0xff]
      %v677 = vld [vmem:[%s1 + $0x688] sm:$0xff]
      %v678 = vld [vmem:[%s1 + $0x690] sm:$0xff]
      %v679 = vld [vmem:[%s1 + $0x698] sm:$0xff]
      %v680 = vld [vmem:[%s1 + $0x6a0] sm:$0xff]
      %v681 = vld [vmem:[%s1 + $0x6a8] sm:$0xff]
      %v682 = vld [vmem:[%s1 + $0x6b0] sm:$0xff]
      %v683 = vld [vmem:[%s1 + $0x6b8] sm:$0xff]
      %v684 = vld [vmem:[%s1 + $0x6c0] sm:$0xff]
      %v685 = vld [vmem:[%s1 + $0x6c8] sm:$0xff]
      %v686 = vld [vmem:[%s1 + $0x6d0] sm:$0xff]
      %v687 = vld [vmem:[%s1 + $0x6d8] sm:$0xff]
      %v688 = vld [vmem:[%s1 + $0x6e0] sm:$0xff]
      %v689 = vld [vmem:[%s1 + $0x6e8] sm:$0xff]
      %v690 = vld [vmem:[%s1 + $0x6f0] sm:$0xff]
      %v691 = vld [vmem:[%s1 + $0x6f8] sm:$0xff]
      %v692 = vld [vmem:[%s2] sm:$0xf]
      %v694 = vperm.slane %v692, 0
      %v695 = vperm.slane %v692, 1
      %v696 = vperm.slane %v692, 2
      %v697 = vperm.slane %v692, 3
      %v830 = vunpack.c.l.b16 %v340
      %v831 = vunpack.c.h.b16 %v340
      %v832 = vunpack.c.l.b16 %v341
      %v833 = vunpack.c.h.b16 %v341
      %v834 = vunpack.c.l.b16 %v342
      %v835 = vunpack.c.h.b16 %v342
      %v836 = vunpack.c.l.b16 %v343
      %v837 = vunpack.c.l.b16 %v344
      %v838 = vunpack.c.h.b16 %v344
      %v839 = vunpack.c.l.b16 %v345
      %v840 = vunpack.c.h.b16 %v345
      %v841 = vunpack.c.l.b16 %v346
      %v842 = vunpack.c.h.b16 %v346
      %v843 = vunpack.c.l.b16 %v347
      %v844 = vunpack.c.l.b16 %v348
      %v845 = vunpack.c.h.b16 %v348
      %v846 = vunpack.c.l.b16 %v349
      %v847 = vunpack.c.h.b16 %v349
      %v848 = vunpack.c.l.b16 %v350
      %v849 = vunpack.c.h.b16 %v350
      %v850 = vunpack.c.l.b16 %v351
      %v851 = vunpack.c.l.b16 %v352
      %v852 = vunpack.c.h.b16 %v352
      %v853 = vunpack.c.l.b16 %v353
      %v854 = vunpack.c.h.b16 %v353
      %v855 = vunpack.c.l.b16 %v354
      %v856 = vunpack.c.h.b16 %v354
      %v857 = vunpack.c.l.b16 %v355
      %v858 = vunpack.c.l.b16 %v356
      %v859 = vunpack.c.h.b16 %v356
      %v860 = vunpack.c.l.b16 %v357
      %v861 = vunpack.c.h.b16 %v357
      %v862 = vunpack.c.l.b16 %v358
      %v863 = vunpack.c.h.b16 %v358
      %v864 = vunpack.c.l.b16 %v359
      %v865 = vunpack.c.l.b16 %v360
      %v866 = vunpack.c.h.b16 %v360
      %v867 = vunpack.c.l.b16 %v361
      %v868 = vunpack.c.h.b16 %v361
      %v869 = vunpack.c.l.b16 %v362
      %v870 = vunpack.c.h.b16 %v362
      %v871 = vunpack.c.l.b16 %v363
      %v872 = vunpack.c.l.b16 %v364
      %v873 = vunpack.c.h.b16 %v364
      %v874 = vunpack.c.l.b16 %v365
      %v875 = vunpack.c.h.b16 %v365
      %v876 = vunpack.c.l.b16 %v366
      %v877 = vunpack.c.h.b16 %v366
      %v878 = vunpack.c.l.b16 %v367
      %v879 = vunpack.c.l.b16 %v368
      %v880 = vunpack.c.h.b16 %v368
      %v881 = vunpack.c.l.b16 %v369
      %v882 = vunpack.c.h.b16 %v369
      %v883 = vunpack.c.l.b16 %v370
      %v884 = vunpack.c.h.b16 %v370
      %v885 = vunpack.c.l.b16 %v371
      %v886 = vunpack.c.l.b16 %v372
      %v887 = vunpack.c.h.b16 %v372
      %v888 = vunpack.c.l.b16 %v373
      %v889 = vunpack.c.h.b16 %v373
      %v890 = vunpack.c.l.b16 %v374
      %v891 = vunpack.c.h.b16 %v374
      %v892 = vunpack.c.l.b16 %v375
      %v893 = vunpack.c.l.b16 %v376
      %v894 = vunpack.c.h.b16 %v376
      %v895 = vunpack.c.l.b16 %v377
      %v896 = vunpack.c.h.b16 %v377
      %v897 = vunpack.c.l.b16 %v378
      %v898 = vunpack.c.h.b16 %v378
      %v899 = vunpack.c.l.b16 %v379
      %v900 = vunpack.c.l.b16 %v380
      %v901 = vunpack.c.h.b16 %v380
      %v902 = vunpack.c.l.b16 %v381
      %v903 = vunpack.c.h.b16 %v381
      %v904 = vunpack.c.l.b16 %v382
      %v905 = vunpack.c.h.b16 %v382
      %v906 = vunpack.c.l.b16 %v383
      %v907 = vunpack.c.l.b16 %v384
      %v908 = vunpack.c.h.b16 %v384
      %v909 = vunpack.c.l.b16 %v385
      %v910 = vunpack.c.h.b16 %v385
      %v911 = vunpack.c.l.b16 %v386
      %v912 = vunpack.c.h.b16 %v386
      %v913 = vunpack.c.l.b16 %v387
      %v914 = vunpack.c.l.b16 %v388
      %v915 = vunpack.c.h.b16 %v388
      %v916 = vunpack.c.l.b16 %v389
      %v917 = vunpack.c.h.b16 %v389
      %v918 = vunpack.c.l.b16 %v390
      %v919 = vunpack.c.h.b16 %v390
      %v920 = vunpack.c.l.b16 %v391
      %v921 = vunpack.c.l.b16 %v392
      %v922 = vunpack.c.h.b16 %v392
      %v923 = vunpack.c.l.b16 %v393
      %v924 = vunpack.c.h.b16 %v393
      %v925 = vunpack.c.l.b16 %v394
      %v926 = vunpack.c.h.b16 %v394
      %v927 = vunpack.c.l.b16 %v395
      %v928 = vunpack.c.l.b16 %v396
      %v929 = vunpack.c.h.b16 %v396
      %v930 = vunpack.c.l.b16 %v397
      %v931 = vunpack.c.h.b16 %v397
      %v932 = vunpack.c.l.b16 %v398
      %v933 = vunpack.c.h.b16 %v398
      %v934 = vunpack.c.l.b16 %v399
      %v935 = vunpack.c.l.b16 %v400
      %v936 = vunpack.c.h.b16 %v400
      %v937 = vunpack.c.l.b16 %v401
      %v938 = vunpack.c.h.b16 %v401
      %v939 = vunpack.c.l.b16 %v402
      %v940 = vunpack.c.h.b16 %v402
      %v941 = vunpack.c.l.b16 %v403
      %v942 = vunpack.c.l.b16 %v404
      %v943 = vunpack.c.h.b16 %v404
      %v944 = vunpack.c.l.b16 %v405
      %v945 = vunpack.c.h.b16 %v405
      %v946 = vunpack.c.l.b16 %v406
      %v947 = vunpack.c.h.b16 %v406
      %v948 = vunpack.c.l.b16 %v407
      %v949 = vunpack.c.l.b16 %v408
      %v950 = vunpack.c.h.b16 %v408
      %v951 = vunpack.c.l.b16 %v409
      %v952 = vunpack.c.h.b16 %v409
      %v953 = vunpack.c.l.b16 %v410
      %v954 = vunpack.c.h.b16 %v410
      %v955 = vunpack.c.l.b16 %v411
      %v956 = vunpack.c.l.b16 %v412
      %v957 = vunpack.c.h.b16 %v412
      %v958 = vunpack.c.l.b16 %v413
      %v959 = vunpack.c.h.b16 %v413
      %v960 = vunpack.c.l.b16 %v414
      %v961 = vunpack.c.h.b16 %v414
      %v962 = vunpack.c.l.b16 %v415
      %v963 = vunpack.c.l.b16 %v416
      %v964 = vunpack.c.h.b16 %v416
      %v965 = vunpack.c.l.b16 %v417
      %v966 = vunpack.c.h.b16 %v417
      %v967 = vunpack.c.l.b16 %v418
      %v968 = vunpack.c.h.b16 %v418
      %v969 = vunpack.c.l.b16 %v419
      %v970 = vunpack.c.l.b16 %v420
      %v971 = vunpack.c.h.b16 %v420
      %v972 = vunpack.c.l.b16 %v421
      %v973 = vunpack.c.h.b16 %v421
      %v974 = vunpack.c.l.b16 %v422
      %v975 = vunpack.c.h.b16 %v422
      %v976 = vunpack.c.l.b16 %v423
      %v977 = vunpack.c.l.b16 %v424
      %v978 = vunpack.c.h.b16 %v424
      %v979 = vunpack.c.l.b16 %v425
      %v980 = vunpack.c.h.b16 %v425
      %v981 = vunpack.c.l.b16 %v426
      %v982 = vunpack.c.h.b16 %v426
      %v983 = vunpack.c.l.b16 %v427
      %v984 = vunpack.c.l.b16 %v428
      %v985 = vunpack.c.h.b16 %v428
      %v986 = vunpack.c.l.b16 %v429
      %v987 = vunpack.c.h.b16 %v429
      %v988 = vunpack.c.l.b16 %v430
      %v989 = vunpack.c.h.b16 %v430
      %v990 = vunpack.c.l.b16 %v431
      %v991 = vunpack.c.l.b16 %v432
      %v992 = vunpack.c.h.b16 %v432
      %v993 = vunpack.c.l.b16 %v433
      %v994 = vunpack.c.h.b16 %v433
      %v995 = vunpack.c.l.b16 %v434
      %v996 = vunpack.c.h.b16 %v434
      %v997 = vunpack.c.l.b16 %v435
      %v998 = vunpack.c.l.b16 %v436
      %v999 = vunpack.c.h.b16 %v436
      %v1000 = vunpack.c.l.b16 %v437
      %v1001 = vunpack.c.h.b16 %v437
      %v1002 = vunpack.c.l.b16 %v438
      %v1003 = vunpack.c.h.b16 %v438
      %v1004 = vunpack.c.l.b16 %v439
      %v1005 = vunpack.c.l.b16 %v440
      %v1006 = vunpack.c.h.b16 %v440
      %v1007 = vunpack.c.l.b16 %v441
      %v1008 = vunpack.c.h.b16 %v441
      %v1009 = vunpack.c.l.b16 %v442
      %v1010 = vunpack.c.h.b16 %v442
      %v1011 = vunpack.c.l.b16 %v443
      %v1012 = vunpack.c.l.b16 %v444
      %v1013 = vunpack.c.h.b16 %v444
      %v1014 = vunpack.c.l.b16 %v445
      %v1015 = vunpack.c.h.b16 %v445
      %v1016 = vunpack.c.l.b16 %v446
      %v1017 = vunpack.c.h.b16 %v446
      %v1018 = vunpack.c.l.b16 %v447
      %v1019 = vunpack.c.l.b16 %v448
      %v1020 = vunpack.c.h.b16 %v448
      %v1021 = vunpack.c.l.b16 %v449
      %v1022 = vunpack.c.h.b16 %v449
      %v1023 = vunpack.c.l.b16 %v450
      %v1024 = vunpack.c.h.b16 %v450
      %v1025 = vunpack.c.l.b16 %v451
      %v1026 = vunpack.c.l.b16 %v452
      %v1027 = vunpack.c.h.b16 %v452
      %v1028 = vunpack.c.l.b16 %v453
      %v1029 = vunpack.c.h.b16 %v453
      %v1030 = vunpack.c.l.b16 %v454
      %v1031 = vunpack.c.h.b16 %v454
      %v1032 = vunpack.c.l.b16 %v455
      %v1033 = vunpack.c.l.b16 %v456
      %v1034 = vunpack.c.h.b16 %v456
      %v1035 = vunpack.c.l.b16 %v457
      %v1036 = vunpack.c.h.b16 %v457
      %v1037 = vunpack.c.l.b16 %v458
      %v1038 = vunpack.c.h.b16 %v458
      %v1039 = vunpack.c.l.b16 %v459
      %v1040 = vunpack.c.l.b16 %v460
      %v1041 = vunpack.c.h.b16 %v460
      %v1042 = vunpack.c.l.b16 %v461
      %v1043 = vunpack.c.h.b16 %v461
      %v1044 = vunpack.c.l.b16 %v462
      %v1045 = vunpack.c.h.b16 %v462
      %v1046 = vunpack.c.l.b16 %v463
      %v1047 = vunpack.c.l.b16 %v464
      %v1048 = vunpack.c.h.b16 %v464
      %v1049 = vunpack.c.l.b16 %v465
      %v1050 = vunpack.c.h.b16 %v465
      %v1051 = vunpack.c.l.b16 %v466
      %v1052 = vunpack.c.h.b16 %v466
      %v1053 = vunpack.c.l.b16 %v467
      %v1054 = vpack.c.b16 %v837, %v830
      %v1055 = vpack.c.b16 %v838, %v831
      %v1056 = vpack.c.b16 %v839, %v832
      %v1057 = vpack.c.b16 %v840, %v833
      %v1058 = vpack.c.b16 %v841, %v834
      %v1059 = vpack.c.b16 %v842, %v835
      %v1060 = vpack.c.b16 %v843, %v836
      %v1061 = vpack.c.b16 %v851, %v844
      %v1062 = vpack.c.b16 %v852, %v845
      %v1063 = vpack.c.b16 %v853, %v846
      %v1064 = vpack.c.b16 %v854, %v847
      %v1065 = vpack.c.b16 %v855, %v848
      %v1066 = vpack.c.b16 %v856, %v849
      %v1067 = vpack.c.b16 %v857, %v850
      %v1068 = vpack.c.b16 %v865, %v858
      %v1069 = vpack.c.b16 %v866, %v859
      %v1070 = vpack.c.b16 %v867, %v860
      %v1071 = vpack.c.b16 %v868, %v861
      %v1072 = vpack.c.b16 %v869, %v862
      %v1073 = vpack.c.b16 %v870, %v863
      %v1074 = vpack.c.b16 %v871, %v864
      %v1075 = vpack.c.b16 %v879, %v872
      %v1076 = vpack.c.b16 %v880, %v873
      %v1077 = vpack.c.b16 %v881, %v874
      %v1078 = vpack.c.b16 %v882, %v875
      %v1079 = vpack.c.b16 %v883, %v876
      %v1080 = vpack.c.b16 %v884, %v877
      %v1081 = vpack.c.b16 %v885, %v878
      %v1082 = vpack.c.b16 %v893, %v886
      %v1083 = vpack.c.b16 %v894, %v887
      %v1084 = vpack.c.b16 %v895, %v888
      %v1085 = vpack.c.b16 %v896, %v889
      %v1086 = vpack.c.b16 %v897, %v890
      %v1087 = vpack.c.b16 %v898, %v891
      %v1088 = vpack.c.b16 %v899, %v892
      %v1089 = vpack.c.b16 %v907, %v900
      %v1090 = vpack.c.b16 %v908, %v901
      %v1091 = vpack.c.b16 %v909, %v902
      %v1092 = vpack.c.b16 %v910, %v903
      %v1093 = vpack.c.b16 %v911, %v904
      %v1094 = vpack.c.b16 %v912, %v905
      %v1095 = vpack.c.b16 %v913, %v906
      %v1096 = vpack.c.b16 %v921, %v914
      %v1097 = vpack.c.b16 %v922, %v915
      %v1098 = vpack.c.b16 %v923, %v916
      %v1099 = vpack.c.b16 %v924, %v917
      %v1100 = vpack.c.b16 %v925, %v918
      %v1101 = vpack.c.b16 %v926, %v919
      %v1102 = vpack.c.b16 %v927, %v920
      %v1103 = vpack.c.b16 %v935, %v928
      %v1104 = vpack.c.b16 %v936, %v929
      %v1105 = vpack.c.b16 %v937, %v930
      %v1106 = vpack.c.b16 %v938, %v931
      %v1107 = vpack.c.b16 %v939, %v932
      %v1108 = vpack.c.b16 %v940, %v933
      %v1109 = vpack.c.b16 %v941, %v934
      %v1110 = vpack.c.b16 %v949, %v942
      %v1111 = vpack.c.b16 %v950, %v943
      %v1112 = vpack.c.b16 %v951, %v944
      %v1113 = vpack.c.b16 %v952, %v945
      %v1114 = vpack.c.b16 %v953, %v946
      %v1115 = vpack.c.b16 %v954, %v947
      %v1116 = vpack.c.b16 %v955, %v948
      %v1117 = vpack.c.b16 %v963, %v956
      %v1118 = vpack.c.b16 %v964, %v957
      %v1119 = vpack.c.b16 %v965, %v958
      %v1120 = vpack.c.b16 %v966, %v959
      %v1121 = vpack.c.b16 %v967, %v960
      %v1122 = vpack.c.b16 %v968, %v961
      %v1123 = vpack.c.b16 %v969, %v962
      %v1124 = vpack.c.b16 %v977, %v970
      %v1125 = vpack.c.b16 %v978, %v971
      %v1126 = vpack.c.b16 %v979, %v972
      %v1127 = vpack.c.b16 %v980, %v973
      %v1128 = vpack.c.b16 %v981, %v974
      %v1129 = vpack.c.b16 %v982, %v975
      %v1130 = vpack.c.b16 %v983, %v976
      %v1131 = vpack.c.b16 %v991, %v984
      %v1132 = vpack.c.b16 %v992, %v985
      %v1133 = vpack.c.b16 %v993, %v986
      %v1134 = vpack.c.b16 %v994, %v987
      %v1135 = vpack.c.b16 %v995, %v988
      %v1136 = vpack.c.b16 %v996, %v989
      %v1137 = vpack.c.b16 %v997, %v990
      %v1138 = vpack.c.b16 %v1005, %v998
      %v1139 = vpack.c.b16 %v1006, %v999
      %v1140 = vpack.c.b16 %v1007, %v1000
      %v1141 = vpack.c.b16 %v1008, %v1001
      %v1142 = vpack.c.b16 %v1009, %v1002
      %v1143 = vpack.c.b16 %v1010, %v1003
      %v1144 = vpack.c.b16 %v1011, %v1004
      %v1145 = vpack.c.b16 %v1019, %v1012
      %v1146 = vpack.c.b16 %v1020, %v1013
      %v1147 = vpack.c.b16 %v1021, %v1014
      %v1148 = vpack.c.b16 %v1022, %v1015
      %v1149 = vpack.c.b16 %v1023, %v1016
      %v1150 = vpack.c.b16 %v1024, %v1017
      %v1151 = vpack.c.b16 %v1025, %v1018
      %v1152 = vpack.c.b16 %v1033, %v1026
      %v1153 = vpack.c.b16 %v1034, %v1027
      %v1154 = vpack.c.b16 %v1035, %v1028
      %v1155 = vpack.c.b16 %v1036, %v1029
      %v1156 = vpack.c.b16 %v1037, %v1030
      %v1157 = vpack.c.b16 %v1038, %v1031
      %v1158 = vpack.c.b16 %v1039, %v1032
      %v1159 = vpack.c.b16 %v1047, %v1040
      %v1160 = vpack.c.b16 %v1048, %v1041
      %v1161 = vpack.c.b16 %v1049, %v1042
      %v1162 = vpack.c.b16 %v1050, %v1043
      %v1163 = vpack.c.b16 %v1051, %v1044
      %v1164 = vpack.c.b16 %v1052, %v1045
      %v1165 = vpack.c.b16 %v1053, %v1046
      %v1502 = vunpack.c.l.b16 %v468
      %v1503 = vunpack.c.h.b16 %v468
      %v1504 = vunpack.c.l.b16 %v469
      %v1505 = vunpack.c.h.b16 %v469
      %v1506 = vunpack.c.l.b16 %v470
      %v1507 = vunpack.c.h.b16 %v470
      %v1508 = vunpack.c.l.b16 %v471
      %v1509 = vunpack.c.h.b16 %v471
      %v1510 = vunpack.c.l.b16 %v472
      %v1511 = vunpack.c.h.b16 %v472
      %v1512 = vunpack.c.l.b16 %v473
      %v1513 = vunpack.c.h.b16 %v473
      %v1514 = vunpack.c.l.b16 %v474
      %v1515 = vunpack.c.h.b16 %v474
      %v1516 = vunpack.c.l.b16 %v475
      %v1517 = vunpack.c.h.b16 %v475
      %v1518 = vunpack.c.l.b16 %v476
      %v1519 = vunpack.c.h.b16 %v476
      %v1520 = vunpack.c.l.b16 %v477
      %v1521 = vunpack.c.h.b16 %v477
      %v1522 = vunpack.c.l.b16 %v478
      %v1523 = vunpack.c.h.b16 %v478
      %v1524 = vunpack.c.l.b16 %v479
      %v1525 = vunpack.c.h.b16 %v479
      %v1526 = vunpack.c.l.b16 %v480
      %v1527 = vunpack.c.h.b16 %v480
      %v1528 = vunpack.c.l.b16 %v481
      %v1529 = vunpack.c.h.b16 %v481
      %v1530 = vunpack.c.l.b16 %v482
      %v1531 = vunpack.c.h.b16 %v482
      %v1532 = vunpack.c.l.b16 %v483
      %v1533 = vunpack.c.h.b16 %v483
      %v1534 = vunpack.c.l.b16 %v484
      %v1535 = vunpack.c.h.b16 %v484
      %v1536 = vunpack.c.l.b16 %v485
      %v1537 = vunpack.c.h.b16 %v485
      %v1538 = vunpack.c.l.b16 %v486
      %v1539 = vunpack.c.h.b16 %v486
      %v1540 = vunpack.c.l.b16 %v487
      %v1541 = vunpack.c.h.b16 %v487
      %v1542 = vunpack.c.l.b16 %v488
      %v1543 = vunpack.c.h.b16 %v488
      %v1544 = vunpack.c.l.b16 %v489
      %v1545 = vunpack.c.h.b16 %v489
      %v1546 = vunpack.c.l.b16 %v490
      %v1547 = vunpack.c.h.b16 %v490
      %v1548 = vunpack.c.l.b16 %v491
      %v1549 = vunpack.c.h.b16 %v491
      %v1550 = vunpack.c.l.b16 %v492
      %v1551 = vunpack.c.h.b16 %v492
      %v1552 = vunpack.c.l.b16 %v493
      %v1553 = vunpack.c.h.b16 %v493
      %v1554 = vunpack.c.l.b16 %v494
      %v1555 = vunpack.c.h.b16 %v494
      %v1556 = vunpack.c.l.b16 %v495
      %v1557 = vunpack.c.h.b16 %v495
      %v1558 = vunpack.c.l.b16 %v496
      %v1559 = vunpack.c.h.b16 %v496
      %v1560 = vunpack.c.l.b16 %v497
      %v1561 = vunpack.c.h.b16 %v497
      %v1562 = vunpack.c.l.b16 %v498
      %v1563 = vunpack.c.h.b16 %v498
      %v1564 = vunpack.c.l.b16 %v499
      %v1565 = vunpack.c.h.b16 %v499
      %v1566 = vunpack.c.l.b16 %v500
      %v1567 = vunpack.c.h.b16 %v500
      %v1568 = vunpack.c.l.b16 %v501
      %v1569 = vunpack.c.h.b16 %v501
      %v1570 = vunpack.c.l.b16 %v502
      %v1571 = vunpack.c.h.b16 %v502
      %v1572 = vunpack.c.l.b16 %v503
      %v1573 = vunpack.c.h.b16 %v503
      %v1574 = vunpack.c.l.b16 %v504
      %v1575 = vunpack.c.h.b16 %v504
      %v1576 = vunpack.c.l.b16 %v505
      %v1577 = vunpack.c.h.b16 %v505
      %v1578 = vunpack.c.l.b16 %v506
      %v1579 = vunpack.c.h.b16 %v506
      %v1580 = vunpack.c.l.b16 %v507
      %v1581 = vunpack.c.h.b16 %v507
      %v1582 = vunpack.c.l.b16 %v508
      %v1583 = vunpack.c.h.b16 %v508
      %v1584 = vunpack.c.l.b16 %v509
      %v1585 = vunpack.c.h.b16 %v509
      %v1586 = vunpack.c.l.b16 %v510
      %v1587 = vunpack.c.h.b16 %v510
      %v1588 = vunpack.c.l.b16 %v511
      %v1589 = vunpack.c.h.b16 %v511
      %v1590 = vunpack.c.l.b16 %v512
      %v1591 = vunpack.c.h.b16 %v512
      %v1592 = vunpack.c.l.b16 %v513
      %v1593 = vunpack.c.h.b16 %v513
      %v1594 = vunpack.c.l.b16 %v514
      %v1595 = vunpack.c.h.b16 %v514
      %v1596 = vunpack.c.l.b16 %v515
      %v1597 = vunpack.c.h.b16 %v515
      %v1598 = vunpack.c.l.b16 %v516
      %v1599 = vunpack.c.h.b16 %v516
      %v1600 = vunpack.c.l.b16 %v517
      %v1601 = vunpack.c.h.b16 %v517
      %v1602 = vunpack.c.l.b16 %v518
      %v1603 = vunpack.c.h.b16 %v518
      %v1604 = vunpack.c.l.b16 %v519
      %v1605 = vunpack.c.h.b16 %v519
      %v1606 = vunpack.c.l.b16 %v520
      %v1607 = vunpack.c.h.b16 %v520
      %v1608 = vunpack.c.l.b16 %v521
      %v1609 = vunpack.c.h.b16 %v521
      %v1610 = vunpack.c.l.b16 %v522
      %v1611 = vunpack.c.h.b16 %v522
      %v1612 = vunpack.c.l.b16 %v523
      %v1613 = vunpack.c.h.b16 %v523
      %v1614 = vunpack.c.l.b16 %v524
      %v1615 = vunpack.c.h.b16 %v524
      %v1616 = vunpack.c.l.b16 %v525
      %v1617 = vunpack.c.h.b16 %v525
      %v1618 = vunpack.c.l.b16 %v526
      %v1619 = vunpack.c.h.b16 %v526
      %v1620 = vunpack.c.l.b16 %v527
      %v1621 = vunpack.c.h.b16 %v527
      %v1622 = vunpack.c.l.b16 %v528
      %v1623 = vunpack.c.h.b16 %v528
      %v1624 = vunpack.c.l.b16 %v529
      %v1625 = vunpack.c.h.b16 %v529
      %v1626 = vunpack.c.l.b16 %v530
      %v1627 = vunpack.c.h.b16 %v530
      %v1628 = vunpack.c.l.b16 %v531
      %v1629 = vunpack.c.h.b16 %v531
      %v1630 = vunpack.c.l.b16 %v532
      %v1631 = vunpack.c.h.b16 %v532
      %v1632 = vunpack.c.l.b16 %v533
      %v1633 = vunpack.c.h.b16 %v533
      %v1634 = vunpack.c.l.b16 %v534
      %v1635 = vunpack.c.h.b16 %v534
      %v1636 = vunpack.c.l.b16 %v535
      %v1637 = vunpack.c.h.b16 %v535
      %v1638 = vunpack.c.l.b16 %v536
      %v1639 = vunpack.c.h.b16 %v536
      %v1640 = vunpack.c.l.b16 %v537
      %v1641 = vunpack.c.h.b16 %v537
      %v1642 = vunpack.c.l.b16 %v538
      %v1643 = vunpack.c.h.b16 %v538
      %v1644 = vunpack.c.l.b16 %v539
      %v1645 = vunpack.c.h.b16 %v539
      %v1646 = vunpack.c.l.b16 %v540
      %v1647 = vunpack.c.h.b16 %v540
      %v1648 = vunpack.c.l.b16 %v541
      %v1649 = vunpack.c.h.b16 %v541
      %v1650 = vunpack.c.l.b16 %v542
      %v1651 = vunpack.c.h.b16 %v542
      %v1652 = vunpack.c.l.b16 %v543
      %v1653 = vunpack.c.h.b16 %v543
      %v1654 = vunpack.c.l.b16 %v544
      %v1655 = vunpack.c.h.b16 %v544
      %v1656 = vunpack.c.l.b16 %v545
      %v1657 = vunpack.c.h.b16 %v545
      %v1658 = vunpack.c.l.b16 %v546
      %v1659 = vunpack.c.h.b16 %v546
      %v1660 = vunpack.c.l.b16 %v547
      %v1661 = vunpack.c.h.b16 %v547
      %v1662 = vunpack.c.l.b16 %v548
      %v1663 = vunpack.c.h.b16 %v548
      %v1664 = vunpack.c.l.b16 %v549
      %v1665 = vunpack.c.h.b16 %v549
      %v1666 = vunpack.c.l.b16 %v550
      %v1667 = vunpack.c.h.b16 %v550
      %v1668 = vunpack.c.l.b16 %v551
      %v1669 = vunpack.c.h.b16 %v551
      %v1670 = vunpack.c.l.b16 %v552
      %v1671 = vunpack.c.h.b16 %v552
      %v1672 = vunpack.c.l.b16 %v553
      %v1673 = vunpack.c.h.b16 %v553
      %v1674 = vunpack.c.l.b16 %v554
      %v1675 = vunpack.c.h.b16 %v554
      %v1676 = vunpack.c.l.b16 %v555
      %v1677 = vunpack.c.h.b16 %v555
      %v1678 = vunpack.c.l.b16 %v556
      %v1679 = vunpack.c.h.b16 %v556
      %v1680 = vunpack.c.l.b16 %v557
      %v1681 = vunpack.c.h.b16 %v557
      %v1682 = vunpack.c.l.b16 %v558
      %v1683 = vunpack.c.h.b16 %v558
      %v1684 = vunpack.c.l.b16 %v559
      %v1685 = vunpack.c.h.b16 %v559
      %v1686 = vunpack.c.l.b16 %v560
      %v1687 = vunpack.c.h.b16 %v560
      %v1688 = vunpack.c.l.b16 %v561
      %v1689 = vunpack.c.h.b16 %v561
      %v1690 = vunpack.c.l.b16 %v562
      %v1691 = vunpack.c.h.b16 %v562
      %v1692 = vunpack.c.l.b16 %v563
      %v1693 = vunpack.c.h.b16 %v563
      %v1694 = vunpack.c.l.b16 %v564
      %v1695 = vunpack.c.h.b16 %v564
      %v1696 = vunpack.c.l.b16 %v565
      %v1697 = vunpack.c.h.b16 %v565
      %v1698 = vunpack.c.l.b16 %v566
      %v1699 = vunpack.c.h.b16 %v566
      %v1700 = vunpack.c.l.b16 %v567
      %v1701 = vunpack.c.h.b16 %v567
      %v1702 = vunpack.c.l.b16 %v568
      %v1703 = vunpack.c.h.b16 %v568
      %v1704 = vunpack.c.l.b16 %v569
      %v1705 = vunpack.c.h.b16 %v569
      %v1706 = vunpack.c.l.b16 %v570
      %v1707 = vunpack.c.h.b16 %v570
      %v1708 = vunpack.c.l.b16 %v571
      %v1709 = vunpack.c.h.b16 %v571
      %v1710 = vunpack.c.l.b16 %v572
      %v1711 = vunpack.c.h.b16 %v572
      %v1712 = vunpack.c.l.b16 %v573
      %v1713 = vunpack.c.h.b16 %v573
      %v1714 = vunpack.c.l.b16 %v574
      %v1715 = vunpack.c.h.b16 %v574
      %v1716 = vunpack.c.l.b16 %v575
      %v1717 = vunpack.c.h.b16 %v575
      %v1718 = vunpack.c.l.b16 %v576
      %v1719 = vunpack.c.h.b16 %v576
      %v1720 = vunpack.c.l.b16 %v577
      %v1721 = vunpack.c.h.b16 %v577
      %v1722 = vunpack.c.l.b16 %v578
      %v1723 = vunpack.c.h.b16 %v578
      %v1724 = vunpack.c.l.b16 %v579
      %v1725 = vunpack.c.h.b16 %v579
      %v1726 = vunpack.c.l.b16 %v580
      %v1727 = vunpack.c.h.b16 %v580
      %v1728 = vunpack.c.l.b16 %v581
      %v1729 = vunpack.c.h.b16 %v581
      %v1730 = vunpack.c.l.b16 %v582
      %v1731 = vunpack.c.h.b16 %v582
      %v1732 = vunpack.c.l.b16 %v583
      %v1733 = vunpack.c.h.b16 %v583
      %v1734 = vunpack.c.l.b16 %v584
      %v1735 = vunpack.c.h.b16 %v584
      %v1736 = vunpack.c.l.b16 %v585
      %v1737 = vunpack.c.h.b16 %v585
      %v1738 = vunpack.c.l.b16 %v586
      %v1739 = vunpack.c.h.b16 %v586
      %v1740 = vunpack.c.l.b16 %v587
      %v1741 = vunpack.c.h.b16 %v587
      %v1742 = vunpack.c.l.b16 %v588
      %v1743 = vunpack.c.h.b16 %v588
      %v1744 = vunpack.c.l.b16 %v589
      %v1745 = vunpack.c.h.b16 %v589
      %v1746 = vunpack.c.l.b16 %v590
      %v1747 = vunpack.c.h.b16 %v590
      %v1748 = vunpack.c.l.b16 %v591
      %v1749 = vunpack.c.h.b16 %v591
      %v1750 = vunpack.c.l.b16 %v592
      %v1751 = vunpack.c.h.b16 %v592
      %v1752 = vunpack.c.l.b16 %v593
      %v1753 = vunpack.c.h.b16 %v593
      %v1754 = vunpack.c.l.b16 %v594
      %v1755 = vunpack.c.h.b16 %v594
      %v1756 = vunpack.c.l.b16 %v595
      %v1757 = vunpack.c.h.b16 %v595
      %v1758 = vunpack.c.l.b16 %v596
      %v1759 = vunpack.c.h.b16 %v596
      %v1760 = vunpack.c.l.b16 %v597
      %v1761 = vunpack.c.h.b16 %v597
      %v1762 = vunpack.c.l.b16 %v598
      %v1763 = vunpack.c.h.b16 %v598
      %v1764 = vunpack.c.l.b16 %v599
      %v1765 = vunpack.c.h.b16 %v599
      %v1766 = vunpack.c.l.b16 %v600
      %v1767 = vunpack.c.h.b16 %v600
      %v1768 = vunpack.c.l.b16 %v601
      %v1769 = vunpack.c.h.b16 %v601
      %v1770 = vunpack.c.l.b16 %v602
      %v1771 = vunpack.c.h.b16 %v602
      %v1772 = vunpack.c.l.b16 %v603
      %v1773 = vunpack.c.h.b16 %v603
      %v1774 = vunpack.c.l.b16 %v604
      %v1775 = vunpack.c.h.b16 %v604
      %v1776 = vunpack.c.l.b16 %v605
      %v1777 = vunpack.c.h.b16 %v605
      %v1778 = vunpack.c.l.b16 %v606
      %v1779 = vunpack.c.h.b16 %v606
      %v1780 = vunpack.c.l.b16 %v607
      %v1781 = vunpack.c.h.b16 %v607
      %v1782 = vunpack.c.l.b16 %v608
      %v1783 = vunpack.c.h.b16 %v608
      %v1784 = vunpack.c.l.b16 %v609
      %v1785 = vunpack.c.h.b16 %v609
      %v1786 = vunpack.c.l.b16 %v610
      %v1787 = vunpack.c.h.b16 %v610
      %v1788 = vunpack.c.l.b16 %v611
      %v1789 = vunpack.c.h.b16 %v611
      %v1790 = vunpack.c.l.b16 %v612
      %v1791 = vunpack.c.h.b16 %v612
      %v1792 = vunpack.c.l.b16 %v613
      %v1793 = vunpack.c.h.b16 %v613
      %v1794 = vunpack.c.l.b16 %v614
      %v1795 = vunpack.c.h.b16 %v614
      %v1796 = vunpack.c.l.b16 %v615
      %v1797 = vunpack.c.h.b16 %v615
      %v1798 = vunpack.c.l.b16 %v616
      %v1799 = vunpack.c.h.b16 %v616
      %v1800 = vunpack.c.l.b16 %v617
      %v1801 = vunpack.c.h.b16 %v617
      %v1802 = vunpack.c.l.b16 %v618
      %v1803 = vunpack.c.h.b16 %v618
      %v1804 = vunpack.c.l.b16 %v619
      %v1805 = vunpack.c.h.b16 %v619
      %v1806 = vunpack.c.l.b16 %v620
      %v1807 = vunpack.c.h.b16 %v620
      %v1808 = vunpack.c.l.b16 %v621
      %v1809 = vunpack.c.h.b16 %v621
      %v1810 = vunpack.c.l.b16 %v622
      %v1811 = vunpack.c.h.b16 %v622
      %v1812 = vunpack.c.l.b16 %v623
      %v1813 = vunpack.c.h.b16 %v623
      %v1814 = vunpack.c.l.b16 %v624
      %v1815 = vunpack.c.h.b16 %v624
      %v1816 = vunpack.c.l.b16 %v625
      %v1817 = vunpack.c.h.b16 %v625
      %v1818 = vunpack.c.l.b16 %v626
      %v1819 = vunpack.c.h.b16 %v626
      %v1820 = vunpack.c.l.b16 %v627
      %v1821 = vunpack.c.h.b16 %v627
      %v1822 = vunpack.c.l.b16 %v628
      %v1823 = vunpack.c.h.b16 %v628
      %v1824 = vunpack.c.l.b16 %v629
      %v1825 = vunpack.c.h.b16 %v629
      %v1826 = vunpack.c.l.b16 %v630
      %v1827 = vunpack.c.h.b16 %v630
      %v1828 = vunpack.c.l.b16 %v631
      %v1829 = vunpack.c.h.b16 %v631
      %v1830 = vunpack.c.l.b16 %v632
      %v1831 = vunpack.c.h.b16 %v632
      %v1832 = vunpack.c.l.b16 %v633
      %v1833 = vunpack.c.h.b16 %v633
      %v1834 = vunpack.c.l.b16 %v634
      %v1835 = vunpack.c.h.b16 %v634
      %v1836 = vunpack.c.l.b16 %v635
      %v1837 = vunpack.c.h.b16 %v635
      %v1838 = vunpack.c.l.b16 %v636
      %v1839 = vunpack.c.h.b16 %v636
      %v1840 = vunpack.c.l.b16 %v637
      %v1841 = vunpack.c.h.b16 %v637
      %v1842 = vunpack.c.l.b16 %v638
      %v1843 = vunpack.c.h.b16 %v638
      %v1844 = vunpack.c.l.b16 %v639
      %v1845 = vunpack.c.h.b16 %v639
      %v1846 = vunpack.c.l.b16 %v640
      %v1847 = vunpack.c.h.b16 %v640
      %v1848 = vunpack.c.l.b16 %v641
      %v1849 = vunpack.c.h.b16 %v641
      %v1850 = vunpack.c.l.b16 %v642
      %v1851 = vunpack.c.h.b16 %v642
      %v1852 = vunpack.c.l.b16 %v643
      %v1853 = vunpack.c.h.b16 %v643
      %v1854 = vunpack.c.l.b16 %v644
      %v1855 = vunpack.c.h.b16 %v644
      %v1856 = vunpack.c.l.b16 %v645
      %v1857 = vunpack.c.h.b16 %v645
      %v1858 = vunpack.c.l.b16 %v646
      %v1859 = vunpack.c.h.b16 %v646
      %v1860 = vunpack.c.l.b16 %v647
      %v1861 = vunpack.c.h.b16 %v647
      %v1862 = vunpack.c.l.b16 %v648
      %v1863 = vunpack.c.h.b16 %v648
      %v1864 = vunpack.c.l.b16 %v649
      %v1865 = vunpack.c.h.b16 %v649
      %v1866 = vunpack.c.l.b16 %v650
      %v1867 = vunpack.c.h.b16 %v650
      %v1868 = vunpack.c.l.b16 %v651
      %v1869 = vunpack.c.h.b16 %v651
      %v1870 = vunpack.c.l.b16 %v652
      %v1871 = vunpack.c.h.b16 %v652
      %v1872 = vunpack.c.l.b16 %v653
      %v1873 = vunpack.c.h.b16 %v653
      %v1874 = vunpack.c.l.b16 %v654
      %v1875 = vunpack.c.h.b16 %v654
      %v1876 = vunpack.c.l.b16 %v655
      %v1877 = vunpack.c.h.b16 %v655
      %v1878 = vunpack.c.l.b16 %v656
      %v1879 = vunpack.c.h.b16 %v656
      %v1880 = vunpack.c.l.b16 %v657
      %v1881 = vunpack.c.h.b16 %v657
      %v1882 = vunpack.c.l.b16 %v658
      %v1883 = vunpack.c.h.b16 %v658
      %v1884 = vunpack.c.l.b16 %v659
      %v1885 = vunpack.c.h.b16 %v659
      %v1886 = vunpack.c.l.b16 %v660
      %v1887 = vunpack.c.h.b16 %v660
      %v1888 = vunpack.c.l.b16 %v661
      %v1889 = vunpack.c.h.b16 %v661
      %v1890 = vunpack.c.l.b16 %v662
      %v1891 = vunpack.c.h.b16 %v662
      %v1892 = vunpack.c.l.b16 %v663
      %v1893 = vunpack.c.h.b16 %v663
      %v1894 = vunpack.c.l.b16 %v664
      %v1895 = vunpack.c.h.b16 %v664
      %v1896 = vunpack.c.l.b16 %v665
      %v1897 = vunpack.c.h.b16 %v665
      %v1898 = vunpack.c.l.b16 %v666
      %v1899 = vunpack.c.h.b16 %v666
      %v1900 = vunpack.c.l.b16 %v667
      %v1901 = vunpack.c.h.b16 %v667
      %v1902 = vunpack.c.l.b16 %v668
      %v1903 = vunpack.c.h.b16 %v668
      %v1904 = vunpack.c.l.b16 %v669
      %v1905 = vunpack.c.h.b16 %v669
      %v1906 = vunpack.c.l.b16 %v670
      %v1907 = vunpack.c.h.b16 %v670
      %v1908 = vunpack.c.l.b16 %v671
      %v1909 = vunpack.c.h.b16 %v671
      %v1910 = vunpack.c.l.b16 %v672
      %v1911 = vunpack.c.h.b16 %v672
      %v1912 = vunpack.c.l.b16 %v673
      %v1913 = vunpack.c.h.b16 %v673
      %v1914 = vunpack.c.l.b16 %v674
      %v1915 = vunpack.c.h.b16 %v674
      %v1916 = vunpack.c.l.b16 %v675
      %v1917 = vunpack.c.h.b16 %v675
      %v1918 = vunpack.c.l.b16 %v676
      %v1919 = vunpack.c.h.b16 %v676
      %v1920 = vunpack.c.l.b16 %v677
      %v1921 = vunpack.c.h.b16 %v677
      %v1922 = vunpack.c.l.b16 %v678
      %v1923 = vunpack.c.h.b16 %v678
      %v1924 = vunpack.c.l.b16 %v679
      %v1925 = vunpack.c.h.b16 %v679
      %v1926 = vunpack.c.l.b16 %v680
      %v1927 = vunpack.c.h.b16 %v680
      %v1928 = vunpack.c.l.b16 %v681
      %v1929 = vunpack.c.h.b16 %v681
      %v1930 = vunpack.c.l.b16 %v682
      %v1931 = vunpack.c.h.b16 %v682
      %v1932 = vunpack.c.l.b16 %v683
      %v1933 = vunpack.c.h.b16 %v683
      %v1934 = vunpack.c.l.b16 %v684
      %v1935 = vunpack.c.h.b16 %v684
      %v1936 = vunpack.c.l.b16 %v685
      %v1937 = vunpack.c.h.b16 %v685
      %v1938 = vunpack.c.l.b16 %v686
      %v1939 = vunpack.c.h.b16 %v686
      %v1940 = vunpack.c.l.b16 %v687
      %v1941 = vunpack.c.h.b16 %v687
      %v1942 = vunpack.c.l.b16 %v688
      %v1943 = vunpack.c.h.b16 %v688
      %v1944 = vunpack.c.l.b16 %v689
      %v1945 = vunpack.c.h.b16 %v689
      %v1946 = vunpack.c.l.b16 %v690
      %v1947 = vunpack.c.h.b16 %v690
      %v1948 = vunpack.c.l.b16 %v691
      %v1949 = vunpack.c.h.b16 %v691
      %v1950 = vpack.c.b16 %v1506, %v1502
      %v1951 = vpack.c.b16 %v1507, %v1503
      %v1952 = vpack.c.b16 %v1508, %v1504
      %v1953 = vpack.c.b16 %v1509, %v1505
      %v1954 = vpack.c.b16 %v1514, %v1510
      %v1955 = vpack.c.b16 %v1515, %v1511
      %v1956 = vpack.c.b16 %v1516, %v1512
      %v1957 = vpack.c.b16 %v1517, %v1513
      %v1958 = vpack.c.b16 %v1522, %v1518
      %v1959 = vpack.c.b16 %v1523, %v1519
      %v1960 = vpack.c.b16 %v1524, %v1520
      %v1961 = vpack.c.b16 %v1525, %v1521
      %v1962 = vpack.c.b16 %v1530, %v1526
      %v1963 = vpack.c.b16 %v1531, %v1527
      %v1964 = vpack.c.b16 %v1532, %v1528
      %v1965 = vpack.c.b16 %v1533, %v1529
      %v1966 = vpack.c.b16 %v1538, %v1534
      %v1967 = vpack.c.b16 %v1539, %v1535
      %v1968 = vpack.c.b16 %v1540, %v1536
      %v1969 = vpack.c.b16 %v1541, %v1537
      %v1970 = vpack.c.b16 %v1546, %v1542
      %v1971 = vpack.c.b16 %v1547, %v1543
      %v1972 = vpack.c.b16 %v1548, %v1544
      %v1973 = vpack.c.b16 %v1549, %v1545
      %v1974 = vpack.c.b16 %v1554, %v1550
      %v1975 = vpack.c.b16 %v1555, %v1551
      %v1976 = vpack.c.b16 %v1556, %v1552
      %v1977 = vpack.c.b16 %v1557, %v1553
      %v1978 = vpack.c.b16 %v1562, %v1558
      %v1979 = vpack.c.b16 %v1563, %v1559
      %v1980 = vpack.c.b16 %v1564, %v1560
      %v1981 = vpack.c.b16 %v1565, %v1561
      %v1982 = vpack.c.b16 %v1570, %v1566
      %v1983 = vpack.c.b16 %v1571, %v1567
      %v1984 = vpack.c.b16 %v1572, %v1568
      %v1985 = vpack.c.b16 %v1573, %v1569
      %v1986 = vpack.c.b16 %v1578, %v1574
      %v1987 = vpack.c.b16 %v1579, %v1575
      %v1988 = vpack.c.b16 %v1580, %v1576
      %v1989 = vpack.c.b16 %v1581, %v1577
      %v1990 = vpack.c.b16 %v1586, %v1582
      %v1991 = vpack.c.b16 %v1587, %v1583
      %v1992 = vpack.c.b16 %v1588, %v1584
      %v1993 = vpack.c.b16 %v1589, %v1585
      %v1994 = vpack.c.b16 %v1594, %v1590
      %v1995 = vpack.c.b16 %v1595, %v1591
      %v1996 = vpack.c.b16 %v1596, %v1592
      %v1997 = vpack.c.b16 %v1597, %v1593
      %v1998 = vpack.c.b16 %v1602, %v1598
      %v1999 = vpack.c.b16 %v1603, %v1599
      %v2000 = vpack.c.b16 %v1604, %v1600
      %v2001 = vpack.c.b16 %v1605, %v1601
      %v2002 = vpack.c.b16 %v1610, %v1606
      %v2003 = vpack.c.b16 %v1611, %v1607
      %v2004 = vpack.c.b16 %v1612, %v1608
      %v2005 = vpack.c.b16 %v1613, %v1609
      %v2006 = vpack.c.b16 %v1618, %v1614
      %v2007 = vpack.c.b16 %v1619, %v1615
      %v2008 = vpack.c.b16 %v1620, %v1616
      %v2009 = vpack.c.b16 %v1621, %v1617
      %v2010 = vpack.c.b16 %v1626, %v1622
      %v2011 = vpack.c.b16 %v1627, %v1623
      %v2012 = vpack.c.b16 %v1628, %v1624
      %v2013 = vpack.c.b16 %v1629, %v1625
      %v2014 = vpack.c.b16 %v1634, %v1630
      %v2015 = vpack.c.b16 %v1635, %v1631
      %v2016 = vpack.c.b16 %v1636, %v1632
      %v2017 = vpack.c.b16 %v1637, %v1633
      %v2018 = vpack.c.b16 %v1642, %v1638
      %v2019 = vpack.c.b16 %v1643, %v1639
      %v2020 = vpack.c.b16 %v1644, %v1640
      %v2021 = vpack.c.b16 %v1645, %v1641
      %v2022 = vpack.c.b16 %v1650, %v1646
      %v2023 = vpack.c.b16 %v1651, %v1647
      %v2024 = vpack.c.b16 %v1652, %v1648
      %v2025 = vpack.c.b16 %v1653, %v1649
      %v2026 = vpack.c.b16 %v1658, %v1654
      %v2027 = vpack.c.b16 %v1659, %v1655
      %v2028 = vpack.c.b16 %v1660, %v1656
      %v2029 = vpack.c.b16 %v1661, %v1657
      %v2030 = vpack.c.b16 %v1666, %v1662
      %v2031 = vpack.c.b16 %v1667, %v1663
      %v2032 = vpack.c.b16 %v1668, %v1664
      %v2033 = vpack.c.b16 %v1669, %v1665
      %v2034 = vpack.c.b16 %v1674, %v1670
      %v2035 = vpack.c.b16 %v1675, %v1671
      %v2036 = vpack.c.b16 %v1676, %v1672
      %v2037 = vpack.c.b16 %v1677, %v1673
      %v2038 = vpack.c.b16 %v1682, %v1678
      %v2039 = vpack.c.b16 %v1683, %v1679
      %v2040 = vpack.c.b16 %v1684, %v1680
      %v2041 = vpack.c.b16 %v1685, %v1681
      %v2042 = vpack.c.b16 %v1690, %v1686
      %v2043 = vpack.c.b16 %v1691, %v1687
      %v2044 = vpack.c.b16 %v1692, %v1688
      %v2045 = vpack.c.b16 %v1693, %v1689
      %v2046 = vpack.c.b16 %v1698, %v1694
      %v2047 = vpack.c.b16 %v1699, %v1695
      %v2048 = vpack.c.b16 %v1700, %v1696
      %v2049 = vpack.c.b16 %v1701, %v1697
      %v2050 = vpack.c.b16 %v1706, %v1702
      %v2051 = vpack.c.b16 %v1707, %v1703
      %v2052 = vpack.c.b16 %v1708, %v1704
      %v2053 = vpack.c.b16 %v1709, %v1705
      %v2054 = vpack.c.b16 %v1714, %v1710
      %v2055 = vpack.c.b16 %v1715, %v1711
      %v2056 = vpack.c.b16 %v1716, %v1712
      %v2057 = vpack.c.b16 %v1717, %v1713
      %v2058 = vpack.c.b16 %v1722, %v1718
      %v2059 = vpack.c.b16 %v1723, %v1719
      %v2060 = vpack.c.b16 %v1724, %v1720
      %v2061 = vpack.c.b16 %v1725, %v1721
      %v2062 = vpack.c.b16 %v1730, %v1726
      %v2063 = vpack.c.b16 %v1731, %v1727
      %v2064 = vpack.c.b16 %v1732, %v1728
      %v2065 = vpack.c.b16 %v1733, %v1729
      %v2066 = vpack.c.b16 %v1738, %v1734
      %v2067 = vpack.c.b16 %v1739, %v1735
      %v2068 = vpack.c.b16 %v1740, %v1736
      %v2069 = vpack.c.b16 %v1741, %v1737
      %v2070 = vpack.c.b16 %v1746, %v1742
      %v2071 = vpack.c.b16 %v1747, %v1743
      %v2072 = vpack.c.b16 %v1748, %v1744
      %v2073 = vpack.c.b16 %v1749, %v1745
      %v2074 = vpack.c.b16 %v1754, %v1750
      %v2075 = vpack.c.b16 %v1755, %v1751
      %v2076 = vpack.c.b16 %v1756, %v1752
      %v2077 = vpack.c.b16 %v1757, %v1753
      %v2078 = vpack.c.b16 %v1762, %v1758
      %v2079 = vpack.c.b16 %v1763, %v1759
      %v2080 = vpack.c.b16 %v1764, %v1760
      %v2081 = vpack.c.b16 %v1765, %v1761
      %v2082 = vpack.c.b16 %v1770, %v1766
      %v2083 = vpack.c.b16 %v1771, %v1767
      %v2084 = vpack.c.b16 %v1772, %v1768
      %v2085 = vpack.c.b16 %v1773, %v1769
      %v2086 = vpack.c.b16 %v1778, %v1774
      %v2087 = vpack.c.b16 %v1779, %v1775
      %v2088 = vpack.c.b16 %v1780, %v1776
      %v2089 = vpack.c.b16 %v1781, %v1777
      %v2090 = vpack.c.b16 %v1786, %v1782
      %v2091 = vpack.c.b16 %v1787, %v1783
      %v2092 = vpack.c.b16 %v1788, %v1784
      %v2093 = vpack.c.b16 %v1789, %v1785
      %v2094 = vpack.c.b16 %v1794, %v1790
      %v2095 = vpack.c.b16 %v1795, %v1791
      %v2096 = vpack.c.b16 %v1796, %v1792
      %v2097 = vpack.c.b16 %v1797, %v1793
      %v2098 = vpack.c.b16 %v1802, %v1798
      %v2099 = vpack.c.b16 %v1803, %v1799
      %v2100 = vpack.c.b16 %v1804, %v1800
      %v2101 = vpack.c.b16 %v1805, %v1801
      %v2102 = vpack.c.b16 %v1810, %v1806
      %v2103 = vpack.c.b16 %v1811, %v1807
      %v2104 = vpack.c.b16 %v1812, %v1808
      %v2105 = vpack.c.b16 %v1813, %v1809
      %v2106 = vpack.c.b16 %v1818, %v1814
      %v2107 = vpack.c.b16 %v1819, %v1815
      %v2108 = vpack.c.b16 %v1820, %v1816
      %v2109 = vpack.c.b16 %v1821, %v1817
      %v2110 = vpack.c.b16 %v1826, %v1822
      %v2111 = vpack.c.b16 %v1827, %v1823
      %v2112 = vpack.c.b16 %v1828, %v1824
      %v2113 = vpack.c.b16 %v1829, %v1825
      %v2114 = vpack.c.b16 %v1834, %v1830
      %v2115 = vpack.c.b16 %v1835, %v1831
      %v2116 = vpack.c.b16 %v1836, %v1832
      %v2117 = vpack.c.b16 %v1837, %v1833
      %v2118 = vpack.c.b16 %v1842, %v1838
      %v2119 = vpack.c.b16 %v1843, %v1839
      %v2120 = vpack.c.b16 %v1844, %v1840
      %v2121 = vpack.c.b16 %v1845, %v1841
      %v2122 = vpack.c.b16 %v1850, %v1846
      %v2123 = vpack.c.b16 %v1851, %v1847
      %v2124 = vpack.c.b16 %v1852, %v1848
      %v2125 = vpack.c.b16 %v1853, %v1849
      %v2126 = vpack.c.b16 %v1858, %v1854
      %v2127 = vpack.c.b16 %v1859, %v1855
      %v2128 = vpack.c.b16 %v1860, %v1856
      %v2129 = vpack.c.b16 %v1861, %v1857
      %v2130 = vpack.c.b16 %v1866, %v1862
      %v2131 = vpack.c.b16 %v1867, %v1863
      %v2132 = vpack.c.b16 %v1868, %v1864
      %v2133 = vpack.c.b16 %v1869, %v1865
      %v2134 = vpack.c.b16 %v1874, %v1870
      %v2135 = vpack.c.b16 %v1875, %v1871
      %v2136 = vpack.c.b16 %v1876, %v1872
      %v2137 = vpack.c.b16 %v1877, %v1873
      %v2138 = vpack.c.b16 %v1882, %v1878
      %v2139 = vpack.c.b16 %v1883, %v1879
      %v2140 = vpack.c.b16 %v1884, %v1880
      %v2141 = vpack.c.b16 %v1885, %v1881
      %v2142 = vpack.c.b16 %v1890, %v1886
      %v2143 = vpack.c.b16 %v1891, %v1887
      %v2144 = vpack.c.b16 %v1892, %v1888
      %v2145 = vpack.c.b16 %v1893, %v1889
      %v2146 = vpack.c.b16 %v1898, %v1894
      %v2147 = vpack.c.b16 %v1899, %v1895
      %v2148 = vpack.c.b16 %v1900, %v1896
      %v2149 = vpack.c.b16 %v1901, %v1897
      %v2150 = vpack.c.b16 %v1906, %v1902
      %v2151 = vpack.c.b16 %v1907, %v1903
      %v2152 = vpack.c.b16 %v1908, %v1904
      %v2153 = vpack.c.b16 %v1909, %v1905
      %v2154 = vpack.c.b16 %v1914, %v1910
      %v2155 = vpack.c.b16 %v1915, %v1911
      %v2156 = vpack.c.b16 %v1916, %v1912
      %v2157 = vpack.c.b16 %v1917, %v1913
      %v2158 = vpack.c.b16 %v1922, %v1918
      %v2159 = vpack.c.b16 %v1923, %v1919
      %v2160 = vpack.c.b16 %v1924, %v1920
      %v2161 = vpack.c.b16 %v1925, %v1921
      %v2162 = vpack.c.b16 %v1930, %v1926
      %v2163 = vpack.c.b16 %v1931, %v1927
      %v2164 = vpack.c.b16 %v1932, %v1928
      %v2165 = vpack.c.b16 %v1933, %v1929
      %v2166 = vpack.c.b16 %v1938, %v1934
      %v2167 = vpack.c.b16 %v1939, %v1935
      %v2168 = vpack.c.b16 %v1940, %v1936
      %v2169 = vpack.c.b16 %v1941, %v1937
      %v2170 = vpack.c.b16 %v1946, %v1942
      %v2171 = vpack.c.b16 %v1947, %v1943
      %v2172 = vpack.c.b16 %v1948, %v1944
      %v2173 = vpack.c.b16 %v1949, %v1945
      %2398 = vmatpush.bf16.msra.mxu0 %v1978
      %2399 = vmatpush.bf16.msra.mxu0 %v1974
      %2400 = vmatpush.bf16.msra.mxu0 %v1970
      %2401 = vmatpush.bf16.msra.mxu0 %v1966
      %2402 = vmatpush.bf16.msra.mxu0 %v1962
      %2403 = vmatpush.bf16.msra.mxu0 %v1958
      %2404 = vmatpush.bf16.msra.mxu0 %v1954
      %2405 = vmatpush.bf16.msra.mxu0 %v1950
      %2406 = vmatmul.bf16.gmra.mxu0 %v1054
      %v2407 = vpop.f32.mrf.mxu0
      %v2408 = vadd.f32 %v694, %v2407
      %v2409 = vpop.f32.mrf.mxu0
      %v2410 = vadd.f32 %v694, %v2409
      %2411 = vmatmul.bf16.gmra.mxu0 %v1061
      %v2412 = vpop.f32.mrf.mxu0
      %v2413 = vadd.f32 %v694, %v2412
      %v2414 = vpop.f32.mrf.mxu0
      %v2415 = vadd.f32 %v694, %v2414
      %2416 = vmatmul.bf16.gmra.mxu0 %v1068
      %v2417 = vpop.f32.mrf.mxu0
      %v2418 = vadd.f32 %v694, %v2417
      %v2419 = vpop.f32.mrf.mxu0
      %v2420 = vadd.f32 %v694, %v2419
      %2421 = vmatmul.bf16.gmra.mxu0 %v1075
      %v2422 = vpop.f32.mrf.mxu0
      %v2423 = vadd.f32 %v694, %v2422
      %v2424 = vpop.f32.mrf.mxu0
      %v2425 = vadd.f32 %v694, %v2424
      %2426 = vmatmul.bf16.gmra.mxu0 %v1082
      %v2427 = vpop.f32.mrf.mxu0
      %v2428 = vadd.f32 %v694, %v2427
      %v2429 = vpop.f32.mrf.mxu0
      %v2430 = vadd.f32 %v694, %v2429
      %2431 = vmatmul.bf16.gmra.mxu0 %v1089
      %v2432 = vpop.f32.mrf.mxu0
      %v2433 = vadd.f32 %v694, %v2432
      %v2434 = vpop.f32.mrf.mxu0
      %v2435 = vadd.f32 %v694, %v2434
      %2436 = vmatmul.bf16.gmra.mxu0 %v1096
      %v2437 = vpop.f32.mrf.mxu0
      %v2438 = vadd.f32 %v694, %v2437
      %v2439 = vpop.f32.mrf.mxu0
      %v2440 = vadd.f32 %v694, %v2439
      %2441 = vmatmul.bf16.gmra.mxu0 %v1103
      %v2442 = vpop.f32.mrf.mxu0
      %v2443 = vadd.f32 %v694, %v2442
      %v2444 = vpop.f32.mrf.mxu0
      %v2445 = vadd.f32 %v694, %v2444
      %2446 = vmatmul.bf16.gmra.mxu0 %v1110
      %v2447 = vpop.f32.mrf.mxu0
      %v2448 = vadd.f32 %v694, %v2447
      %v2449 = vpop.f32.mrf.mxu0
      %v2450 = vadd.f32 %v694, %v2449
      %2451 = vmatmul.bf16.gmra.mxu0 %v1117
      %v2452 = vpop.f32.mrf.mxu0
      %v2453 = vadd.f32 %v694, %v2452
      %v2454 = vpop.f32.mrf.mxu0
      %v2455 = vadd.f32 %v694, %v2454
      %2456 = vmatmul.bf16.gmra.mxu0 %v1124
      %v2457 = vpop.f32.mrf.mxu0
      %v2458 = vadd.f32 %v694, %v2457
      %v2459 = vpop.f32.mrf.mxu0
      %v2460 = vadd.f32 %v694, %v2459
      %2461 = vmatmul.bf16.gmra.mxu0 %v1131
      %v2462 = vpop.f32.mrf.mxu0
      %v2463 = vadd.f32 %v694, %v2462
      %v2464 = vpop.f32.mrf.mxu0
      %v2465 = vadd.f32 %v694, %v2464
      %2466 = vmatmul.bf16.gmra.mxu0 %v1138
      %v2467 = vpop.f32.mrf.mxu0
      %v2468 = vadd.f32 %v694, %v2467
      %v2469 = vpop.f32.mrf.mxu0
      %v2470 = vadd.f32 %v694, %v2469
      %2471 = vmatmul.bf16.gmra.mxu0 %v1145
      %v2472 = vpop.f32.mrf.mxu0
      %v2473 = vadd.f32 %v694, %v2472
      %v2474 = vpop.f32.mrf.mxu0
      %v2475 = vadd.f32 %v694, %v2474
      %2476 = vmatmul.bf16.gmra.mxu0 %v1152
      %v2477 = vpop.f32.mrf.mxu0
      %v2478 = vadd.f32 %v694, %v2477
      %v2479 = vpop.f32.mrf.mxu0
      %v2480 = vadd.f32 %v694, %v2479
      %2481 = vmatmul.bf16.gmra.mxu0 %v1159
      %v2482 = vpop.f32.mrf.mxu0
      %v2483 = vadd.f32 %v694, %v2482
      %v2484 = vpop.f32.mrf.mxu0
      %v2485 = vadd.f32 %v694, %v2484
      %2486 = vdwg.mxu0
      %2487 = vmatpush.bf16.msra.mxu0 %v2010
      %2488 = vmatpush.bf16.msra.mxu0 %v2006
      %2489 = vmatpush.bf16.msra.mxu0 %v2002
      %2490 = vmatpush.bf16.msra.mxu0 %v1998
      %2491 = vmatpush.bf16.msra.mxu0 %v1994
      %2492 = vmatpush.bf16.msra.mxu0 %v1990
      %2493 = vmatpush.bf16.msra.mxu0 %v1986
      %2494 = vmatpush.bf16.msra.mxu0 %v1982
      %2495 = vmatmul.bf16.gmra.mxu0 %v1055
      %v2496 = vpop.f32.mrf.mxu0
      %v2497 = vadd.f32 %v2408, %v2496
      %v2498 = vpop.f32.mrf.mxu0
      %v2499 = vadd.f32 %v2410, %v2498
      %2500 = vmatmul.bf16.gmra.mxu0 %v1062
      %v2501 = vpop.f32.mrf.mxu0
      %v2502 = vadd.f32 %v2413, %v2501
      %v2503 = vpop.f32.mrf.mxu0
      %v2504 = vadd.f32 %v2415, %v2503
      %2505 = vmatmul.bf16.gmra.mxu0 %v1069
      %v2506 = vpop.f32.mrf.mxu0
      %v2507 = vadd.f32 %v2418, %v2506
      %v2508 = vpop.f32.mrf.mxu0
      %v2509 = vadd.f32 %v2420, %v2508
      %2510 = vmatmul.bf16.gmra.mxu0 %v1076
      %v2511 = vpop.f32.mrf.mxu0
      %v2512 = vadd.f32 %v2423, %v2511
      %v2513 = vpop.f32.mrf.mxu0
      %v2514 = vadd.f32 %v2425, %v2513
      %2515 = vmatmul.bf16.gmra.mxu0 %v1083
      %v2516 = vpop.f32.mrf.mxu0
      %v2517 = vadd.f32 %v2428, %v2516
      %v2518 = vpop.f32.mrf.mxu0
      %v2519 = vadd.f32 %v2430, %v2518
      %2520 = vmatmul.bf16.gmra.mxu0 %v1090
      %v2521 = vpop.f32.mrf.mxu0
      %v2522 = vadd.f32 %v2433, %v2521
      %v2523 = vpop.f32.mrf.mxu0
      %v2524 = vadd.f32 %v2435, %v2523
      %2525 = vmatmul.bf16.gmra.mxu0 %v1097
      %v2526 = vpop.f32.mrf.mxu0
      %v2527 = vadd.f32 %v2438, %v2526
      %v2528 = vpop.f32.mrf.mxu0
      %v2529 = vadd.f32 %v2440, %v2528
      %2530 = vmatmul.bf16.gmra.mxu0 %v1104
      %v2531 = vpop.f32.mrf.mxu0
      %v2532 = vadd.f32 %v2443, %v2531
      %v2533 = vpop.f32.mrf.mxu0
      %v2534 = vadd.f32 %v2445, %v2533
      %2535 = vmatmul.bf16.gmra.mxu0 %v1111
      %v2536 = vpop.f32.mrf.mxu0
      %v2537 = vadd.f32 %v2448, %v2536
      %v2538 = vpop.f32.mrf.mxu0
      %v2539 = vadd.f32 %v2450, %v2538
      %2540 = vmatmul.bf16.gmra.mxu0 %v1118
      %v2541 = vpop.f32.mrf.mxu0
      %v2542 = vadd.f32 %v2453, %v2541
      %v2543 = vpop.f32.mrf.mxu0
      %v2544 = vadd.f32 %v2455, %v2543
      %2545 = vmatmul.bf16.gmra.mxu0 %v1125
      %v2546 = vpop.f32.mrf.mxu0
      %v2547 = vadd.f32 %v2458, %v2546
      %v2548 = vpop.f32.mrf.mxu0
      %v2549 = vadd.f32 %v2460, %v2548
      %2550 = vmatmul.bf16.gmra.mxu0 %v1132
      %v2551 = vpop.f32.mrf.mxu0
      %v2552 = vadd.f32 %v2463, %v2551
      %v2553 = vpop.f32.mrf.mxu0
      %v2554 = vadd.f32 %v2465, %v2553
      %2555 = vmatmul.bf16.gmra.mxu0 %v1139
      %v2556 = vpop.f32.mrf.mxu0
      %v2557 = vadd.f32 %v2468, %v2556
      %v2558 = vpop.f32.mrf.mxu0
      %v2559 = vadd.f32 %v2470, %v2558
      %2560 = vmatmul.bf16.gmra.mxu0 %v1146
      %v2561 = vpop.f32.mrf.mxu0
      %v2562 = vadd.f32 %v2473, %v2561
      %v2563 = vpop.f32.mrf.mxu0
      %v2564 = vadd.f32 %v2475, %v2563
      %2565 = vmatmul.bf16.gmra.mxu0 %v1153
      %v2566 = vpop.f32.mrf.mxu0
      %v2567 = vadd.f32 %v2478, %v2566
      %v2568 = vpop.f32.mrf.mxu0
      %v2569 = vadd.f32 %v2480, %v2568
      %2570 = vmatmul.bf16.gmra.mxu0 %v1160
      %v2571 = vpop.f32.mrf.mxu0
      %v2572 = vadd.f32 %v2483, %v2571
      %v2573 = vpop.f32.mrf.mxu0
      %v2574 = vadd.f32 %v2485, %v2573
      %2575 = vdwg.mxu0
      %2576 = vmatpush.bf16.msra.mxu0 %v2042
      %2577 = vmatpush.bf16.msra.mxu0 %v2038
      %2578 = vmatpush.bf16.msra.mxu0 %v2034
      %2579 = vmatpush.bf16.msra.mxu0 %v2030
      %2580 = vmatpush.bf16.msra.mxu0 %v2026
      %2581 = vmatpush.bf16.msra.mxu0 %v2022
      %2582 = vmatpush.bf16.msra.mxu0 %v2018
      %2583 = vmatpush.bf16.msra.mxu0 %v2014
      %2584 = vmatmul.bf16.gmra.mxu0 %v1056
      %v2585 = vpop.f32.mrf.mxu0
      %v2586 = vadd.f32 %v2497, %v2585
      %v2587 = vpop.f32.mrf.mxu0
      %v2588 = vadd.f32 %v2499, %v2587
      %2589 = vmatmul.bf16.gmra.mxu0 %v1063
      %v2590 = vpop.f32.mrf.mxu0
      %v2591 = vadd.f32 %v2502, %v2590
      %v2592 = vpop.f32.mrf.mxu0
      %v2593 = vadd.f32 %v2504, %v2592
      %2594 = vmatmul.bf16.gmra.mxu0 %v1070
      %v2595 = vpop.f32.mrf.mxu0
      %v2596 = vadd.f32 %v2507, %v2595
      %v2597 = vpop.f32.mrf.mxu0
      %v2598 = vadd.f32 %v2509, %v2597
      %2599 = vmatmul.bf16.gmra.mxu0 %v1077
      %v2600 = vpop.f32.mrf.mxu0
      %v2601 = vadd.f32 %v2512, %v2600
      %v2602 = vpop.f32.mrf.mxu0
      %v2603 = vadd.f32 %v2514, %v2602
      %2604 = vmatmul.bf16.gmra.mxu0 %v1084
      %v2605 = vpop.f32.mrf.mxu0
      %v2606 = vadd.f32 %v2517, %v2605
      %v2607 = vpop.f32.mrf.mxu0
      %v2608 = vadd.f32 %v2519, %v2607
      %2609 = vmatmul.bf16.gmra.mxu0 %v1091
      %v2610 = vpop.f32.mrf.mxu0
      %v2611 = vadd.f32 %v2522, %v2610
      %v2612 = vpop.f32.mrf.mxu0
      %v2613 = vadd.f32 %v2524, %v2612
      %2614 = vmatmul.bf16.gmra.mxu0 %v1098
      %v2615 = vpop.f32.mrf.mxu0
      %v2616 = vadd.f32 %v2527, %v2615
      %v2617 = vpop.f32.mrf.mxu0
      %v2618 = vadd.f32 %v2529, %v2617
      %2619 = vmatmul.bf16.gmra.mxu0 %v1105
      %v2620 = vpop.f32.mrf.mxu0
      %v2621 = vadd.f32 %v2532, %v2620
      %v2622 = vpop.f32.mrf.mxu0
      %v2623 = vadd.f32 %v2534, %v2622
      %2624 = vmatmul.bf16.gmra.mxu0 %v1112
      %v2625 = vpop.f32.mrf.mxu0
      %v2626 = vadd.f32 %v2537, %v2625
      %v2627 = vpop.f32.mrf.mxu0
      %v2628 = vadd.f32 %v2539, %v2627
      %2629 = vmatmul.bf16.gmra.mxu0 %v1119
      %v2630 = vpop.f32.mrf.mxu0
      %v2631 = vadd.f32 %v2542, %v2630
      %v2632 = vpop.f32.mrf.mxu0
      %v2633 = vadd.f32 %v2544, %v2632
      %2634 = vmatmul.bf16.gmra.mxu0 %v1126
      %v2635 = vpop.f32.mrf.mxu0
      %v2636 = vadd.f32 %v2547, %v2635
      %v2637 = vpop.f32.mrf.mxu0
      %v2638 = vadd.f32 %v2549, %v2637
      %2639 = vmatmul.bf16.gmra.mxu0 %v1133
      %v2640 = vpop.f32.mrf.mxu0
      %v2641 = vadd.f32 %v2552, %v2640
      %v2642 = vpop.f32.mrf.mxu0
      %v2643 = vadd.f32 %v2554, %v2642
      %2644 = vmatmul.bf16.gmra.mxu0 %v1140
      %v2645 = vpop.f32.mrf.mxu0
      %v2646 = vadd.f32 %v2557, %v2645
      %v2647 = vpop.f32.mrf.mxu0
      %v2648 = vadd.f32 %v2559, %v2647
      %2649 = vmatmul.bf16.gmra.mxu0 %v1147
      %v2650 = vpop.f32.mrf.mxu0
      %v2651 = vadd.f32 %v2562, %v2650
      %v2652 = vpop.f32.mrf.mxu0
      %v2653 = vadd.f32 %v2564, %v2652
      %2654 = vmatmul.bf16.gmra.mxu0 %v1154
      %v2655 = vpop.f32.mrf.mxu0
      %v2656 = vadd.f32 %v2567, %v2655
      %v2657 = vpop.f32.mrf.mxu0
      %v2658 = vadd.f32 %v2569, %v2657
      %2659 = vmatmul.bf16.gmra.mxu0 %v1161
      %v2660 = vpop.f32.mrf.mxu0
      %v2661 = vadd.f32 %v2572, %v2660
      %v2662 = vpop.f32.mrf.mxu0
      %v2663 = vadd.f32 %v2574, %v2662
      %2664 = vdwg.mxu0
      %2665 = vmatpush.bf16.msra.mxu0 %v2074
      %2666 = vmatpush.bf16.msra.mxu0 %v2070
      %2667 = vmatpush.bf16.msra.mxu0 %v2066
      %2668 = vmatpush.bf16.msra.mxu0 %v2062
      %2669 = vmatpush.bf16.msra.mxu0 %v2058
      %2670 = vmatpush.bf16.msra.mxu0 %v2054
      %2671 = vmatpush.bf16.msra.mxu0 %v2050
      %2672 = vmatpush.bf16.msra.mxu0 %v2046
      %2673 = vmatmul.bf16.gmra.mxu0 %v1057
      %v2674 = vpop.f32.mrf.mxu0
      %v2675 = vadd.f32 %v2586, %v2674
      %v2676 = vpop.f32.mrf.mxu0
      %v2677 = vadd.f32 %v2588, %v2676
      %2678 = vmatmul.bf16.gmra.mxu0 %v1064
      %v2679 = vpop.f32.mrf.mxu0
      %v2680 = vadd.f32 %v2591, %v2679
      %v2681 = vpop.f32.mrf.mxu0
      %v2682 = vadd.f32 %v2593, %v2681
      %2683 = vmatmul.bf16.gmra.mxu0 %v1071
      %v2684 = vpop.f32.mrf.mxu0
      %v2685 = vadd.f32 %v2596, %v2684
      %v2686 = vpop.f32.mrf.mxu0
      %v2687 = vadd.f32 %v2598, %v2686
      %2688 = vmatmul.bf16.gmra.mxu0 %v1078
      %v2689 = vpop.f32.mrf.mxu0
      %v2690 = vadd.f32 %v2601, %v2689
      %v2691 = vpop.f32.mrf.mxu0
      %v2692 = vadd.f32 %v2603, %v2691
      %2693 = vmatmul.bf16.gmra.mxu0 %v1085
      %v2694 = vpop.f32.mrf.mxu0
      %v2695 = vadd.f32 %v2606, %v2694
      %v2696 = vpop.f32.mrf.mxu0
      %v2697 = vadd.f32 %v2608, %v2696
      %2698 = vmatmul.bf16.gmra.mxu0 %v1092
      %v2699 = vpop.f32.mrf.mxu0
      %v2700 = vadd.f32 %v2611, %v2699
      %v2701 = vpop.f32.mrf.mxu0
      %v2702 = vadd.f32 %v2613, %v2701
      %2703 = vmatmul.bf16.gmra.mxu0 %v1099
      %v2704 = vpop.f32.mrf.mxu0
      %v2705 = vadd.f32 %v2616, %v2704
      %v2706 = vpop.f32.mrf.mxu0
      %v2707 = vadd.f32 %v2618, %v2706
      %2708 = vmatmul.bf16.gmra.mxu0 %v1106
      %v2709 = vpop.f32.mrf.mxu0
      %v2710 = vadd.f32 %v2621, %v2709
      %v2711 = vpop.f32.mrf.mxu0
      %v2712 = vadd.f32 %v2623, %v2711
      %2713 = vmatmul.bf16.gmra.mxu0 %v1113
      %v2714 = vpop.f32.mrf.mxu0
      %v2715 = vadd.f32 %v2626, %v2714
      %v2716 = vpop.f32.mrf.mxu0
      %v2717 = vadd.f32 %v2628, %v2716
      %2718 = vmatmul.bf16.gmra.mxu0 %v1120
      %v2719 = vpop.f32.mrf.mxu0
      %v2720 = vadd.f32 %v2631, %v2719
      %v2721 = vpop.f32.mrf.mxu0
      %v2722 = vadd.f32 %v2633, %v2721
      %2723 = vmatmul.bf16.gmra.mxu0 %v1127
      %v2724 = vpop.f32.mrf.mxu0
      %v2725 = vadd.f32 %v2636, %v2724
      %v2726 = vpop.f32.mrf.mxu0
      %v2727 = vadd.f32 %v2638, %v2726
      %2728 = vmatmul.bf16.gmra.mxu0 %v1134
      %v2729 = vpop.f32.mrf.mxu0
      %v2730 = vadd.f32 %v2641, %v2729
      %v2731 = vpop.f32.mrf.mxu0
      %v2732 = vadd.f32 %v2643, %v2731
      %2733 = vmatmul.bf16.gmra.mxu0 %v1141
      %v2734 = vpop.f32.mrf.mxu0
      %v2735 = vadd.f32 %v2646, %v2734
      %v2736 = vpop.f32.mrf.mxu0
      %v2737 = vadd.f32 %v2648, %v2736
      %2738 = vmatmul.bf16.gmra.mxu0 %v1148
      %v2739 = vpop.f32.mrf.mxu0
      %v2740 = vadd.f32 %v2651, %v2739
      %v2741 = vpop.f32.mrf.mxu0
      %v2742 = vadd.f32 %v2653, %v2741
      %2743 = vmatmul.bf16.gmra.mxu0 %v1155
      %v2744 = vpop.f32.mrf.mxu0
      %v2745 = vadd.f32 %v2656, %v2744
      %v2746 = vpop.f32.mrf.mxu0
      %v2747 = vadd.f32 %v2658, %v2746
      %2748 = vmatmul.bf16.gmra.mxu0 %v1162
      %v2749 = vpop.f32.mrf.mxu0
      %v2750 = vadd.f32 %v2661, %v2749
      %v2751 = vpop.f32.mrf.mxu0
      %v2752 = vadd.f32 %v2663, %v2751
      %2753 = vdwg.mxu0
      %2754 = vmatpush.bf16.msra.mxu0 %v2106
      %2755 = vmatpush.bf16.msra.mxu0 %v2102
      %2756 = vmatpush.bf16.msra.mxu0 %v2098
      %2757 = vmatpush.bf16.msra.mxu0 %v2094
      %2758 = vmatpush.bf16.msra.mxu0 %v2090
      %2759 = vmatpush.bf16.msra.mxu0 %v2086
      %2760 = vmatpush.bf16.msra.mxu0 %v2082
      %2761 = vmatpush.bf16.msra.mxu0 %v2078
      %2762 = vmatmul.bf16.gmra.mxu0 %v1058
      %v2763 = vpop.f32.mrf.mxu0
      %v2764 = vadd.f32 %v2675, %v2763
      %v2765 = vpop.f32.mrf.mxu0
      %v2766 = vadd.f32 %v2677, %v2765
      %2767 = vmatmul.bf16.gmra.mxu0 %v1065
      %v2768 = vpop.f32.mrf.mxu0
      %v2769 = vadd.f32 %v2680, %v2768
      %v2770 = vpop.f32.mrf.mxu0
      %v2771 = vadd.f32 %v2682, %v2770
      %2772 = vmatmul.bf16.gmra.mxu0 %v1072
      %v2773 = vpop.f32.mrf.mxu0
      %v2774 = vadd.f32 %v2685, %v2773
      %v2775 = vpop.f32.mrf.mxu0
      %v2776 = vadd.f32 %v2687, %v2775
      %2777 = vmatmul.bf16.gmra.mxu0 %v1079
      %v2778 = vpop.f32.mrf.mxu0
      %v2779 = vadd.f32 %v2690, %v2778
      %v2780 = vpop.f32.mrf.mxu0
      %v2781 = vadd.f32 %v2692, %v2780
      %2782 = vmatmul.bf16.gmra.mxu0 %v1086
      %v2783 = vpop.f32.mrf.mxu0
      %v2784 = vadd.f32 %v2695, %v2783
      %v2785 = vpop.f32.mrf.mxu0
      %v2786 = vadd.f32 %v2697, %v2785
      %2787 = vmatmul.bf16.gmra.mxu0 %v1093
      %v2788 = vpop.f32.mrf.mxu0
      %v2789 = vadd.f32 %v2700, %v2788
      %v2790 = vpop.f32.mrf.mxu0
      %v2791 = vadd.f32 %v2702, %v2790
      %2792 = vmatmul.bf16.gmra.mxu0 %v1100
      %v2793 = vpop.f32.mrf.mxu0
      %v2794 = vadd.f32 %v2705, %v2793
      %v2795 = vpop.f32.mrf.mxu0
      %v2796 = vadd.f32 %v2707, %v2795
      %2797 = vmatmul.bf16.gmra.mxu0 %v1107
      %v2798 = vpop.f32.mrf.mxu0
      %v2799 = vadd.f32 %v2710, %v2798
      %v2800 = vpop.f32.mrf.mxu0
      %v2801 = vadd.f32 %v2712, %v2800
      %2802 = vmatmul.bf16.gmra.mxu0 %v1114
      %v2803 = vpop.f32.mrf.mxu0
      %v2804 = vadd.f32 %v2715, %v2803
      %v2805 = vpop.f32.mrf.mxu0
      %v2806 = vadd.f32 %v2717, %v2805
      %2807 = vmatmul.bf16.gmra.mxu0 %v1121
      %v2808 = vpop.f32.mrf.mxu0
      %v2809 = vadd.f32 %v2720, %v2808
      %v2810 = vpop.f32.mrf.mxu0
      %v2811 = vadd.f32 %v2722, %v2810
      %2812 = vmatmul.bf16.gmra.mxu0 %v1128
      %v2813 = vpop.f32.mrf.mxu0
      %v2814 = vadd.f32 %v2725, %v2813
      %v2815 = vpop.f32.mrf.mxu0
      %v2816 = vadd.f32 %v2727, %v2815
      %2817 = vmatmul.bf16.gmra.mxu0 %v1135
      %v2818 = vpop.f32.mrf.mxu0
      %v2819 = vadd.f32 %v2730, %v2818
      %v2820 = vpop.f32.mrf.mxu0
      %v2821 = vadd.f32 %v2732, %v2820
      %2822 = vmatmul.bf16.gmra.mxu0 %v1142
      %v2823 = vpop.f32.mrf.mxu0
      %v2824 = vadd.f32 %v2735, %v2823
      %v2825 = vpop.f32.mrf.mxu0
      %v2826 = vadd.f32 %v2737, %v2825
      %2827 = vmatmul.bf16.gmra.mxu0 %v1149
      %v2828 = vpop.f32.mrf.mxu0
      %v2829 = vadd.f32 %v2740, %v2828
      %v2830 = vpop.f32.mrf.mxu0
      %v2831 = vadd.f32 %v2742, %v2830
      %2832 = vmatmul.bf16.gmra.mxu0 %v1156
      %v2833 = vpop.f32.mrf.mxu0
      %v2834 = vadd.f32 %v2745, %v2833
      %v2835 = vpop.f32.mrf.mxu0
      %v2836 = vadd.f32 %v2747, %v2835
      %2837 = vmatmul.bf16.gmra.mxu0 %v1163
      %v2838 = vpop.f32.mrf.mxu0
      %v2839 = vadd.f32 %v2750, %v2838
      %v2840 = vpop.f32.mrf.mxu0
      %v2841 = vadd.f32 %v2752, %v2840
      %2842 = vdwg.mxu0
      %2843 = vmatpush.bf16.msra.mxu0 %v2138
      %2844 = vmatpush.bf16.msra.mxu0 %v2134
      %2845 = vmatpush.bf16.msra.mxu0 %v2130
      %2846 = vmatpush.bf16.msra.mxu0 %v2126
      %2847 = vmatpush.bf16.msra.mxu0 %v2122
      %2848 = vmatpush.bf16.msra.mxu0 %v2118
      %2849 = vmatpush.bf16.msra.mxu0 %v2114
      %2850 = vmatpush.bf16.msra.mxu0 %v2110
      %2851 = vmatmul.bf16.gmra.mxu0 %v1059
      %v2852 = vpop.f32.mrf.mxu0
      %v2853 = vadd.f32 %v2764, %v2852
      %v2854 = vpop.f32.mrf.mxu0
      %v2855 = vadd.f32 %v2766, %v2854
      %2856 = vmatmul.bf16.gmra.mxu0 %v1066
      %v2857 = vpop.f32.mrf.mxu0
      %v2858 = vadd.f32 %v2769, %v2857
      %v2859 = vpop.f32.mrf.mxu0
      %v2860 = vadd.f32 %v2771, %v2859
      %2861 = vmatmul.bf16.gmra.mxu0 %v1073
      %v2862 = vpop.f32.mrf.mxu0
      %v2863 = vadd.f32 %v2774, %v2862
      %v2864 = vpop.f32.mrf.mxu0
      %v2865 = vadd.f32 %v2776, %v2864
      %2866 = vmatmul.bf16.gmra.mxu0 %v1080
      %v2867 = vpop.f32.mrf.mxu0
      %v2868 = vadd.f32 %v2779, %v2867
      %v2869 = vpop.f32.mrf.mxu0
      %v2870 = vadd.f32 %v2781, %v2869
      %2871 = vmatmul.bf16.gmra.mxu0 %v1087
      %v2872 = vpop.f32.mrf.mxu0
      %v2873 = vadd.f32 %v2784, %v2872
      %v2874 = vpop.f32.mrf.mxu0
      %v2875 = vadd.f32 %v2786, %v2874
      %2876 = vmatmul.bf16.gmra.mxu0 %v1094
      %v2877 = vpop.f32.mrf.mxu0
      %v2878 = vadd.f32 %v2789, %v2877
      %v2879 = vpop.f32.mrf.mxu0
      %v2880 = vadd.f32 %v2791, %v2879
      %2881 = vmatmul.bf16.gmra.mxu0 %v1101
      %v2882 = vpop.f32.mrf.mxu0
      %v2883 = vadd.f32 %v2794, %v2882
      %v2884 = vpop.f32.mrf.mxu0
      %v2885 = vadd.f32 %v2796, %v2884
      %2886 = vmatmul.bf16.gmra.mxu0 %v1108
      %v2887 = vpop.f32.mrf.mxu0
      %v2888 = vadd.f32 %v2799, %v2887
      %v2889 = vpop.f32.mrf.mxu0
      %v2890 = vadd.f32 %v2801, %v2889
      %2891 = vmatmul.bf16.gmra.mxu0 %v1115
      %v2892 = vpop.f32.mrf.mxu0
      %v2893 = vadd.f32 %v2804, %v2892
      %v2894 = vpop.f32.mrf.mxu0
      %v2895 = vadd.f32 %v2806, %v2894
      %2896 = vmatmul.bf16.gmra.mxu0 %v1122
      %v2897 = vpop.f32.mrf.mxu0
      %v2898 = vadd.f32 %v2809, %v2897
      %v2899 = vpop.f32.mrf.mxu0
      %v2900 = vadd.f32 %v2811, %v2899
      %2901 = vmatmul.bf16.gmra.mxu0 %v1129
      %v2902 = vpop.f32.mrf.mxu0
      %v2903 = vadd.f32 %v2814, %v2902
      %v2904 = vpop.f32.mrf.mxu0
      %v2905 = vadd.f32 %v2816, %v2904
      %2906 = vmatmul.bf16.gmra.mxu0 %v1136
      %v2907 = vpop.f32.mrf.mxu0
      %v2908 = vadd.f32 %v2819, %v2907
      %v2909 = vpop.f32.mrf.mxu0
      %v2910 = vadd.f32 %v2821, %v2909
      %2911 = vmatmul.bf16.gmra.mxu0 %v1143
      %v2912 = vpop.f32.mrf.mxu0
      %v2913 = vadd.f32 %v2824, %v2912
      %v2914 = vpop.f32.mrf.mxu0
      %v2915 = vadd.f32 %v2826, %v2914
      %2916 = vmatmul.bf16.gmra.mxu0 %v1150
      %v2917 = vpop.f32.mrf.mxu0
      %v2918 = vadd.f32 %v2829, %v2917
      %v2919 = vpop.f32.mrf.mxu0
      %v2920 = vadd.f32 %v2831, %v2919
      %2921 = vmatmul.bf16.gmra.mxu0 %v1157
      %v2922 = vpop.f32.mrf.mxu0
      %v2923 = vadd.f32 %v2834, %v2922
      %v2924 = vpop.f32.mrf.mxu0
      %v2925 = vadd.f32 %v2836, %v2924
      %2926 = vmatmul.bf16.gmra.mxu0 %v1164
      %v2927 = vpop.f32.mrf.mxu0
      %v2928 = vadd.f32 %v2839, %v2927
      %v2929 = vpop.f32.mrf.mxu0
      %v2930 = vadd.f32 %v2841, %v2929
      %2931 = vdwg.mxu0
      %2932 = vmatpush.bf16.msra.mxu0 %v2170
      %2933 = vmatpush.bf16.msra.mxu0 %v2166
      %2934 = vmatpush.bf16.msra.mxu0 %v2162
      %2935 = vmatpush.bf16.msra.mxu0 %v2158
      %2936 = vmatpush.bf16.msra.mxu0 %v2154
      %2937 = vmatpush.bf16.msra.mxu0 %v2150
      %2938 = vmatpush.bf16.msra.mxu0 %v2146
      %2939 = vmatpush.bf16.msra.mxu0 %v2142
      %2940 = vmatmul.bf16.gmra.mxu0 %v1060
      %v2941 = vpop.f32.mrf.mxu0
      %v2942 = vadd.f32 %v2853, %v2941
      %v2943 = vpop.f32.mrf.mxu0
      %v2944 = vadd.f32 %v2855, %v2943
      %2945 = vmatmul.bf16.gmra.mxu0 %v1067
      %v2946 = vpop.f32.mrf.mxu0
      %v2947 = vadd.f32 %v2858, %v2946
      %v2948 = vpop.f32.mrf.mxu0
      %v2949 = vadd.f32 %v2860, %v2948
      %2950 = vmatmul.bf16.gmra.mxu0 %v1074
      %v2951 = vpop.f32.mrf.mxu0
      %v2952 = vadd.f32 %v2863, %v2951
      %v2953 = vpop.f32.mrf.mxu0
      %v2954 = vadd.f32 %v2865, %v2953
      %2955 = vmatmul.bf16.gmra.mxu0 %v1081
      %v2956 = vpop.f32.mrf.mxu0
      %v2957 = vadd.f32 %v2868, %v2956
      %v2958 = vpop.f32.mrf.mxu0
      %v2959 = vadd.f32 %v2870, %v2958
      %2960 = vmatmul.bf16.gmra.mxu0 %v1088
      %v2961 = vpop.f32.mrf.mxu0
      %v2962 = vadd.f32 %v2873, %v2961
      %v2963 = vpop.f32.mrf.mxu0
      %v2964 = vadd.f32 %v2875, %v2963
      %2965 = vmatmul.bf16.gmra.mxu0 %v1095
      %v2966 = vpop.f32.mrf.mxu0
      %v2967 = vadd.f32 %v2878, %v2966
      %v2968 = vpop.f32.mrf.mxu0
      %v2969 = vadd.f32 %v2880, %v2968
      %2970 = vmatmul.bf16.gmra.mxu0 %v1102
      %v2971 = vpop.f32.mrf.mxu0
      %v2972 = vadd.f32 %v2883, %v2971
      %v2973 = vpop.f32.mrf.mxu0
      %v2974 = vadd.f32 %v2885, %v2973
      %2975 = vmatmul.bf16.gmra.mxu0 %v1109
      %v2976 = vpop.f32.mrf.mxu0
      %v2977 = vadd.f32 %v2888, %v2976
      %v2978 = vpop.f32.mrf.mxu0
      %v2979 = vadd.f32 %v2890, %v2978
      %2980 = vmatmul.bf16.gmra.mxu0 %v1116
      %v2981 = vpop.f32.mrf.mxu0
      %v2982 = vadd.f32 %v2893, %v2981
      %v2983 = vpop.f32.mrf.mxu0
      %v2984 = vadd.f32 %v2895, %v2983
      %2985 = vmatmul.bf16.gmra.mxu0 %v1123
      %v2986 = vpop.f32.mrf.mxu0
      %v2987 = vadd.f32 %v2898, %v2986
      %v2988 = vpop.f32.mrf.mxu0
      %v2989 = vadd.f32 %v2900, %v2988
      %2990 = vmatmul.bf16.gmra.mxu0 %v1130
      %v2991 = vpop.f32.mrf.mxu0
      %v2992 = vadd.f32 %v2903, %v2991
      %v2993 = vpop.f32.mrf.mxu0
      %v2994 = vadd.f32 %v2905, %v2993
      %2995 = vmatmul.bf16.gmra.mxu0 %v1137
      %v2996 = vpop.f32.mrf.mxu0
      %v2997 = vadd.f32 %v2908, %v2996
      %v2998 = vpop.f32.mrf.mxu0
      %v2999 = vadd.f32 %v2910, %v2998
      %3000 = vmatmul.bf16.gmra.mxu0 %v1144
      %v3001 = vpop.f32.mrf.mxu0
      %v3002 = vadd.f32 %v2913, %v3001
      %v3003 = vpop.f32.mrf.mxu0
      %v3004 = vadd.f32 %v2915, %v3003
      %3005 = vmatmul.bf16.gmra.mxu0 %v1151
      %v3006 = vpop.f32.mrf.mxu0
      %v3007 = vadd.f32 %v2918, %v3006
      %v3008 = vpop.f32.mrf.mxu0
      %v3009 = vadd.f32 %v2920, %v3008
      %3010 = vmatmul.bf16.gmra.mxu0 %v1158
      %v3011 = vpop.f32.mrf.mxu0
      %v3012 = vadd.f32 %v2923, %v3011
      %v3013 = vpop.f32.mrf.mxu0
      %v3014 = vadd.f32 %v2925, %v3013
      %3015 = vmatmul.bf16.gmra.mxu0 %v1165
      %v3016 = vpop.f32.mrf.mxu0
      %v3017 = vadd.f32 %v2928, %v3016
      %v3018 = vpop.f32.mrf.mxu0
      %v3019 = vadd.f32 %v2930, %v3018
      %3020 = vdwg.mxu0
      %3021 = vmatpush.bf16.msra.mxu0 %v1979
      %3022 = vmatpush.bf16.msra.mxu0 %v1975
      %3023 = vmatpush.bf16.msra.mxu0 %v1971
      %3024 = vmatpush.bf16.msra.mxu0 %v1967
      %3025 = vmatpush.bf16.msra.mxu0 %v1963
      %3026 = vmatpush.bf16.msra.mxu0 %v1959
      %3027 = vmatpush.bf16.msra.mxu0 %v1955
      %3028 = vmatpush.bf16.msra.mxu0 %v1951
      %3029 = vmatmul.bf16.gmra.mxu0 %v1054
      %v3030 = vpop.f32.mrf.mxu0
      %v3031 = vadd.f32 %v695, %v3030
      %v3032 = vpop.f32.mrf.mxu0
      %v3033 = vadd.f32 %v695, %v3032
      %3034 = vmatmul.bf16.gmra.mxu0 %v1061
      %v3035 = vpop.f32.mrf.mxu0
      %v3036 = vadd.f32 %v695, %v3035
      %v3037 = vpop.f32.mrf.mxu0
      %v3038 = vadd.f32 %v695, %v3037
      %3039 = vmatmul.bf16.gmra.mxu0 %v1068
      %v3040 = vpop.f32.mrf.mxu0
      %v3041 = vadd.f32 %v695, %v3040
      %v3042 = vpop.f32.mrf.mxu0
      %v3043 = vadd.f32 %v695, %v3042
      %3044 = vmatmul.bf16.gmra.mxu0 %v1075
      %v3045 = vpop.f32.mrf.mxu0
      %v3046 = vadd.f32 %v695, %v3045
      %v3047 = vpop.f32.mrf.mxu0
      %v3048 = vadd.f32 %v695, %v3047
      %3049 = vmatmul.bf16.gmra.mxu0 %v1082
      %v3050 = vpop.f32.mrf.mxu0
      %v3051 = vadd.f32 %v695, %v3050
      %v3052 = vpop.f32.mrf.mxu0
      %v3053 = vadd.f32 %v695, %v3052
      %3054 = vmatmul.bf16.gmra.mxu0 %v1089
      %v3055 = vpop.f32.mrf.mxu0
      %v3056 = vadd.f32 %v695, %v3055
      %v3057 = vpop.f32.mrf.mxu0
      %v3058 = vadd.f32 %v695, %v3057
      %3059 = vmatmul.bf16.gmra.mxu0 %v1096
      %v3060 = vpop.f32.mrf.mxu0
      %v3061 = vadd.f32 %v695, %v3060
      %v3062 = vpop.f32.mrf.mxu0
      %v3063 = vadd.f32 %v695, %v3062
      %3064 = vmatmul.bf16.gmra.mxu0 %v1103
      %v3065 = vpop.f32.mrf.mxu0
      %v3066 = vadd.f32 %v695, %v3065
      %v3067 = vpop.f32.mrf.mxu0
      %v3068 = vadd.f32 %v695, %v3067
      %3069 = vmatmul.bf16.gmra.mxu0 %v1110
      %v3070 = vpop.f32.mrf.mxu0
      %v3071 = vadd.f32 %v695, %v3070
      %v3072 = vpop.f32.mrf.mxu0
      %v3073 = vadd.f32 %v695, %v3072
      %3074 = vmatmul.bf16.gmra.mxu0 %v1117
      %v3075 = vpop.f32.mrf.mxu0
      %v3076 = vadd.f32 %v695, %v3075
      %v3077 = vpop.f32.mrf.mxu0
      %v3078 = vadd.f32 %v695, %v3077
      %3079 = vmatmul.bf16.gmra.mxu0 %v1124
      %v3080 = vpop.f32.mrf.mxu0
      %v3081 = vadd.f32 %v695, %v3080
      %v3082 = vpop.f32.mrf.mxu0
      %v3083 = vadd.f32 %v695, %v3082
      %3084 = vmatmul.bf16.gmra.mxu0 %v1131
      %v3085 = vpop.f32.mrf.mxu0
      %v3086 = vadd.f32 %v695, %v3085
      %v3087 = vpop.f32.mrf.mxu0
      %v3088 = vadd.f32 %v695, %v3087
      %3089 = vmatmul.bf16.gmra.mxu0 %v1138
      %v3090 = vpop.f32.mrf.mxu0
      %v3091 = vadd.f32 %v695, %v3090
      %v3092 = vpop.f32.mrf.mxu0
      %v3093 = vadd.f32 %v695, %v3092
      %3094 = vmatmul.bf16.gmra.mxu0 %v1145
      %v3095 = vpop.f32.mrf.mxu0
      %v3096 = vadd.f32 %v695, %v3095
      %v3097 = vpop.f32.mrf.mxu0
      %v3098 = vadd.f32 %v695, %v3097
      %3099 = vmatmul.bf16.gmra.mxu0 %v1152
      %v3100 = vpop.f32.mrf.mxu0
      %v3101 = vadd.f32 %v695, %v3100
      %v3102 = vpop.f32.mrf.mxu0
      %v3103 = vadd.f32 %v695, %v3102
      %3104 = vmatmul.bf16.gmra.mxu0 %v1159
      %v3105 = vpop.f32.mrf.mxu0
      %v3106 = vadd.f32 %v695, %v3105
      %v3107 = vpop.f32.mrf.mxu0
      %v3108 = vadd.f32 %v695, %v3107
      %3109 = vdwg.mxu0
      %3110 = vmatpush.bf16.msra.mxu0 %v2011
      %3111 = vmatpush.bf16.msra.mxu0 %v2007
      %3112 = vmatpush.bf16.msra.mxu0 %v2003
      %3113 = vmatpush.bf16.msra.mxu0 %v1999
      %3114 = vmatpush.bf16.msra.mxu0 %v1995
      %3115 = vmatpush.bf16.msra.mxu0 %v1991
      %3116 = vmatpush.bf16.msra.mxu0 %v1987
      %3117 = vmatpush.bf16.msra.mxu0 %v1983
      %3118 = vmatmul.bf16.gmra.mxu0 %v1055
      %v3119 = vpop.f32.mrf.mxu0
      %v3120 = vadd.f32 %v3031, %v3119
      %v3121 = vpop.f32.mrf.mxu0
      %v3122 = vadd.f32 %v3033, %v3121
      %3123 = vmatmul.bf16.gmra.mxu0 %v1062
      %v3124 = vpop.f32.mrf.mxu0
      %v3125 = vadd.f32 %v3036, %v3124
      %v3126 = vpop.f32.mrf.mxu0
      %v3127 = vadd.f32 %v3038, %v3126
      %3128 = vmatmul.bf16.gmra.mxu0 %v1069
      %v3129 = vpop.f32.mrf.mxu0
      %v3130 = vadd.f32 %v3041, %v3129
      %v3131 = vpop.f32.mrf.mxu0
      %v3132 = vadd.f32 %v3043, %v3131
      %3133 = vmatmul.bf16.gmra.mxu0 %v1076
      %v3134 = vpop.f32.mrf.mxu0
      %v3135 = vadd.f32 %v3046, %v3134
      %v3136 = vpop.f32.mrf.mxu0
      %v3137 = vadd.f32 %v3048, %v3136
      %3138 = vmatmul.bf16.gmra.mxu0 %v1083
      %v3139 = vpop.f32.mrf.mxu0
      %v3140 = vadd.f32 %v3051, %v3139
      %v3141 = vpop.f32.mrf.mxu0
      %v3142 = vadd.f32 %v3053, %v3141
      %3143 = vmatmul.bf16.gmra.mxu0 %v1090
      %v3144 = vpop.f32.mrf.mxu0
      %v3145 = vadd.f32 %v3056, %v3144
      %v3146 = vpop.f32.mrf.mxu0
      %v3147 = vadd.f32 %v3058, %v3146
      %3148 = vmatmul.bf16.gmra.mxu0 %v1097
      %v3149 = vpop.f32.mrf.mxu0
      %v3150 = vadd.f32 %v3061, %v3149
      %v3151 = vpop.f32.mrf.mxu0
      %v3152 = vadd.f32 %v3063, %v3151
      %3153 = vmatmul.bf16.gmra.mxu0 %v1104
      %v3154 = vpop.f32.mrf.mxu0
      %v3155 = vadd.f32 %v3066, %v3154
      %v3156 = vpop.f32.mrf.mxu0
      %v3157 = vadd.f32 %v3068, %v3156
      %3158 = vmatmul.bf16.gmra.mxu0 %v1111
      %v3159 = vpop.f32.mrf.mxu0
      %v3160 = vadd.f32 %v3071, %v3159
      %v3161 = vpop.f32.mrf.mxu0
      %v3162 = vadd.f32 %v3073, %v3161
      %3163 = vmatmul.bf16.gmra.mxu0 %v1118
      %v3164 = vpop.f32.mrf.mxu0
      %v3165 = vadd.f32 %v3076, %v3164
      %v3166 = vpop.f32.mrf.mxu0
      %v3167 = vadd.f32 %v3078, %v3166
      %3168 = vmatmul.bf16.gmra.mxu0 %v1125
      %v3169 = vpop.f32.mrf.mxu0
      %v3170 = vadd.f32 %v3081, %v3169
      %v3171 = vpop.f32.mrf.mxu0
      %v3172 = vadd.f32 %v3083, %v3171
      %3173 = vmatmul.bf16.gmra.mxu0 %v1132
      %v3174 = vpop.f32.mrf.mxu0
      %v3175 = vadd.f32 %v3086, %v3174
      %v3176 = vpop.f32.mrf.mxu0
      %v3177 = vadd.f32 %v3088, %v3176
      %3178 = vmatmul.bf16.gmra.mxu0 %v1139
      %v3179 = vpop.f32.mrf.mxu0
      %v3180 = vadd.f32 %v3091, %v3179
      %v3181 = vpop.f32.mrf.mxu0
      %v3182 = vadd.f32 %v3093, %v3181
      %3183 = vmatmul.bf16.gmra.mxu0 %v1146
      %v3184 = vpop.f32.mrf.mxu0
      %v3185 = vadd.f32 %v3096, %v3184
      %v3186 = vpop.f32.mrf.mxu0
      %v3187 = vadd.f32 %v3098, %v3186
      %3188 = vmatmul.bf16.gmra.mxu0 %v1153
      %v3189 = vpop.f32.mrf.mxu0
      %v3190 = vadd.f32 %v3101, %v3189
      %v3191 = vpop.f32.mrf.mxu0
      %v3192 = vadd.f32 %v3103, %v3191
      %3193 = vmatmul.bf16.gmra.mxu0 %v1160
      %v3194 = vpop.f32.mrf.mxu0
      %v3195 = vadd.f32 %v3106, %v3194
      %v3196 = vpop.f32.mrf.mxu0
      %v3197 = vadd.f32 %v3108, %v3196
      %3198 = vdwg.mxu0
      %3199 = vmatpush.bf16.msra.mxu0 %v2043
      %3200 = vmatpush.bf16.msra.mxu0 %v2039
      %3201 = vmatpush.bf16.msra.mxu0 %v2035
      %3202 = vmatpush.bf16.msra.mxu0 %v2031
      %3203 = vmatpush.bf16.msra.mxu0 %v2027
      %3204 = vmatpush.bf16.msra.mxu0 %v2023
      %3205 = vmatpush.bf16.msra.mxu0 %v2019
      %3206 = vmatpush.bf16.msra.mxu0 %v2015
      %3207 = vmatmul.bf16.gmra.mxu0 %v1056
      %v3208 = vpop.f32.mrf.mxu0
      %v3209 = vadd.f32 %v3120, %v3208
      %v3210 = vpop.f32.mrf.mxu0
      %v3211 = vadd.f32 %v3122, %v3210
      %3212 = vmatmul.bf16.gmra.mxu0 %v1063
      %v3213 = vpop.f32.mrf.mxu0
      %v3214 = vadd.f32 %v3125, %v3213
      %v3215 = vpop.f32.mrf.mxu0
      %v3216 = vadd.f32 %v3127, %v3215
      %3217 = vmatmul.bf16.gmra.mxu0 %v1070
      %v3218 = vpop.f32.mrf.mxu0
      %v3219 = vadd.f32 %v3130, %v3218
      %v3220 = vpop.f32.mrf.mxu0
      %v3221 = vadd.f32 %v3132, %v3220
      %3222 = vmatmul.bf16.gmra.mxu0 %v1077
      %v3223 = vpop.f32.mrf.mxu0
      %v3224 = vadd.f32 %v3135, %v3223
      %v3225 = vpop.f32.mrf.mxu0
      %v3226 = vadd.f32 %v3137, %v3225
      %3227 = vmatmul.bf16.gmra.mxu0 %v1084
      %v3228 = vpop.f32.mrf.mxu0
      %v3229 = vadd.f32 %v3140, %v3228
      %v3230 = vpop.f32.mrf.mxu0
      %v3231 = vadd.f32 %v3142, %v3230
      %3232 = vmatmul.bf16.gmra.mxu0 %v1091
      %v3233 = vpop.f32.mrf.mxu0
      %v3234 = vadd.f32 %v3145, %v3233
      %v3235 = vpop.f32.mrf.mxu0
      %v3236 = vadd.f32 %v3147, %v3235
      %3237 = vmatmul.bf16.gmra.mxu0 %v1098
      %v3238 = vpop.f32.mrf.mxu0
      %v3239 = vadd.f32 %v3150, %v3238
      %v3240 = vpop.f32.mrf.mxu0
      %v3241 = vadd.f32 %v3152, %v3240
      %3242 = vmatmul.bf16.gmra.mxu0 %v1105
      %v3243 = vpop.f32.mrf.mxu0
      %v3244 = vadd.f32 %v3155, %v3243
      %v3245 = vpop.f32.mrf.mxu0
      %v3246 = vadd.f32 %v3157, %v3245
      %3247 = vmatmul.bf16.gmra.mxu0 %v1112
      %v3248 = vpop.f32.mrf.mxu0
      %v3249 = vadd.f32 %v3160, %v3248
      %v3250 = vpop.f32.mrf.mxu0
      %v3251 = vadd.f32 %v3162, %v3250
      %3252 = vmatmul.bf16.gmra.mxu0 %v1119
      %v3253 = vpop.f32.mrf.mxu0
      %v3254 = vadd.f32 %v3165, %v3253
      %v3255 = vpop.f32.mrf.mxu0
      %v3256 = vadd.f32 %v3167, %v3255
      %3257 = vmatmul.bf16.gmra.mxu0 %v1126
      %v3258 = vpop.f32.mrf.mxu0
      %v3259 = vadd.f32 %v3170, %v3258
      %v3260 = vpop.f32.mrf.mxu0
      %v3261 = vadd.f32 %v3172, %v3260
      %3262 = vmatmul.bf16.gmra.mxu0 %v1133
      %v3263 = vpop.f32.mrf.mxu0
      %v3264 = vadd.f32 %v3175, %v3263
      %v3265 = vpop.f32.mrf.mxu0
      %v3266 = vadd.f32 %v3177, %v3265
      %3267 = vmatmul.bf16.gmra.mxu0 %v1140
      %v3268 = vpop.f32.mrf.mxu0
      %v3269 = vadd.f32 %v3180, %v3268
      %v3270 = vpop.f32.mrf.mxu0
      %v3271 = vadd.f32 %v3182, %v3270
      %3272 = vmatmul.bf16.gmra.mxu0 %v1147
      %v3273 = vpop.f32.mrf.mxu0
      %v3274 = vadd.f32 %v3185, %v3273
      %v3275 = vpop.f32.mrf.mxu0
      %v3276 = vadd.f32 %v3187, %v3275
      %3277 = vmatmul.bf16.gmra.mxu0 %v1154
      %v3278 = vpop.f32.mrf.mxu0
      %v3279 = vadd.f32 %v3190, %v3278
      %v3280 = vpop.f32.mrf.mxu0
      %v3281 = vadd.f32 %v3192, %v3280
      %3282 = vmatmul.bf16.gmra.mxu0 %v1161
      %v3283 = vpop.f32.mrf.mxu0
      %v3284 = vadd.f32 %v3195, %v3283
      %v3285 = vpop.f32.mrf.mxu0
      %v3286 = vadd.f32 %v3197, %v3285
      %3287 = vdwg.mxu0
      %3288 = vmatpush.bf16.msra.mxu0 %v2075
      %3289 = vmatpush.bf16.msra.mxu0 %v2071
      %3290 = vmatpush.bf16.msra.mxu0 %v2067
      %3291 = vmatpush.bf16.msra.mxu0 %v2063
      %3292 = vmatpush.bf16.msra.mxu0 %v2059
      %3293 = vmatpush.bf16.msra.mxu0 %v2055
      %3294 = vmatpush.bf16.msra.mxu0 %v2051
      %3295 = vmatpush.bf16.msra.mxu0 %v2047
      %3296 = vmatmul.bf16.gmra.mxu0 %v1057
      %v3297 = vpop.f32.mrf.mxu0
      %v3298 = vadd.f32 %v3209, %v3297
      %v3299 = vpop.f32.mrf.mxu0
      %v3300 = vadd.f32 %v3211, %v3299
      %3301 = vmatmul.bf16.gmra.mxu0 %v1064
      %v3302 = vpop.f32.mrf.mxu0
      %v3303 = vadd.f32 %v3214, %v3302
      %v3304 = vpop.f32.mrf.mxu0
      %v3305 = vadd.f32 %v3216, %v3304
      %3306 = vmatmul.bf16.gmra.mxu0 %v1071
      %v3307 = vpop.f32.mrf.mxu0
      %v3308 = vadd.f32 %v3219, %v3307
      %v3309 = vpop.f32.mrf.mxu0
      %v3310 = vadd.f32 %v3221, %v3309
      %3311 = vmatmul.bf16.gmra.mxu0 %v1078
      %v3312 = vpop.f32.mrf.mxu0
      %v3313 = vadd.f32 %v3224, %v3312
      %v3314 = vpop.f32.mrf.mxu0
      %v3315 = vadd.f32 %v3226, %v3314
      %3316 = vmatmul.bf16.gmra.mxu0 %v1085
      %v3317 = vpop.f32.mrf.mxu0
      %v3318 = vadd.f32 %v3229, %v3317
      %v3319 = vpop.f32.mrf.mxu0
      %v3320 = vadd.f32 %v3231, %v3319
      %3321 = vmatmul.bf16.gmra.mxu0 %v1092
      %v3322 = vpop.f32.mrf.mxu0
      %v3323 = vadd.f32 %v3234, %v3322
      %v3324 = vpop.f32.mrf.mxu0
      %v3325 = vadd.f32 %v3236, %v3324
      %3326 = vmatmul.bf16.gmra.mxu0 %v1099
      %v3327 = vpop.f32.mrf.mxu0
      %v3328 = vadd.f32 %v3239, %v3327
      %v3329 = vpop.f32.mrf.mxu0
      %v3330 = vadd.f32 %v3241, %v3329
      %3331 = vmatmul.bf16.gmra.mxu0 %v1106
      %v3332 = vpop.f32.mrf.mxu0
      %v3333 = vadd.f32 %v3244, %v3332
      %v3334 = vpop.f32.mrf.mxu0
      %v3335 = vadd.f32 %v3246, %v3334
      %3336 = vmatmul.bf16.gmra.mxu0 %v1113
      %v3337 = vpop.f32.mrf.mxu0
      %v3338 = vadd.f32 %v3249, %v3337
      %v3339 = vpop.f32.mrf.mxu0
      %v3340 = vadd.f32 %v3251, %v3339
      %3341 = vmatmul.bf16.gmra.mxu0 %v1120
      %v3342 = vpop.f32.mrf.mxu0
      %v3343 = vadd.f32 %v3254, %v3342
      %v3344 = vpop.f32.mrf.mxu0
      %v3345 = vadd.f32 %v3256, %v3344
      %3346 = vmatmul.bf16.gmra.mxu0 %v1127
      %v3347 = vpop.f32.mrf.mxu0
      %v3348 = vadd.f32 %v3259, %v3347
      %v3349 = vpop.f32.mrf.mxu0
      %v3350 = vadd.f32 %v3261, %v3349
      %3351 = vmatmul.bf16.gmra.mxu0 %v1134
      %v3352 = vpop.f32.mrf.mxu0
      %v3353 = vadd.f32 %v3264, %v3352
      %v3354 = vpop.f32.mrf.mxu0
      %v3355 = vadd.f32 %v3266, %v3354
      %3356 = vmatmul.bf16.gmra.mxu0 %v1141
      %v3357 = vpop.f32.mrf.mxu0
      %v3358 = vadd.f32 %v3269, %v3357
      %v3359 = vpop.f32.mrf.mxu0
      %v3360 = vadd.f32 %v3271, %v3359
      %3361 = vmatmul.bf16.gmra.mxu0 %v1148
      %v3362 = vpop.f32.mrf.mxu0
      %v3363 = vadd.f32 %v3274, %v3362
      %v3364 = vpop.f32.mrf.mxu0
      %v3365 = vadd.f32 %v3276, %v3364
      %3366 = vmatmul.bf16.gmra.mxu0 %v1155
      %v3367 = vpop.f32.mrf.mxu0
      %v3368 = vadd.f32 %v3279, %v3367
      %v3369 = vpop.f32.mrf.mxu0
      %v3370 = vadd.f32 %v3281, %v3369
      %3371 = vmatmul.bf16.gmra.mxu0 %v1162
      %v3372 = vpop.f32.mrf.mxu0
      %v3373 = vadd.f32 %v3284, %v3372
      %v3374 = vpop.f32.mrf.mxu0
      %v3375 = vadd.f32 %v3286, %v3374
      %3376 = vdwg.mxu0
      %3377 = vmatpush.bf16.msra.mxu0 %v2107
      %3378 = vmatpush.bf16.msra.mxu0 %v2103
      %3379 = vmatpush.bf16.msra.mxu0 %v2099
      %3380 = vmatpush.bf16.msra.mxu0 %v2095
      %3381 = vmatpush.bf16.msra.mxu0 %v2091
      %3382 = vmatpush.bf16.msra.mxu0 %v2087
      %3383 = vmatpush.bf16.msra.mxu0 %v2083
      %3384 = vmatpush.bf16.msra.mxu0 %v2079
      %3385 = vmatmul.bf16.gmra.mxu0 %v1058
      %v3386 = vpop.f32.mrf.mxu0
      %v3387 = vadd.f32 %v3298, %v3386
      %v3388 = vpop.f32.mrf.mxu0
      %v3389 = vadd.f32 %v3300, %v3388
      %3390 = vmatmul.bf16.gmra.mxu0 %v1065
      %v3391 = vpop.f32.mrf.mxu0
      %v3392 = vadd.f32 %v3303, %v3391
      %v3393 = vpop.f32.mrf.mxu0
      %v3394 = vadd.f32 %v3305, %v3393
      %3395 = vmatmul.bf16.gmra.mxu0 %v1072
      %v3396 = vpop.f32.mrf.mxu0
      %v3397 = vadd.f32 %v3308, %v3396
      %v3398 = vpop.f32.mrf.mxu0
      %v3399 = vadd.f32 %v3310, %v3398
      %3400 = vmatmul.bf16.gmra.mxu0 %v1079
      %v3401 = vpop.f32.mrf.mxu0
      %v3402 = vadd.f32 %v3313, %v3401
      %v3403 = vpop.f32.mrf.mxu0
      %v3404 = vadd.f32 %v3315, %v3403
      %3405 = vmatmul.bf16.gmra.mxu0 %v1086
      %v3406 = vpop.f32.mrf.mxu0
      %v3407 = vadd.f32 %v3318, %v3406
      %v3408 = vpop.f32.mrf.mxu0
      %v3409 = vadd.f32 %v3320, %v3408
      %3410 = vmatmul.bf16.gmra.mxu0 %v1093
      %v3411 = vpop.f32.mrf.mxu0
      %v3412 = vadd.f32 %v3323, %v3411
      %v3413 = vpop.f32.mrf.mxu0
      %v3414 = vadd.f32 %v3325, %v3413
      %3415 = vmatmul.bf16.gmra.mxu0 %v1100
      %v3416 = vpop.f32.mrf.mxu0
      %v3417 = vadd.f32 %v3328, %v3416
      %v3418 = vpop.f32.mrf.mxu0
      %v3419 = vadd.f32 %v3330, %v3418
      %3420 = vmatmul.bf16.gmra.mxu0 %v1107
      %v3421 = vpop.f32.mrf.mxu0
      %v3422 = vadd.f32 %v3333, %v3421
      %v3423 = vpop.f32.mrf.mxu0
      %v3424 = vadd.f32 %v3335, %v3423
      %3425 = vmatmul.bf16.gmra.mxu0 %v1114
      %v3426 = vpop.f32.mrf.mxu0
      %v3427 = vadd.f32 %v3338, %v3426
      %v3428 = vpop.f32.mrf.mxu0
      %v3429 = vadd.f32 %v3340, %v3428
      %3430 = vmatmul.bf16.gmra.mxu0 %v1121
      %v3431 = vpop.f32.mrf.mxu0
      %v3432 = vadd.f32 %v3343, %v3431
      %v3433 = vpop.f32.mrf.mxu0
      %v3434 = vadd.f32 %v3345, %v3433
      %3435 = vmatmul.bf16.gmra.mxu0 %v1128
      %v3436 = vpop.f32.mrf.mxu0
      %v3437 = vadd.f32 %v3348, %v3436
      %v3438 = vpop.f32.mrf.mxu0
      %v3439 = vadd.f32 %v3350, %v3438
      %3440 = vmatmul.bf16.gmra.mxu0 %v1135
      %v3441 = vpop.f32.mrf.mxu0
      %v3442 = vadd.f32 %v3353, %v3441
      %v3443 = vpop.f32.mrf.mxu0
      %v3444 = vadd.f32 %v3355, %v3443
      %3445 = vmatmul.bf16.gmra.mxu0 %v1142
      %v3446 = vpop.f32.mrf.mxu0
      %v3447 = vadd.f32 %v3358, %v3446
      %v3448 = vpop.f32.mrf.mxu0
      %v3449 = vadd.f32 %v3360, %v3448
      %3450 = vmatmul.bf16.gmra.mxu0 %v1149
      %v3451 = vpop.f32.mrf.mxu0
      %v3452 = vadd.f32 %v3363, %v3451
      %v3453 = vpop.f32.mrf.mxu0
      %v3454 = vadd.f32 %v3365, %v3453
      %3455 = vmatmul.bf16.gmra.mxu0 %v1156
      %v3456 = vpop.f32.mrf.mxu0
      %v3457 = vadd.f32 %v3368, %v3456
      %v3458 = vpop.f32.mrf.mxu0
      %v3459 = vadd.f32 %v3370, %v3458
      %3460 = vmatmul.bf16.gmra.mxu0 %v1163
      %v3461 = vpop.f32.mrf.mxu0
      %v3462 = vadd.f32 %v3373, %v3461
      %v3463 = vpop.f32.mrf.mxu0
      %v3464 = vadd.f32 %v3375, %v3463
      %3465 = vdwg.mxu0
      %3466 = vmatpush.bf16.msra.mxu0 %v2139
      %3467 = vmatpush.bf16.msra.mxu0 %v2135
      %3468 = vmatpush.bf16.msra.mxu0 %v2131
      %3469 = vmatpush.bf16.msra.mxu0 %v2127
      %3470 = vmatpush.bf16.msra.mxu0 %v2123
      %3471 = vmatpush.bf16.msra.mxu0 %v2119
      %3472 = vmatpush.bf16.msra.mxu0 %v2115
      %3473 = vmatpush.bf16.msra.mxu0 %v2111
      %3474 = vmatmul.bf16.gmra.mxu0 %v1059
      %v3475 = vpop.f32.mrf.mxu0
      %v3476 = vadd.f32 %v3387, %v3475
      %v3477 = vpop.f32.mrf.mxu0
      %v3478 = vadd.f32 %v3389, %v3477
      %3479 = vmatmul.bf16.gmra.mxu0 %v1066
      %v3480 = vpop.f32.mrf.mxu0
      %v3481 = vadd.f32 %v3392, %v3480
      %v3482 = vpop.f32.mrf.mxu0
      %v3483 = vadd.f32 %v3394, %v3482
      %3484 = vmatmul.bf16.gmra.mxu0 %v1073
      %v3485 = vpop.f32.mrf.mxu0
      %v3486 = vadd.f32 %v3397, %v3485
      %v3487 = vpop.f32.mrf.mxu0
      %v3488 = vadd.f32 %v3399, %v3487
      %3489 = vmatmul.bf16.gmra.mxu0 %v1080
      %v3490 = vpop.f32.mrf.mxu0
      %v3491 = vadd.f32 %v3402, %v3490
      %v3492 = vpop.f32.mrf.mxu0
      %v3493 = vadd.f32 %v3404, %v3492
      %3494 = vmatmul.bf16.gmra.mxu0 %v1087
      %v3495 = vpop.f32.mrf.mxu0
      %v3496 = vadd.f32 %v3407, %v3495
      %v3497 = vpop.f32.mrf.mxu0
      %v3498 = vadd.f32 %v3409, %v3497
      %3499 = vmatmul.bf16.gmra.mxu0 %v1094
      %v3500 = vpop.f32.mrf.mxu0
      %v3501 = vadd.f32 %v3412, %v3500
      %v3502 = vpop.f32.mrf.mxu0
      %v3503 = vadd.f32 %v3414, %v3502
      %3504 = vmatmul.bf16.gmra.mxu0 %v1101
      %v3505 = vpop.f32.mrf.mxu0
      %v3506 = vadd.f32 %v3417, %v3505
      %v3507 = vpop.f32.mrf.mxu0
      %v3508 = vadd.f32 %v3419, %v3507
      %3509 = vmatmul.bf16.gmra.mxu0 %v1108
      %v3510 = vpop.f32.mrf.mxu0
      %v3511 = vadd.f32 %v3422, %v3510
      %v3512 = vpop.f32.mrf.mxu0
      %v3513 = vadd.f32 %v3424, %v3512
      %3514 = vmatmul.bf16.gmra.mxu0 %v1115
      %v3515 = vpop.f32.mrf.mxu0
      %v3516 = vadd.f32 %v3427, %v3515
      %v3517 = vpop.f32.mrf.mxu0
      %v3518 = vadd.f32 %v3429, %v3517
      %3519 = vmatmul.bf16.gmra.mxu0 %v1122
      %v3520 = vpop.f32.mrf.mxu0
      %v3521 = vadd.f32 %v3432, %v3520
      %v3522 = vpop.f32.mrf.mxu0
      %v3523 = vadd.f32 %v3434, %v3522
      %3524 = vmatmul.bf16.gmra.mxu0 %v1129
      %v3525 = vpop.f32.mrf.mxu0
      %v3526 = vadd.f32 %v3437, %v3525
      %v3527 = vpop.f32.mrf.mxu0
      %v3528 = vadd.f32 %v3439, %v3527
      %3529 = vmatmul.bf16.gmra.mxu0 %v1136
      %v3530 = vpop.f32.mrf.mxu0
      %v3531 = vadd.f32 %v3442, %v3530
      %v3532 = vpop.f32.mrf.mxu0
      %v3533 = vadd.f32 %v3444, %v3532
      %3534 = vmatmul.bf16.gmra.mxu0 %v1143
      %v3535 = vpop.f32.mrf.mxu0
      %v3536 = vadd.f32 %v3447, %v3535
      %v3537 = vpop.f32.mrf.mxu0
      %v3538 = vadd.f32 %v3449, %v3537
      %3539 = vmatmul.bf16.gmra.mxu0 %v1150
      %v3540 = vpop.f32.mrf.mxu0
      %v3541 = vadd.f32 %v3452, %v3540
      %v3542 = vpop.f32.mrf.mxu0
      %v3543 = vadd.f32 %v3454, %v3542
      %3544 = vmatmul.bf16.gmra.mxu0 %v1157
      %v3545 = vpop.f32.mrf.mxu0
      %v3546 = vadd.f32 %v3457, %v3545
      %v3547 = vpop.f32.mrf.mxu0
      %v3548 = vadd.f32 %v3459, %v3547
      %3549 = vmatmul.bf16.gmra.mxu0 %v1164
      %v3550 = vpop.f32.mrf.mxu0
      %v3551 = vadd.f32 %v3462, %v3550
      %v3552 = vpop.f32.mrf.mxu0
      %v3553 = vadd.f32 %v3464, %v3552
      %3554 = vdwg.mxu0
      %3555 = vmatpush.bf16.msra.mxu0 %v2171
      %3556 = vmatpush.bf16.msra.mxu0 %v2167
      %3557 = vmatpush.bf16.msra.mxu0 %v2163
      %3558 = vmatpush.bf16.msra.mxu0 %v2159
      %3559 = vmatpush.bf16.msra.mxu0 %v2155
      %3560 = vmatpush.bf16.msra.mxu0 %v2151
      %3561 = vmatpush.bf16.msra.mxu0 %v2147
      %3562 = vmatpush.bf16.msra.mxu0 %v2143
      %3563 = vmatmul.bf16.gmra.mxu0 %v1060
      %v3564 = vpop.f32.mrf.mxu0
      %v3565 = vadd.f32 %v3476, %v3564
      %v3566 = vpop.f32.mrf.mxu0
      %v3567 = vadd.f32 %v3478, %v3566
      %3568 = vmatmul.bf16.gmra.mxu0 %v1067
      %v3569 = vpop.f32.mrf.mxu0
      %v3570 = vadd.f32 %v3481, %v3569
      %v3571 = vpop.f32.mrf.mxu0
      %v3572 = vadd.f32 %v3483, %v3571
      %3573 = vmatmul.bf16.gmra.mxu0 %v1074
      %v3574 = vpop.f32.mrf.mxu0
      %v3575 = vadd.f32 %v3486, %v3574
      %v3576 = vpop.f32.mrf.mxu0
      %v3577 = vadd.f32 %v3488, %v3576
      %3578 = vmatmul.bf16.gmra.mxu0 %v1081
      %v3579 = vpop.f32.mrf.mxu0
      %v3580 = vadd.f32 %v3491, %v3579
      %v3581 = vpop.f32.mrf.mxu0
      %v3582 = vadd.f32 %v3493, %v3581
      %3583 = vmatmul.bf16.gmra.mxu0 %v1088
      %v3584 = vpop.f32.mrf.mxu0
      %v3585 = vadd.f32 %v3496, %v3584
      %v3586 = vpop.f32.mrf.mxu0
      %v3587 = vadd.f32 %v3498, %v3586
      %3588 = vmatmul.bf16.gmra.mxu0 %v1095
      %v3589 = vpop.f32.mrf.mxu0
      %v3590 = vadd.f32 %v3501, %v3589
      %v3591 = vpop.f32.mrf.mxu0
      %v3592 = vadd.f32 %v3503, %v3591
      %3593 = vmatmul.bf16.gmra.mxu0 %v1102
      %v3594 = vpop.f32.mrf.mxu0
      %v3595 = vadd.f32 %v3506, %v3594
      %v3596 = vpop.f32.mrf.mxu0
      %v3597 = vadd.f32 %v3508, %v3596
      %3598 = vmatmul.bf16.gmra.mxu0 %v1109
      %v3599 = vpop.f32.mrf.mxu0
      %v3600 = vadd.f32 %v3511, %v3599
      %v3601 = vpop.f32.mrf.mxu0
      %v3602 = vadd.f32 %v3513, %v3601
      %3603 = vmatmul.bf16.gmra.mxu0 %v1116
      %v3604 = vpop.f32.mrf.mxu0
      %v3605 = vadd.f32 %v3516, %v3604
      %v3606 = vpop.f32.mrf.mxu0
      %v3607 = vadd.f32 %v3518, %v3606
      %3608 = vmatmul.bf16.gmra.mxu0 %v1123
      %v3609 = vpop.f32.mrf.mxu0
      %v3610 = vadd.f32 %v3521, %v3609
      %v3611 = vpop.f32.mrf.mxu0
      %v3612 = vadd.f32 %v3523, %v3611
      %3613 = vmatmul.bf16.gmra.mxu0 %v1130
      %v3614 = vpop.f32.mrf.mxu0
      %v3615 = vadd.f32 %v3526, %v3614
      %v3616 = vpop.f32.mrf.mxu0
      %v3617 = vadd.f32 %v3528, %v3616
      %3618 = vmatmul.bf16.gmra.mxu0 %v1137
      %v3619 = vpop.f32.mrf.mxu0
      %v3620 = vadd.f32 %v3531, %v3619
      %v3621 = vpop.f32.mrf.mxu0
      %v3622 = vadd.f32 %v3533, %v3621
      %3623 = vmatmul.bf16.gmra.mxu0 %v1144
      %v3624 = vpop.f32.mrf.mxu0
      %v3625 = vadd.f32 %v3536, %v3624
      %v3626 = vpop.f32.mrf.mxu0
      %v3627 = vadd.f32 %v3538, %v3626
      %3628 = vmatmul.bf16.gmra.mxu0 %v1151
      %v3629 = vpop.f32.mrf.mxu0
      %v3630 = vadd.f32 %v3541, %v3629
      %v3631 = vpop.f32.mrf.mxu0
      %v3632 = vadd.f32 %v3543, %v3631
      %3633 = vmatmul.bf16.gmra.mxu0 %v1158
      %v3634 = vpop.f32.mrf.mxu0
      %v3635 = vadd.f32 %v3546, %v3634
      %v3636 = vpop.f32.mrf.mxu0
      %v3637 = vadd.f32 %v3548, %v3636
      %3638 = vmatmul.bf16.gmra.mxu0 %v1165
      %v3639 = vpop.f32.mrf.mxu0
      %v3640 = vadd.f32 %v3551, %v3639
      %v3641 = vpop.f32.mrf.mxu0
      %v3642 = vadd.f32 %v3553, %v3641
      %3643 = vdwg.mxu0
      %3644 = vmatpush.bf16.msra.mxu0 %v1980
      %3645 = vmatpush.bf16.msra.mxu0 %v1976
      %3646 = vmatpush.bf16.msra.mxu0 %v1972
      %3647 = vmatpush.bf16.msra.mxu0 %v1968
      %3648 = vmatpush.bf16.msra.mxu0 %v1964
      %3649 = vmatpush.bf16.msra.mxu0 %v1960
      %3650 = vmatpush.bf16.msra.mxu0 %v1956
      %3651 = vmatpush.bf16.msra.mxu0 %v1952
      %3652 = vmatmul.bf16.gmra.mxu0 %v1054
      %v3653 = vpop.f32.mrf.mxu0
      %v3654 = vadd.f32 %v696, %v3653
      %v3655 = vpop.f32.mrf.mxu0
      %v3656 = vadd.f32 %v696, %v3655
      %3657 = vmatmul.bf16.gmra.mxu0 %v1061
      %v3658 = vpop.f32.mrf.mxu0
      %v3659 = vadd.f32 %v696, %v3658
      %v3660 = vpop.f32.mrf.mxu0
      %v3661 = vadd.f32 %v696, %v3660
      %3662 = vmatmul.bf16.gmra.mxu0 %v1068
      %v3663 = vpop.f32.mrf.mxu0
      %v3664 = vadd.f32 %v696, %v3663
      %v3665 = vpop.f32.mrf.mxu0
      %v3666 = vadd.f32 %v696, %v3665
      %3667 = vmatmul.bf16.gmra.mxu0 %v1075
      %v3668 = vpop.f32.mrf.mxu0
      %v3669 = vadd.f32 %v696, %v3668
      %v3670 = vpop.f32.mrf.mxu0
      %v3671 = vadd.f32 %v696, %v3670
      %3672 = vmatmul.bf16.gmra.mxu0 %v1082
      %v3673 = vpop.f32.mrf.mxu0
      %v3674 = vadd.f32 %v696, %v3673
      %v3675 = vpop.f32.mrf.mxu0
      %v3676 = vadd.f32 %v696, %v3675
      %3677 = vmatmul.bf16.gmra.mxu0 %v1089
      %v3678 = vpop.f32.mrf.mxu0
      %v3679 = vadd.f32 %v696, %v3678
      %v3680 = vpop.f32.mrf.mxu0
      %v3681 = vadd.f32 %v696, %v3680
      %3682 = vmatmul.bf16.gmra.mxu0 %v1096
      %v3683 = vpop.f32.mrf.mxu0
      %v3684 = vadd.f32 %v696, %v3683
      %v3685 = vpop.f32.mrf.mxu0
      %v3686 = vadd.f32 %v696, %v3685
      %3687 = vmatmul.bf16.gmra.mxu0 %v1103
      %v3688 = vpop.f32.mrf.mxu0
      %v3689 = vadd.f32 %v696, %v3688
      %v3690 = vpop.f32.mrf.mxu0
      %v3691 = vadd.f32 %v696, %v3690
      %3692 = vmatmul.bf16.gmra.mxu0 %v1110
      %v3693 = vpop.f32.mrf.mxu0
      %v3694 = vadd.f32 %v696, %v3693
      %v3695 = vpop.f32.mrf.mxu0
      %v3696 = vadd.f32 %v696, %v3695
      %3697 = vmatmul.bf16.gmra.mxu0 %v1117
      %v3698 = vpop.f32.mrf.mxu0
      %v3699 = vadd.f32 %v696, %v3698
      %v3700 = vpop.f32.mrf.mxu0
      %v3701 = vadd.f32 %v696, %v3700
      %3702 = vmatmul.bf16.gmra.mxu0 %v1124
      %v3703 = vpop.f32.mrf.mxu0
      %v3704 = vadd.f32 %v696, %v3703
      %v3705 = vpop.f32.mrf.mxu0
      %v3706 = vadd.f32 %v696, %v3705
      %3707 = vmatmul.bf16.gmra.mxu0 %v1131
      %v3708 = vpop.f32.mrf.mxu0
      %v3709 = vadd.f32 %v696, %v3708
      %v3710 = vpop.f32.mrf.mxu0
      %v3711 = vadd.f32 %v696, %v3710
      %3712 = vmatmul.bf16.gmra.mxu0 %v1138
      %v3713 = vpop.f32.mrf.mxu0
      %v3714 = vadd.f32 %v696, %v3713
      %v3715 = vpop.f32.mrf.mxu0
      %v3716 = vadd.f32 %v696, %v3715
      %3717 = vmatmul.bf16.gmra.mxu0 %v1145
      %v3718 = vpop.f32.mrf.mxu0
      %v3719 = vadd.f32 %v696, %v3718
      %v3720 = vpop.f32.mrf.mxu0
      %v3721 = vadd.f32 %v696, %v3720
      %3722 = vmatmul.bf16.gmra.mxu0 %v1152
      %v3723 = vpop.f32.mrf.mxu0
      %v3724 = vadd.f32 %v696, %v3723
      %v3725 = vpop.f32.mrf.mxu0
      %v3726 = vadd.f32 %v696, %v3725
      %3727 = vmatmul.bf16.gmra.mxu0 %v1159
      %v3728 = vpop.f32.mrf.mxu0
      %v3729 = vadd.f32 %v696, %v3728
      %v3730 = vpop.f32.mrf.mxu0
      %v3731 = vadd.f32 %v696, %v3730
      %3732 = vdwg.mxu0
      %3733 = vmatpush.bf16.msra.mxu0 %v2012
      %3734 = vmatpush.bf16.msra.mxu0 %v2008
      %3735 = vmatpush.bf16.msra.mxu0 %v2004
      %3736 = vmatpush.bf16.msra.mxu0 %v2000
      %3737 = vmatpush.bf16.msra.mxu0 %v1996
      %3738 = vmatpush.bf16.msra.mxu0 %v1992
      %3739 = vmatpush.bf16.msra.mxu0 %v1988
      %3740 = vmatpush.bf16.msra.mxu0 %v1984
      %3741 = vmatmul.bf16.gmra.mxu0 %v1055
      %v3742 = vpop.f32.mrf.mxu0
      %v3743 = vadd.f32 %v3654, %v3742
      %v3744 = vpop.f32.mrf.mxu0
      %v3745 = vadd.f32 %v3656, %v3744
      %3746 = vmatmul.bf16.gmra.mxu0 %v1062
      %v3747 = vpop.f32.mrf.mxu0
      %v3748 = vadd.f32 %v3659, %v3747
      %v3749 = vpop.f32.mrf.mxu0
      %v3750 = vadd.f32 %v3661, %v3749
      %3751 = vmatmul.bf16.gmra.mxu0 %v1069
      %v3752 = vpop.f32.mrf.mxu0
      %v3753 = vadd.f32 %v3664, %v3752
      %v3754 = vpop.f32.mrf.mxu0
      %v3755 = vadd.f32 %v3666, %v3754
      %3756 = vmatmul.bf16.gmra.mxu0 %v1076
      %v3757 = vpop.f32.mrf.mxu0
      %v3758 = vadd.f32 %v3669, %v3757
      %v3759 = vpop.f32.mrf.mxu0
      %v3760 = vadd.f32 %v3671, %v3759
      %3761 = vmatmul.bf16.gmra.mxu0 %v1083
      %v3762 = vpop.f32.mrf.mxu0
      %v3763 = vadd.f32 %v3674, %v3762
      %v3764 = vpop.f32.mrf.mxu0
      %v3765 = vadd.f32 %v3676, %v3764
      %3766 = vmatmul.bf16.gmra.mxu0 %v1090
      %v3767 = vpop.f32.mrf.mxu0
      %v3768 = vadd.f32 %v3679, %v3767
      %v3769 = vpop.f32.mrf.mxu0
      %v3770 = vadd.f32 %v3681, %v3769
      %3771 = vmatmul.bf16.gmra.mxu0 %v1097
      %v3772 = vpop.f32.mrf.mxu0
      %v3773 = vadd.f32 %v3684, %v3772
      %v3774 = vpop.f32.mrf.mxu0
      %v3775 = vadd.f32 %v3686, %v3774
      %3776 = vmatmul.bf16.gmra.mxu0 %v1104
      %v3777 = vpop.f32.mrf.mxu0
      %v3778 = vadd.f32 %v3689, %v3777
      %v3779 = vpop.f32.mrf.mxu0
      %v3780 = vadd.f32 %v3691, %v3779
      %3781 = vmatmul.bf16.gmra.mxu0 %v1111
      %v3782 = vpop.f32.mrf.mxu0
      %v3783 = vadd.f32 %v3694, %v3782
      %v3784 = vpop.f32.mrf.mxu0
      %v3785 = vadd.f32 %v3696, %v3784
      %3786 = vmatmul.bf16.gmra.mxu0 %v1118
      %v3787 = vpop.f32.mrf.mxu0
      %v3788 = vadd.f32 %v3699, %v3787
      %v3789 = vpop.f32.mrf.mxu0
      %v3790 = vadd.f32 %v3701, %v3789
      %3791 = vmatmul.bf16.gmra.mxu0 %v1125
      %v3792 = vpop.f32.mrf.mxu0
      %v3793 = vadd.f32 %v3704, %v3792
      %v3794 = vpop.f32.mrf.mxu0
      %v3795 = vadd.f32 %v3706, %v3794
      %3796 = vmatmul.bf16.gmra.mxu0 %v1132
      %v3797 = vpop.f32.mrf.mxu0
      %v3798 = vadd.f32 %v3709, %v3797
      %v3799 = vpop.f32.mrf.mxu0
      %v3800 = vadd.f32 %v3711, %v3799
      %3801 = vmatmul.bf16.gmra.mxu0 %v1139
      %v3802 = vpop.f32.mrf.mxu0
      %v3803 = vadd.f32 %v3714, %v3802
      %v3804 = vpop.f32.mrf.mxu0
      %v3805 = vadd.f32 %v3716, %v3804
      %3806 = vmatmul.bf16.gmra.mxu0 %v1146
      %v3807 = vpop.f32.mrf.mxu0
      %v3808 = vadd.f32 %v3719, %v3807
      %v3809 = vpop.f32.mrf.mxu0
      %v3810 = vadd.f32 %v3721, %v3809
      %3811 = vmatmul.bf16.gmra.mxu0 %v1153
      %v3812 = vpop.f32.mrf.mxu0
      %v3813 = vadd.f32 %v3724, %v3812
      %v3814 = vpop.f32.mrf.mxu0
      %v3815 = vadd.f32 %v3726, %v3814
      %3816 = vmatmul.bf16.gmra.mxu0 %v1160
      %v3817 = vpop.f32.mrf.mxu0
      %v3818 = vadd.f32 %v3729, %v3817
      %v3819 = vpop.f32.mrf.mxu0
      %v3820 = vadd.f32 %v3731, %v3819
      %3821 = vdwg.mxu0
      %3822 = vmatpush.bf16.msra.mxu0 %v2044
      %3823 = vmatpush.bf16.msra.mxu0 %v2040
      %3824 = vmatpush.bf16.msra.mxu0 %v2036
      %3825 = vmatpush.bf16.msra.mxu0 %v2032
      %3826 = vmatpush.bf16.msra.mxu0 %v2028
      %3827 = vmatpush.bf16.msra.mxu0 %v2024
      %3828 = vmatpush.bf16.msra.mxu0 %v2020
      %3829 = vmatpush.bf16.msra.mxu0 %v2016
      %3830 = vmatmul.bf16.gmra.mxu0 %v1056
      %v3831 = vpop.f32.mrf.mxu0
      %v3832 = vadd.f32 %v3743, %v3831
      %v3833 = vpop.f32.mrf.mxu0
      %v3834 = vadd.f32 %v3745, %v3833
      %3835 = vmatmul.bf16.gmra.mxu0 %v1063
      %v3836 = vpop.f32.mrf.mxu0
      %v3837 = vadd.f32 %v3748, %v3836
      %v3838 = vpop.f32.mrf.mxu0
      %v3839 = vadd.f32 %v3750, %v3838
      %3840 = vmatmul.bf16.gmra.mxu0 %v1070
      %v3841 = vpop.f32.mrf.mxu0
      %v3842 = vadd.f32 %v3753, %v3841
      %v3843 = vpop.f32.mrf.mxu0
      %v3844 = vadd.f32 %v3755, %v3843
      %3845 = vmatmul.bf16.gmra.mxu0 %v1077
      %v3846 = vpop.f32.mrf.mxu0
      %v3847 = vadd.f32 %v3758, %v3846
      %v3848 = vpop.f32.mrf.mxu0
      %v3849 = vadd.f32 %v3760, %v3848
      %3850 = vmatmul.bf16.gmra.mxu0 %v1084
      %v3851 = vpop.f32.mrf.mxu0
      %v3852 = vadd.f32 %v3763, %v3851
      %v3853 = vpop.f32.mrf.mxu0
      %v3854 = vadd.f32 %v3765, %v3853
      %3855 = vmatmul.bf16.gmra.mxu0 %v1091
      %v3856 = vpop.f32.mrf.mxu0
      %v3857 = vadd.f32 %v3768, %v3856
      %v3858 = vpop.f32.mrf.mxu0
      %v3859 = vadd.f32 %v3770, %v3858
      %3860 = vmatmul.bf16.gmra.mxu0 %v1098
      %v3861 = vpop.f32.mrf.mxu0
      %v3862 = vadd.f32 %v3773, %v3861
      %v3863 = vpop.f32.mrf.mxu0
      %v3864 = vadd.f32 %v3775, %v3863
      %3865 = vmatmul.bf16.gmra.mxu0 %v1105
      %v3866 = vpop.f32.mrf.mxu0
      %v3867 = vadd.f32 %v3778, %v3866
      %v3868 = vpop.f32.mrf.mxu0
      %v3869 = vadd.f32 %v3780, %v3868
      %3870 = vmatmul.bf16.gmra.mxu0 %v1112
      %v3871 = vpop.f32.mrf.mxu0
      %v3872 = vadd.f32 %v3783, %v3871
      %v3873 = vpop.f32.mrf.mxu0
      %v3874 = vadd.f32 %v3785, %v3873
      %3875 = vmatmul.bf16.gmra.mxu0 %v1119
      %v3876 = vpop.f32.mrf.mxu0
      %v3877 = vadd.f32 %v3788, %v3876
      %v3878 = vpop.f32.mrf.mxu0
      %v3879 = vadd.f32 %v3790, %v3878
      %3880 = vmatmul.bf16.gmra.mxu0 %v1126
      %v3881 = vpop.f32.mrf.mxu0
      %v3882 = vadd.f32 %v3793, %v3881
      %v3883 = vpop.f32.mrf.mxu0
      %v3884 = vadd.f32 %v3795, %v3883
      %3885 = vmatmul.bf16.gmra.mxu0 %v1133
      %v3886 = vpop.f32.mrf.mxu0
      %v3887 = vadd.f32 %v3798, %v3886
      %v3888 = vpop.f32.mrf.mxu0
      %v3889 = vadd.f32 %v3800, %v3888
      %3890 = vmatmul.bf16.gmra.mxu0 %v1140
      %v3891 = vpop.f32.mrf.mxu0
      %v3892 = vadd.f32 %v3803, %v3891
      %v3893 = vpop.f32.mrf.mxu0
      %v3894 = vadd.f32 %v3805, %v3893
      %3895 = vmatmul.bf16.gmra.mxu0 %v1147
      %v3896 = vpop.f32.mrf.mxu0
      %v3897 = vadd.f32 %v3808, %v3896
      %v3898 = vpop.f32.mrf.mxu0
      %v3899 = vadd.f32 %v3810, %v3898
      %3900 = vmatmul.bf16.gmra.mxu0 %v1154
      %v3901 = vpop.f32.mrf.mxu0
      %v3902 = vadd.f32 %v3813, %v3901
      %v3903 = vpop.f32.mrf.mxu0
      %v3904 = vadd.f32 %v3815, %v3903
      %3905 = vmatmul.bf16.gmra.mxu0 %v1161
      %v3906 = vpop.f32.mrf.mxu0
      %v3907 = vadd.f32 %v3818, %v3906
      %v3908 = vpop.f32.mrf.mxu0
      %v3909 = vadd.f32 %v3820, %v3908
      %3910 = vdwg.mxu0
      %3911 = vmatpush.bf16.msra.mxu0 %v2076
      %3912 = vmatpush.bf16.msra.mxu0 %v2072
      %3913 = vmatpush.bf16.msra.mxu0 %v2068
      %3914 = vmatpush.bf16.msra.mxu0 %v2064
      %3915 = vmatpush.bf16.msra.mxu0 %v2060
      %3916 = vmatpush.bf16.msra.mxu0 %v2056
      %3917 = vmatpush.bf16.msra.mxu0 %v2052
      %3918 = vmatpush.bf16.msra.mxu0 %v2048
      %3919 = vmatmul.bf16.gmra.mxu0 %v1057
      %v3920 = vpop.f32.mrf.mxu0
      %v3921 = vadd.f32 %v3832, %v3920
      %v3922 = vpop.f32.mrf.mxu0
      %v3923 = vadd.f32 %v3834, %v3922
      %3924 = vmatmul.bf16.gmra.mxu0 %v1064
      %v3925 = vpop.f32.mrf.mxu0
      %v3926 = vadd.f32 %v3837, %v3925
      %v3927 = vpop.f32.mrf.mxu0
      %v3928 = vadd.f32 %v3839, %v3927
      %3929 = vmatmul.bf16.gmra.mxu0 %v1071
      %v3930 = vpop.f32.mrf.mxu0
      %v3931 = vadd.f32 %v3842, %v3930
      %v3932 = vpop.f32.mrf.mxu0
      %v3933 = vadd.f32 %v3844, %v3932
      %3934 = vmatmul.bf16.gmra.mxu0 %v1078
      %v3935 = vpop.f32.mrf.mxu0
      %v3936 = vadd.f32 %v3847, %v3935
      %v3937 = vpop.f32.mrf.mxu0
      %v3938 = vadd.f32 %v3849, %v3937
      %3939 = vmatmul.bf16.gmra.mxu0 %v1085
      %v3940 = vpop.f32.mrf.mxu0
      %v3941 = vadd.f32 %v3852, %v3940
      %v3942 = vpop.f32.mrf.mxu0
      %v3943 = vadd.f32 %v3854, %v3942
      %3944 = vmatmul.bf16.gmra.mxu0 %v1092
      %v3945 = vpop.f32.mrf.mxu0
      %v3946 = vadd.f32 %v3857, %v3945
      %v3947 = vpop.f32.mrf.mxu0
      %v3948 = vadd.f32 %v3859, %v3947
      %3949 = vmatmul.bf16.gmra.mxu0 %v1099
      %v3950 = vpop.f32.mrf.mxu0
      %v3951 = vadd.f32 %v3862, %v3950
      %v3952 = vpop.f32.mrf.mxu0
      %v3953 = vadd.f32 %v3864, %v3952
      %3954 = vmatmul.bf16.gmra.mxu0 %v1106
      %v3955 = vpop.f32.mrf.mxu0
      %v3956 = vadd.f32 %v3867, %v3955
      %v3957 = vpop.f32.mrf.mxu0
      %v3958 = vadd.f32 %v3869, %v3957
      %3959 = vmatmul.bf16.gmra.mxu0 %v1113
      %v3960 = vpop.f32.mrf.mxu0
      %v3961 = vadd.f32 %v3872, %v3960
      %v3962 = vpop.f32.mrf.mxu0
      %v3963 = vadd.f32 %v3874, %v3962
      %3964 = vmatmul.bf16.gmra.mxu0 %v1120
      %v3965 = vpop.f32.mrf.mxu0
      %v3966 = vadd.f32 %v3877, %v3965
      %v3967 = vpop.f32.mrf.mxu0
      %v3968 = vadd.f32 %v3879, %v3967
      %3969 = vmatmul.bf16.gmra.mxu0 %v1127
      %v3970 = vpop.f32.mrf.mxu0
      %v3971 = vadd.f32 %v3882, %v3970
      %v3972 = vpop.f32.mrf.mxu0
      %v3973 = vadd.f32 %v3884, %v3972
      %3974 = vmatmul.bf16.gmra.mxu0 %v1134
      %v3975 = vpop.f32.mrf.mxu0
      %v3976 = vadd.f32 %v3887, %v3975
      %v3977 = vpop.f32.mrf.mxu0
      %v3978 = vadd.f32 %v3889, %v3977
      %3979 = vmatmul.bf16.gmra.mxu0 %v1141
      %v3980 = vpop.f32.mrf.mxu0
      %v3981 = vadd.f32 %v3892, %v3980
      %v3982 = vpop.f32.mrf.mxu0
      %v3983 = vadd.f32 %v3894, %v3982
      %3984 = vmatmul.bf16.gmra.mxu0 %v1148
      %v3985 = vpop.f32.mrf.mxu0
      %v3986 = vadd.f32 %v3897, %v3985
      %v3987 = vpop.f32.mrf.mxu0
      %v3988 = vadd.f32 %v3899, %v3987
      %3989 = vmatmul.bf16.gmra.mxu0 %v1155
      %v3990 = vpop.f32.mrf.mxu0
      %v3991 = vadd.f32 %v3902, %v3990
      %v3992 = vpop.f32.mrf.mxu0
      %v3993 = vadd.f32 %v3904, %v3992
      %3994 = vmatmul.bf16.gmra.mxu0 %v1162
      %v3995 = vpop.f32.mrf.mxu0
      %v3996 = vadd.f32 %v3907, %v3995
      %v3997 = vpop.f32.mrf.mxu0
      %v3998 = vadd.f32 %v3909, %v3997
      %3999 = vdwg.mxu0
      %4000 = vmatpush.bf16.msra.mxu0 %v2108
      %4001 = vmatpush.bf16.msra.mxu0 %v2104
      %4002 = vmatpush.bf16.msra.mxu0 %v2100
      %4003 = vmatpush.bf16.msra.mxu0 %v2096
      %4004 = vmatpush.bf16.msra.mxu0 %v2092
      %4005 = vmatpush.bf16.msra.mxu0 %v2088
      %4006 = vmatpush.bf16.msra.mxu0 %v2084
      %4007 = vmatpush.bf16.msra.mxu0 %v2080
      %4008 = vmatmul.bf16.gmra.mxu0 %v1058
      %v4009 = vpop.f32.mrf.mxu0
      %v4010 = vadd.f32 %v3921, %v4009
      %v4011 = vpop.f32.mrf.mxu0
      %v4012 = vadd.f32 %v3923, %v4011
      %4013 = vmatmul.bf16.gmra.mxu0 %v1065
      %v4014 = vpop.f32.mrf.mxu0
      %v4015 = vadd.f32 %v3926, %v4014
      %v4016 = vpop.f32.mrf.mxu0
      %v4017 = vadd.f32 %v3928, %v4016
      %4018 = vmatmul.bf16.gmra.mxu0 %v1072
      %v4019 = vpop.f32.mrf.mxu0
      %v4020 = vadd.f32 %v3931, %v4019
      %v4021 = vpop.f32.mrf.mxu0
      %v4022 = vadd.f32 %v3933, %v4021
      %4023 = vmatmul.bf16.gmra.mxu0 %v1079
      %v4024 = vpop.f32.mrf.mxu0
      %v4025 = vadd.f32 %v3936, %v4024
      %v4026 = vpop.f32.mrf.mxu0
      %v4027 = vadd.f32 %v3938, %v4026
      %4028 = vmatmul.bf16.gmra.mxu0 %v1086
      %v4029 = vpop.f32.mrf.mxu0
      %v4030 = vadd.f32 %v3941, %v4029
      %v4031 = vpop.f32.mrf.mxu0
      %v4032 = vadd.f32 %v3943, %v4031
      %4033 = vmatmul.bf16.gmra.mxu0 %v1093
      %v4034 = vpop.f32.mrf.mxu0
      %v4035 = vadd.f32 %v3946, %v4034
      %v4036 = vpop.f32.mrf.mxu0
      %v4037 = vadd.f32 %v3948, %v4036
      %4038 = vmatmul.bf16.gmra.mxu0 %v1100
      %v4039 = vpop.f32.mrf.mxu0
      %v4040 = vadd.f32 %v3951, %v4039
      %v4041 = vpop.f32.mrf.mxu0
      %v4042 = vadd.f32 %v3953, %v4041
      %4043 = vmatmul.bf16.gmra.mxu0 %v1107
      %v4044 = vpop.f32.mrf.mxu0
      %v4045 = vadd.f32 %v3956, %v4044
      %v4046 = vpop.f32.mrf.mxu0
      %v4047 = vadd.f32 %v3958, %v4046
      %4048 = vmatmul.bf16.gmra.mxu0 %v1114
      %v4049 = vpop.f32.mrf.mxu0
      %v4050 = vadd.f32 %v3961, %v4049
      %v4051 = vpop.f32.mrf.mxu0
      %v4052 = vadd.f32 %v3963, %v4051
      %4053 = vmatmul.bf16.gmra.mxu0 %v1121
      %v4054 = vpop.f32.mrf.mxu0
      %v4055 = vadd.f32 %v3966, %v4054
      %v4056 = vpop.f32.mrf.mxu0
      %v4057 = vadd.f32 %v3968, %v4056
      %4058 = vmatmul.bf16.gmra.mxu0 %v1128
      %v4059 = vpop.f32.mrf.mxu0
      %v4060 = vadd.f32 %v3971, %v4059
      %v4061 = vpop.f32.mrf.mxu0
      %v4062 = vadd.f32 %v3973, %v4061
      %4063 = vmatmul.bf16.gmra.mxu0 %v1135
      %v4064 = vpop.f32.mrf.mxu0
      %v4065 = vadd.f32 %v3976, %v4064
      %v4066 = vpop.f32.mrf.mxu0
      %v4067 = vadd.f32 %v3978, %v4066
      %4068 = vmatmul.bf16.gmra.mxu0 %v1142
      %v4069 = vpop.f32.mrf.mxu0
      %v4070 = vadd.f32 %v3981, %v4069
      %v4071 = vpop.f32.mrf.mxu0
      %v4072 = vadd.f32 %v3983, %v4071
      %4073 = vmatmul.bf16.gmra.mxu0 %v1149
      %v4074 = vpop.f32.mrf.mxu0
      %v4075 = vadd.f32 %v3986, %v4074
      %v4076 = vpop.f32.mrf.mxu0
      %v4077 = vadd.f32 %v3988, %v4076
      %4078 = vmatmul.bf16.gmra.mxu0 %v1156
      %v4079 = vpop.f32.mrf.mxu0
      %v4080 = vadd.f32 %v3991, %v4079
      %v4081 = vpop.f32.mrf.mxu0
      %v4082 = vadd.f32 %v3993, %v4081
      %4083 = vmatmul.bf16.gmra.mxu0 %v1163
      %v4084 = vpop.f32.mrf.mxu0
      %v4085 = vadd.f32 %v3996, %v4084
      %v4086 = vpop.f32.mrf.mxu0
      %v4087 = vadd.f32 %v3998, %v4086
      %4088 = vdwg.mxu0
      %4089 = vmatpush.bf16.msra.mxu0 %v2140
      %4090 = vmatpush.bf16.msra.mxu0 %v2136
      %4091 = vmatpush.bf16.msra.mxu0 %v2132
      %4092 = vmatpush.bf16.msra.mxu0 %v2128
      %4093 = vmatpush.bf16.msra.mxu0 %v2124
      %4094 = vmatpush.bf16.msra.mxu0 %v2120
      %4095 = vmatpush.bf16.msra.mxu0 %v2116
      %4096 = vmatpush.bf16.msra.mxu0 %v2112
      %4097 = vmatmul.bf16.gmra.mxu0 %v1059
      %v4098 = vpop.f32.mrf.mxu0
      %v4099 = vadd.f32 %v4010, %v4098
      %v4100 = vpop.f32.mrf.mxu0
      %v4101 = vadd.f32 %v4012, %v4100
      %4102 = vmatmul.bf16.gmra.mxu0 %v1066
      %v4103 = vpop.f32.mrf.mxu0
      %v4104 = vadd.f32 %v4015, %v4103
      %v4105 = vpop.f32.mrf.mxu0
      %v4106 = vadd.f32 %v4017, %v4105
      %4107 = vmatmul.bf16.gmra.mxu0 %v1073
      %v4108 = vpop.f32.mrf.mxu0
      %v4109 = vadd.f32 %v4020, %v4108
      %v4110 = vpop.f32.mrf.mxu0
      %v4111 = vadd.f32 %v4022, %v4110
      %4112 = vmatmul.bf16.gmra.mxu0 %v1080
      %v4113 = vpop.f32.mrf.mxu0
      %v4114 = vadd.f32 %v4025, %v4113
      %v4115 = vpop.f32.mrf.mxu0
      %v4116 = vadd.f32 %v4027, %v4115
      %4117 = vmatmul.bf16.gmra.mxu0 %v1087
      %v4118 = vpop.f32.mrf.mxu0
      %v4119 = vadd.f32 %v4030, %v4118
      %v4120 = vpop.f32.mrf.mxu0
      %v4121 = vadd.f32 %v4032, %v4120
      %4122 = vmatmul.bf16.gmra.mxu0 %v1094
      %v4123 = vpop.f32.mrf.mxu0
      %v4124 = vadd.f32 %v4035, %v4123
      %v4125 = vpop.f32.mrf.mxu0
      %v4126 = vadd.f32 %v4037, %v4125
      %4127 = vmatmul.bf16.gmra.mxu0 %v1101
      %v4128 = vpop.f32.mrf.mxu0
      %v4129 = vadd.f32 %v4040, %v4128
      %v4130 = vpop.f32.mrf.mxu0
      %v4131 = vadd.f32 %v4042, %v4130
      %4132 = vmatmul.bf16.gmra.mxu0 %v1108
      %v4133 = vpop.f32.mrf.mxu0
      %v4134 = vadd.f32 %v4045, %v4133
      %v4135 = vpop.f32.mrf.mxu0
      %v4136 = vadd.f32 %v4047, %v4135
      %4137 = vmatmul.bf16.gmra.mxu0 %v1115
      %v4138 = vpop.f32.mrf.mxu0
      %v4139 = vadd.f32 %v4050, %v4138
      %v4140 = vpop.f32.mrf.mxu0
      %v4141 = vadd.f32 %v4052, %v4140
      %4142 = vmatmul.bf16.gmra.mxu0 %v1122
      %v4143 = vpop.f32.mrf.mxu0
      %v4144 = vadd.f32 %v4055, %v4143
      %v4145 = vpop.f32.mrf.mxu0
      %v4146 = vadd.f32 %v4057, %v4145
      %4147 = vmatmul.bf16.gmra.mxu0 %v1129
      %v4148 = vpop.f32.mrf.mxu0
      %v4149 = vadd.f32 %v4060, %v4148
      %v4150 = vpop.f32.mrf.mxu0
      %v4151 = vadd.f32 %v4062, %v4150
      %4152 = vmatmul.bf16.gmra.mxu0 %v1136
      %v4153 = vpop.f32.mrf.mxu0
      %v4154 = vadd.f32 %v4065, %v4153
      %v4155 = vpop.f32.mrf.mxu0
      %v4156 = vadd.f32 %v4067, %v4155
      %4157 = vmatmul.bf16.gmra.mxu0 %v1143
      %v4158 = vpop.f32.mrf.mxu0
      %v4159 = vadd.f32 %v4070, %v4158
      %v4160 = vpop.f32.mrf.mxu0
      %v4161 = vadd.f32 %v4072, %v4160
      %4162 = vmatmul.bf16.gmra.mxu0 %v1150
      %v4163 = vpop.f32.mrf.mxu0
      %v4164 = vadd.f32 %v4075, %v4163
      %v4165 = vpop.f32.mrf.mxu0
      %v4166 = vadd.f32 %v4077, %v4165
      %4167 = vmatmul.bf16.gmra.mxu0 %v1157
      %v4168 = vpop.f32.mrf.mxu0
      %v4169 = vadd.f32 %v4080, %v4168
      %v4170 = vpop.f32.mrf.mxu0
      %v4171 = vadd.f32 %v4082, %v4170
      %4172 = vmatmul.bf16.gmra.mxu0 %v1164
      %v4173 = vpop.f32.mrf.mxu0
      %v4174 = vadd.f32 %v4085, %v4173
      %v4175 = vpop.f32.mrf.mxu0
      %v4176 = vadd.f32 %v4087, %v4175
      %4177 = vdwg.mxu0
      %4178 = vmatpush.bf16.msra.mxu0 %v2172
      %4179 = vmatpush.bf16.msra.mxu0 %v2168
      %4180 = vmatpush.bf16.msra.mxu0 %v2164
      %4181 = vmatpush.bf16.msra.mxu0 %v2160
      %4182 = vmatpush.bf16.msra.mxu0 %v2156
      %4183 = vmatpush.bf16.msra.mxu0 %v2152
      %4184 = vmatpush.bf16.msra.mxu0 %v2148
      %4185 = vmatpush.bf16.msra.mxu0 %v2144
      %4186 = vmatmul.bf16.gmra.mxu0 %v1060
      %v4187 = vpop.f32.mrf.mxu0
      %v4188 = vadd.f32 %v4099, %v4187
      %v4189 = vpop.f32.mrf.mxu0
      %v4190 = vadd.f32 %v4101, %v4189
      %4191 = vmatmul.bf16.gmra.mxu0 %v1067
      %v4192 = vpop.f32.mrf.mxu0
      %v4193 = vadd.f32 %v4104, %v4192
      %v4194 = vpop.f32.mrf.mxu0
      %v4195 = vadd.f32 %v4106, %v4194
      %4196 = vmatmul.bf16.gmra.mxu0 %v1074
      %v4197 = vpop.f32.mrf.mxu0
      %v4198 = vadd.f32 %v4109, %v4197
      %v4199 = vpop.f32.mrf.mxu0
      %v4200 = vadd.f32 %v4111, %v4199
      %4201 = vmatmul.bf16.gmra.mxu0 %v1081
      %v4202 = vpop.f32.mrf.mxu0
      %v4203 = vadd.f32 %v4114, %v4202
      %v4204 = vpop.f32.mrf.mxu0
      %v4205 = vadd.f32 %v4116, %v4204
      %4206 = vmatmul.bf16.gmra.mxu0 %v1088
      %v4207 = vpop.f32.mrf.mxu0
      %v4208 = vadd.f32 %v4119, %v4207
      %v4209 = vpop.f32.mrf.mxu0
      %v4210 = vadd.f32 %v4121, %v4209
      %4211 = vmatmul.bf16.gmra.mxu0 %v1095
      %v4212 = vpop.f32.mrf.mxu0
      %v4213 = vadd.f32 %v4124, %v4212
      %v4214 = vpop.f32.mrf.mxu0
      %v4215 = vadd.f32 %v4126, %v4214
      %4216 = vmatmul.bf16.gmra.mxu0 %v1102
      %v4217 = vpop.f32.mrf.mxu0
      %v4218 = vadd.f32 %v4129, %v4217
      %v4219 = vpop.f32.mrf.mxu0
      %v4220 = vadd.f32 %v4131, %v4219
      %4221 = vmatmul.bf16.gmra.mxu0 %v1109
      %v4222 = vpop.f32.mrf.mxu0
      %v4223 = vadd.f32 %v4134, %v4222
      %v4224 = vpop.f32.mrf.mxu0
      %v4225 = vadd.f32 %v4136, %v4224
      %4226 = vmatmul.bf16.gmra.mxu0 %v1116
      %v4227 = vpop.f32.mrf.mxu0
      %v4228 = vadd.f32 %v4139, %v4227
      %v4229 = vpop.f32.mrf.mxu0
      %v4230 = vadd.f32 %v4141, %v4229
      %4231 = vmatmul.bf16.gmra.mxu0 %v1123
      %v4232 = vpop.f32.mrf.mxu0
      %v4233 = vadd.f32 %v4144, %v4232
      %v4234 = vpop.f32.mrf.mxu0
      %v4235 = vadd.f32 %v4146, %v4234
      %4236 = vmatmul.bf16.gmra.mxu0 %v1130
      %v4237 = vpop.f32.mrf.mxu0
      %v4238 = vadd.f32 %v4149, %v4237
      %v4239 = vpop.f32.mrf.mxu0
      %v4240 = vadd.f32 %v4151, %v4239
      %4241 = vmatmul.bf16.gmra.mxu0 %v1137
      %v4242 = vpop.f32.mrf.mxu0
      %v4243 = vadd.f32 %v4154, %v4242
      %v4244 = vpop.f32.mrf.mxu0
      %v4245 = vadd.f32 %v4156, %v4244
      %4246 = vmatmul.bf16.gmra.mxu0 %v1144
      %v4247 = vpop.f32.mrf.mxu0
      %v4248 = vadd.f32 %v4159, %v4247
      %v4249 = vpop.f32.mrf.mxu0
      %v4250 = vadd.f32 %v4161, %v4249
      %4251 = vmatmul.bf16.gmra.mxu0 %v1151
      %v4252 = vpop.f32.mrf.mxu0
      %v4253 = vadd.f32 %v4164, %v4252
      %v4254 = vpop.f32.mrf.mxu0
      %v4255 = vadd.f32 %v4166, %v4254
      %4256 = vmatmul.bf16.gmra.mxu0 %v1158
      %v4257 = vpop.f32.mrf.mxu0
      %v4258 = vadd.f32 %v4169, %v4257
      %v4259 = vpop.f32.mrf.mxu0
      %v4260 = vadd.f32 %v4171, %v4259
      %4261 = vmatmul.bf16.gmra.mxu0 %v1165
      %v4262 = vpop.f32.mrf.mxu0
      %v4263 = vadd.f32 %v4174, %v4262
      %v4264 = vpop.f32.mrf.mxu0
      %v4265 = vadd.f32 %v4176, %v4264
      %4266 = vdwg.mxu0
      %4267 = vmatpush.bf16.msra.mxu0 %v1981
      %4268 = vmatpush.bf16.msra.mxu0 %v1977
      %4269 = vmatpush.bf16.msra.mxu0 %v1973
      %4270 = vmatpush.bf16.msra.mxu0 %v1969
      %4271 = vmatpush.bf16.msra.mxu0 %v1965
      %4272 = vmatpush.bf16.msra.mxu0 %v1961
      %4273 = vmatpush.bf16.msra.mxu0 %v1957
      %4274 = vmatpush.bf16.msra.mxu0 %v1953
      %4275 = vmatmul.bf16.gmra.mxu0 %v1054
      %v4276 = vpop.f32.mrf.mxu0
      %v4277 = vadd.f32 %v697, %v4276
      %v4278 = vpop.f32.mrf.mxu0
      %v4279 = vadd.f32 %v697, %v4278
      %4280 = vmatmul.bf16.gmra.mxu0 %v1061
      %v4281 = vpop.f32.mrf.mxu0
      %v4282 = vadd.f32 %v697, %v4281
      %v4283 = vpop.f32.mrf.mxu0
      %v4284 = vadd.f32 %v697, %v4283
      %4285 = vmatmul.bf16.gmra.mxu0 %v1068
      %v4286 = vpop.f32.mrf.mxu0
      %v4287 = vadd.f32 %v697, %v4286
      %v4288 = vpop.f32.mrf.mxu0
      %v4289 = vadd.f32 %v697, %v4288
      %4290 = vmatmul.bf16.gmra.mxu0 %v1075
      %v4291 = vpop.f32.mrf.mxu0
      %v4292 = vadd.f32 %v697, %v4291
      %v4293 = vpop.f32.mrf.mxu0
      %v4294 = vadd.f32 %v697, %v4293
      %4295 = vmatmul.bf16.gmra.mxu0 %v1082
      %v4296 = vpop.f32.mrf.mxu0
      %v4297 = vadd.f32 %v697, %v4296
      %v4298 = vpop.f32.mrf.mxu0
      %v4299 = vadd.f32 %v697, %v4298
      %4300 = vmatmul.bf16.gmra.mxu0 %v1089
      %v4301 = vpop.f32.mrf.mxu0
      %v4302 = vadd.f32 %v697, %v4301
      %v4303 = vpop.f32.mrf.mxu0
      %v4304 = vadd.f32 %v697, %v4303
      %4305 = vmatmul.bf16.gmra.mxu0 %v1096
      %v4306 = vpop.f32.mrf.mxu0
      %v4307 = vadd.f32 %v697, %v4306
      %v4308 = vpop.f32.mrf.mxu0
      %v4309 = vadd.f32 %v697, %v4308
      %4310 = vmatmul.bf16.gmra.mxu0 %v1103
      %v4311 = vpop.f32.mrf.mxu0
      %v4312 = vadd.f32 %v697, %v4311
      %v4313 = vpop.f32.mrf.mxu0
      %v4314 = vadd.f32 %v697, %v4313
      %4315 = vmatmul.bf16.gmra.mxu0 %v1110
      %v4316 = vpop.f32.mrf.mxu0
      %v4317 = vadd.f32 %v697, %v4316
      %v4318 = vpop.f32.mrf.mxu0
      %v4319 = vadd.f32 %v697, %v4318
      %4320 = vmatmul.bf16.gmra.mxu0 %v1117
      %v4321 = vpop.f32.mrf.mxu0
      %v4322 = vadd.f32 %v697, %v4321
      %v4323 = vpop.f32.mrf.mxu0
      %v4324 = vadd.f32 %v697, %v4323
      %4325 = vmatmul.bf16.gmra.mxu0 %v1124
      %v4326 = vpop.f32.mrf.mxu0
      %v4327 = vadd.f32 %v697, %v4326
      %v4328 = vpop.f32.mrf.mxu0
      %v4329 = vadd.f32 %v697, %v4328
      %4330 = vmatmul.bf16.gmra.mxu0 %v1131
      %v4331 = vpop.f32.mrf.mxu0
      %v4332 = vadd.f32 %v697, %v4331
      %v4333 = vpop.f32.mrf.mxu0
      %v4334 = vadd.f32 %v697, %v4333
      %4335 = vmatmul.bf16.gmra.mxu0 %v1138
      %v4336 = vpop.f32.mrf.mxu0
      %v4337 = vadd.f32 %v697, %v4336
      %v4338 = vpop.f32.mrf.mxu0
      %v4339 = vadd.f32 %v697, %v4338
      %4340 = vmatmul.bf16.gmra.mxu0 %v1145
      %v4341 = vpop.f32.mrf.mxu0
      %v4342 = vadd.f32 %v697, %v4341
      %v4343 = vpop.f32.mrf.mxu0
      %v4344 = vadd.f32 %v697, %v4343
      %4345 = vmatmul.bf16.gmra.mxu0 %v1152
      %v4346 = vpop.f32.mrf.mxu0
      %v4347 = vadd.f32 %v697, %v4346
      %v4348 = vpop.f32.mrf.mxu0
      %v4349 = vadd.f32 %v697, %v4348
      %4350 = vmatmul.bf16.gmra.mxu0 %v1159
      %v4351 = vpop.f32.mrf.mxu0
      %v4352 = vadd.f32 %v697, %v4351
      %v4353 = vpop.f32.mrf.mxu0
      %v4354 = vadd.f32 %v697, %v4353
      %4355 = vdwg.mxu0
      %4356 = vmatpush.bf16.msra.mxu0 %v2013
      %4357 = vmatpush.bf16.msra.mxu0 %v2009
      %4358 = vmatpush.bf16.msra.mxu0 %v2005
      %4359 = vmatpush.bf16.msra.mxu0 %v2001
      %4360 = vmatpush.bf16.msra.mxu0 %v1997
      %4361 = vmatpush.bf16.msra.mxu0 %v1993
      %4362 = vmatpush.bf16.msra.mxu0 %v1989
      %4363 = vmatpush.bf16.msra.mxu0 %v1985
      %4364 = vmatmul.bf16.gmra.mxu0 %v1055
      %v4365 = vpop.f32.mrf.mxu0
      %v4366 = vadd.f32 %v4277, %v4365
      %v4367 = vpop.f32.mrf.mxu0
      %v4368 = vadd.f32 %v4279, %v4367
      %4369 = vmatmul.bf16.gmra.mxu0 %v1062
      %v4370 = vpop.f32.mrf.mxu0
      %v4371 = vadd.f32 %v4282, %v4370
      %v4372 = vpop.f32.mrf.mxu0
      %v4373 = vadd.f32 %v4284, %v4372
      %4374 = vmatmul.bf16.gmra.mxu0 %v1069
      %v4375 = vpop.f32.mrf.mxu0
      %v4376 = vadd.f32 %v4287, %v4375
      %v4377 = vpop.f32.mrf.mxu0
      %v4378 = vadd.f32 %v4289, %v4377
      %4379 = vmatmul.bf16.gmra.mxu0 %v1076
      %v4380 = vpop.f32.mrf.mxu0
      %v4381 = vadd.f32 %v4292, %v4380
      %v4382 = vpop.f32.mrf.mxu0
      %v4383 = vadd.f32 %v4294, %v4382
      %4384 = vmatmul.bf16.gmra.mxu0 %v1083
      %v4385 = vpop.f32.mrf.mxu0
      %v4386 = vadd.f32 %v4297, %v4385
      %v4387 = vpop.f32.mrf.mxu0
      %v4388 = vadd.f32 %v4299, %v4387
      %4389 = vmatmul.bf16.gmra.mxu0 %v1090
      %v4390 = vpop.f32.mrf.mxu0
      %v4391 = vadd.f32 %v4302, %v4390
      %v4392 = vpop.f32.mrf.mxu0
      %v4393 = vadd.f32 %v4304, %v4392
      %4394 = vmatmul.bf16.gmra.mxu0 %v1097
      %v4395 = vpop.f32.mrf.mxu0
      %v4396 = vadd.f32 %v4307, %v4395
      %v4397 = vpop.f32.mrf.mxu0
      %v4398 = vadd.f32 %v4309, %v4397
      %4399 = vmatmul.bf16.gmra.mxu0 %v1104
      %v4400 = vpop.f32.mrf.mxu0
      %v4401 = vadd.f32 %v4312, %v4400
      %v4402 = vpop.f32.mrf.mxu0
      %v4403 = vadd.f32 %v4314, %v4402
      %4404 = vmatmul.bf16.gmra.mxu0 %v1111
      %v4405 = vpop.f32.mrf.mxu0
      %v4406 = vadd.f32 %v4317, %v4405
      %v4407 = vpop.f32.mrf.mxu0
      %v4408 = vadd.f32 %v4319, %v4407
      %4409 = vmatmul.bf16.gmra.mxu0 %v1118
      %v4410 = vpop.f32.mrf.mxu0
      %v4411 = vadd.f32 %v4322, %v4410
      %v4412 = vpop.f32.mrf.mxu0
      %v4413 = vadd.f32 %v4324, %v4412
      %4414 = vmatmul.bf16.gmra.mxu0 %v1125
      %v4415 = vpop.f32.mrf.mxu0
      %v4416 = vadd.f32 %v4327, %v4415
      %v4417 = vpop.f32.mrf.mxu0
      %v4418 = vadd.f32 %v4329, %v4417
      %4419 = vmatmul.bf16.gmra.mxu0 %v1132
      %v4420 = vpop.f32.mrf.mxu0
      %v4421 = vadd.f32 %v4332, %v4420
      %v4422 = vpop.f32.mrf.mxu0
      %v4423 = vadd.f32 %v4334, %v4422
      %4424 = vmatmul.bf16.gmra.mxu0 %v1139
      %v4425 = vpop.f32.mrf.mxu0
      %v4426 = vadd.f32 %v4337, %v4425
      %v4427 = vpop.f32.mrf.mxu0
      %v4428 = vadd.f32 %v4339, %v4427
      %4429 = vmatmul.bf16.gmra.mxu0 %v1146
      %v4430 = vpop.f32.mrf.mxu0
      %v4431 = vadd.f32 %v4342, %v4430
      %v4432 = vpop.f32.mrf.mxu0
      %v4433 = vadd.f32 %v4344, %v4432
      %4434 = vmatmul.bf16.gmra.mxu0 %v1153
      %v4435 = vpop.f32.mrf.mxu0
      %v4436 = vadd.f32 %v4347, %v4435
      %v4437 = vpop.f32.mrf.mxu0
      %v4438 = vadd.f32 %v4349, %v4437
      %4439 = vmatmul.bf16.gmra.mxu0 %v1160
      %v4440 = vpop.f32.mrf.mxu0
      %v4441 = vadd.f32 %v4352, %v4440
      %v4442 = vpop.f32.mrf.mxu0
      %v4443 = vadd.f32 %v4354, %v4442
      %4444 = vdwg.mxu0
      %4445 = vmatpush.bf16.msra.mxu0 %v2045
      %4446 = vmatpush.bf16.msra.mxu0 %v2041
      %4447 = vmatpush.bf16.msra.mxu0 %v2037
      %4448 = vmatpush.bf16.msra.mxu0 %v2033
      %4449 = vmatpush.bf16.msra.mxu0 %v2029
      %4450 = vmatpush.bf16.msra.mxu0 %v2025
      %4451 = vmatpush.bf16.msra.mxu0 %v2021
      %4452 = vmatpush.bf16.msra.mxu0 %v2017
      %4453 = vmatmul.bf16.gmra.mxu0 %v1056
      %v4454 = vpop.f32.mrf.mxu0
      %v4455 = vadd.f32 %v4366, %v4454
      %v4456 = vpop.f32.mrf.mxu0
      %v4457 = vadd.f32 %v4368, %v4456
      %4458 = vmatmul.bf16.gmra.mxu0 %v1063
      %v4459 = vpop.f32.mrf.mxu0
      %v4460 = vadd.f32 %v4371, %v4459
      %v4461 = vpop.f32.mrf.mxu0
      %v4462 = vadd.f32 %v4373, %v4461
      %4463 = vmatmul.bf16.gmra.mxu0 %v1070
      %v4464 = vpop.f32.mrf.mxu0
      %v4465 = vadd.f32 %v4376, %v4464
      %v4466 = vpop.f32.mrf.mxu0
      %v4467 = vadd.f32 %v4378, %v4466
      %4468 = vmatmul.bf16.gmra.mxu0 %v1077
      %v4469 = vpop.f32.mrf.mxu0
      %v4470 = vadd.f32 %v4381, %v4469
      %v4471 = vpop.f32.mrf.mxu0
      %v4472 = vadd.f32 %v4383, %v4471
      %4473 = vmatmul.bf16.gmra.mxu0 %v1084
      %v4474 = vpop.f32.mrf.mxu0
      %v4475 = vadd.f32 %v4386, %v4474
      %v4476 = vpop.f32.mrf.mxu0
      %v4477 = vadd.f32 %v4388, %v4476
      %4478 = vmatmul.bf16.gmra.mxu0 %v1091
      %v4479 = vpop.f32.mrf.mxu0
      %v4480 = vadd.f32 %v4391, %v4479
      %v4481 = vpop.f32.mrf.mxu0
      %v4482 = vadd.f32 %v4393, %v4481
      %4483 = vmatmul.bf16.gmra.mxu0 %v1098
      %v4484 = vpop.f32.mrf.mxu0
      %v4485 = vadd.f32 %v4396, %v4484
      %v4486 = vpop.f32.mrf.mxu0
      %v4487 = vadd.f32 %v4398, %v4486
      %4488 = vmatmul.bf16.gmra.mxu0 %v1105
      %v4489 = vpop.f32.mrf.mxu0
      %v4490 = vadd.f32 %v4401, %v4489
      %v4491 = vpop.f32.mrf.mxu0
      %v4492 = vadd.f32 %v4403, %v4491
      %4493 = vmatmul.bf16.gmra.mxu0 %v1112
      %v4494 = vpop.f32.mrf.mxu0
      %v4495 = vadd.f32 %v4406, %v4494
      %v4496 = vpop.f32.mrf.mxu0
      %v4497 = vadd.f32 %v4408, %v4496
      %4498 = vmatmul.bf16.gmra.mxu0 %v1119
      %v4499 = vpop.f32.mrf.mxu0
      %v4500 = vadd.f32 %v4411, %v4499
      %v4501 = vpop.f32.mrf.mxu0
      %v4502 = vadd.f32 %v4413, %v4501
      %4503 = vmatmul.bf16.gmra.mxu0 %v1126
      %v4504 = vpop.f32.mrf.mxu0
      %v4505 = vadd.f32 %v4416, %v4504
      %v4506 = vpop.f32.mrf.mxu0
      %v4507 = vadd.f32 %v4418, %v4506
      %4508 = vmatmul.bf16.gmra.mxu0 %v1133
      %v4509 = vpop.f32.mrf.mxu0
      %v4510 = vadd.f32 %v4421, %v4509
      %v4511 = vpop.f32.mrf.mxu0
      %v4512 = vadd.f32 %v4423, %v4511
      %4513 = vmatmul.bf16.gmra.mxu0 %v1140
      %v4514 = vpop.f32.mrf.mxu0
      %v4515 = vadd.f32 %v4426, %v4514
      %v4516 = vpop.f32.mrf.mxu0
      %v4517 = vadd.f32 %v4428, %v4516
      %4518 = vmatmul.bf16.gmra.mxu0 %v1147
      %v4519 = vpop.f32.mrf.mxu0
      %v4520 = vadd.f32 %v4431, %v4519
      %v4521 = vpop.f32.mrf.mxu0
      %v4522 = vadd.f32 %v4433, %v4521
      %4523 = vmatmul.bf16.gmra.mxu0 %v1154
      %v4524 = vpop.f32.mrf.mxu0
      %v4525 = vadd.f32 %v4436, %v4524
      %v4526 = vpop.f32.mrf.mxu0
      %v4527 = vadd.f32 %v4438, %v4526
      %4528 = vmatmul.bf16.gmra.mxu0 %v1161
      %v4529 = vpop.f32.mrf.mxu0
      %v4530 = vadd.f32 %v4441, %v4529
      %v4531 = vpop.f32.mrf.mxu0
      %v4532 = vadd.f32 %v4443, %v4531
      %4533 = vdwg.mxu0
      %4534 = vmatpush.bf16.msra.mxu0 %v2077
      %4535 = vmatpush.bf16.msra.mxu0 %v2073
      %4536 = vmatpush.bf16.msra.mxu0 %v2069
      %4537 = vmatpush.bf16.msra.mxu0 %v2065
      %4538 = vmatpush.bf16.msra.mxu0 %v2061
      %4539 = vmatpush.bf16.msra.mxu0 %v2057
      %4540 = vmatpush.bf16.msra.mxu0 %v2053
      %4541 = vmatpush.bf16.msra.mxu0 %v2049
      %4542 = vmatmul.bf16.gmra.mxu0 %v1057
      %v4543 = vpop.f32.mrf.mxu0
      %v4544 = vadd.f32 %v4455, %v4543
      %v4545 = vpop.f32.mrf.mxu0
      %v4546 = vadd.f32 %v4457, %v4545
      %4547 = vmatmul.bf16.gmra.mxu0 %v1064
      %v4548 = vpop.f32.mrf.mxu0
      %v4549 = vadd.f32 %v4460, %v4548
      %v4550 = vpop.f32.mrf.mxu0
      %v4551 = vadd.f32 %v4462, %v4550
      %4552 = vmatmul.bf16.gmra.mxu0 %v1071
      %v4553 = vpop.f32.mrf.mxu0
      %v4554 = vadd.f32 %v4465, %v4553
      %v4555 = vpop.f32.mrf.mxu0
      %v4556 = vadd.f32 %v4467, %v4555
      %4557 = vmatmul.bf16.gmra.mxu0 %v1078
      %v4558 = vpop.f32.mrf.mxu0
      %v4559 = vadd.f32 %v4470, %v4558
      %v4560 = vpop.f32.mrf.mxu0
      %v4561 = vadd.f32 %v4472, %v4560
      %4562 = vmatmul.bf16.gmra.mxu0 %v1085
      %v4563 = vpop.f32.mrf.mxu0
      %v4564 = vadd.f32 %v4475, %v4563
      %v4565 = vpop.f32.mrf.mxu0
      %v4566 = vadd.f32 %v4477, %v4565
      %4567 = vmatmul.bf16.gmra.mxu0 %v1092
      %v4568 = vpop.f32.mrf.mxu0
      %v4569 = vadd.f32 %v4480, %v4568
      %v4570 = vpop.f32.mrf.mxu0
      %v4571 = vadd.f32 %v4482, %v4570
      %4572 = vmatmul.bf16.gmra.mxu0 %v1099
      %v4573 = vpop.f32.mrf.mxu0
      %v4574 = vadd.f32 %v4485, %v4573
      %v4575 = vpop.f32.mrf.mxu0
      %v4576 = vadd.f32 %v4487, %v4575
      %4577 = vmatmul.bf16.gmra.mxu0 %v1106
      %v4578 = vpop.f32.mrf.mxu0
      %v4579 = vadd.f32 %v4490, %v4578
      %v4580 = vpop.f32.mrf.mxu0
      %v4581 = vadd.f32 %v4492, %v4580
      %4582 = vmatmul.bf16.gmra.mxu0 %v1113
      %v4583 = vpop.f32.mrf.mxu0
      %v4584 = vadd.f32 %v4495, %v4583
      %v4585 = vpop.f32.mrf.mxu0
      %v4586 = vadd.f32 %v4497, %v4585
      %4587 = vmatmul.bf16.gmra.mxu0 %v1120
      %v4588 = vpop.f32.mrf.mxu0
      %v4589 = vadd.f32 %v4500, %v4588
      %v4590 = vpop.f32.mrf.mxu0
      %v4591 = vadd.f32 %v4502, %v4590
      %4592 = vmatmul.bf16.gmra.mxu0 %v1127
      %v4593 = vpop.f32.mrf.mxu0
      %v4594 = vadd.f32 %v4505, %v4593
      %v4595 = vpop.f32.mrf.mxu0
      %v4596 = vadd.f32 %v4507, %v4595
      %4597 = vmatmul.bf16.gmra.mxu0 %v1134
      %v4598 = vpop.f32.mrf.mxu0
      %v4599 = vadd.f32 %v4510, %v4598
      %v4600 = vpop.f32.mrf.mxu0
      %v4601 = vadd.f32 %v4512, %v4600
      %4602 = vmatmul.bf16.gmra.mxu0 %v1141
      %v4603 = vpop.f32.mrf.mxu0
      %v4604 = vadd.f32 %v4515, %v4603
      %v4605 = vpop.f32.mrf.mxu0
      %v4606 = vadd.f32 %v4517, %v4605
      %4607 = vmatmul.bf16.gmra.mxu0 %v1148
      %v4608 = vpop.f32.mrf.mxu0
      %v4609 = vadd.f32 %v4520, %v4608
      %v4610 = vpop.f32.mrf.mxu0
      %v4611 = vadd.f32 %v4522, %v4610
      %4612 = vmatmul.bf16.gmra.mxu0 %v1155
      %v4613 = vpop.f32.mrf.mxu0
      %v4614 = vadd.f32 %v4525, %v4613
      %v4615 = vpop.f32.mrf.mxu0
      %v4616 = vadd.f32 %v4527, %v4615
      %4617 = vmatmul.bf16.gmra.mxu0 %v1162
      %v4618 = vpop.f32.mrf.mxu0
      %v4619 = vadd.f32 %v4530, %v4618
      %v4620 = vpop.f32.mrf.mxu0
      %v4621 = vadd.f32 %v4532, %v4620
      %4622 = vdwg.mxu0
      %4623 = vmatpush.bf16.msra.mxu0 %v2109
      %4624 = vmatpush.bf16.msra.mxu0 %v2105
      %4625 = vmatpush.bf16.msra.mxu0 %v2101
      %4626 = vmatpush.bf16.msra.mxu0 %v2097
      %4627 = vmatpush.bf16.msra.mxu0 %v2093
      %4628 = vmatpush.bf16.msra.mxu0 %v2089
      %4629 = vmatpush.bf16.msra.mxu0 %v2085
      %4630 = vmatpush.bf16.msra.mxu0 %v2081
      %4631 = vmatmul.bf16.gmra.mxu0 %v1058
      %v4632 = vpop.f32.mrf.mxu0
      %v4633 = vadd.f32 %v4544, %v4632
      %v4634 = vpop.f32.mrf.mxu0
      %v4635 = vadd.f32 %v4546, %v4634
      %4636 = vmatmul.bf16.gmra.mxu0 %v1065
      %v4637 = vpop.f32.mrf.mxu0
      %v4638 = vadd.f32 %v4549, %v4637
      %v4639 = vpop.f32.mrf.mxu0
      %v4640 = vadd.f32 %v4551, %v4639
      %4641 = vmatmul.bf16.gmra.mxu0 %v1072
      %v4642 = vpop.f32.mrf.mxu0
      %v4643 = vadd.f32 %v4554, %v4642
      %v4644 = vpop.f32.mrf.mxu0
      %v4645 = vadd.f32 %v4556, %v4644
      %4646 = vmatmul.bf16.gmra.mxu0 %v1079
      %v4647 = vpop.f32.mrf.mxu0
      %v4648 = vadd.f32 %v4559, %v4647
      %v4649 = vpop.f32.mrf.mxu0
      %v4650 = vadd.f32 %v4561, %v4649
      %4651 = vmatmul.bf16.gmra.mxu0 %v1086
      %v4652 = vpop.f32.mrf.mxu0
      %v4653 = vadd.f32 %v4564, %v4652
      %v4654 = vpop.f32.mrf.mxu0
      %v4655 = vadd.f32 %v4566, %v4654
      %4656 = vmatmul.bf16.gmra.mxu0 %v1093
      %v4657 = vpop.f32.mrf.mxu0
      %v4658 = vadd.f32 %v4569, %v4657
      %v4659 = vpop.f32.mrf.mxu0
      %v4660 = vadd.f32 %v4571, %v4659
      %4661 = vmatmul.bf16.gmra.mxu0 %v1100
      %v4662 = vpop.f32.mrf.mxu0
      %v4663 = vadd.f32 %v4574, %v4662
      %v4664 = vpop.f32.mrf.mxu0
      %v4665 = vadd.f32 %v4576, %v4664
      %4666 = vmatmul.bf16.gmra.mxu0 %v1107
      %v4667 = vpop.f32.mrf.mxu0
      %v4668 = vadd.f32 %v4579, %v4667
      %v4669 = vpop.f32.mrf.mxu0
      %v4670 = vadd.f32 %v4581, %v4669
      %4671 = vmatmul.bf16.gmra.mxu0 %v1114
      %v4672 = vpop.f32.mrf.mxu0
      %v4673 = vadd.f32 %v4584, %v4672
      %v4674 = vpop.f32.mrf.mxu0
      %v4675 = vadd.f32 %v4586, %v4674
      %4676 = vmatmul.bf16.gmra.mxu0 %v1121
      %v4677 = vpop.f32.mrf.mxu0
      %v4678 = vadd.f32 %v4589, %v4677
      %v4679 = vpop.f32.mrf.mxu0
      %v4680 = vadd.f32 %v4591, %v4679
      %4681 = vmatmul.bf16.gmra.mxu0 %v1128
      %v4682 = vpop.f32.mrf.mxu0
      %v4683 = vadd.f32 %v4594, %v4682
      %v4684 = vpop.f32.mrf.mxu0
      %v4685 = vadd.f32 %v4596, %v4684
      %4686 = vmatmul.bf16.gmra.mxu0 %v1135
      %v4687 = vpop.f32.mrf.mxu0
      %v4688 = vadd.f32 %v4599, %v4687
      %v4689 = vpop.f32.mrf.mxu0
      %v4690 = vadd.f32 %v4601, %v4689
      %4691 = vmatmul.bf16.gmra.mxu0 %v1142
      %v4692 = vpop.f32.mrf.mxu0
      %v4693 = vadd.f32 %v4604, %v4692
      %v4694 = vpop.f32.mrf.mxu0
      %v4695 = vadd.f32 %v4606, %v4694
      %4696 = vmatmul.bf16.gmra.mxu0 %v1149
      %v4697 = vpop.f32.mrf.mxu0
      %v4698 = vadd.f32 %v4609, %v4697
      %v4699 = vpop.f32.mrf.mxu0
      %v4700 = vadd.f32 %v4611, %v4699
      %4701 = vmatmul.bf16.gmra.mxu0 %v1156
      %v4702 = vpop.f32.mrf.mxu0
      %v4703 = vadd.f32 %v4614, %v4702
      %v4704 = vpop.f32.mrf.mxu0
      %v4705 = vadd.f32 %v4616, %v4704
      %4706 = vmatmul.bf16.gmra.mxu0 %v1163
      %v4707 = vpop.f32.mrf.mxu0
      %v4708 = vadd.f32 %v4619, %v4707
      %v4709 = vpop.f32.mrf.mxu0
      %v4710 = vadd.f32 %v4621, %v4709
      %4711 = vdwg.mxu0
      %4712 = vmatpush.bf16.msra.mxu0 %v2141
      %4713 = vmatpush.bf16.msra.mxu0 %v2137
      %4714 = vmatpush.bf16.msra.mxu0 %v2133
      %4715 = vmatpush.bf16.msra.mxu0 %v2129
      %4716 = vmatpush.bf16.msra.mxu0 %v2125
      %4717 = vmatpush.bf16.msra.mxu0 %v2121
      %4718 = vmatpush.bf16.msra.mxu0 %v2117
      %4719 = vmatpush.bf16.msra.mxu0 %v2113
      %4720 = vmatmul.bf16.gmra.mxu0 %v1059
      %v4721 = vpop.f32.mrf.mxu0
      %v4722 = vadd.f32 %v4633, %v4721
      %v4723 = vpop.f32.mrf.mxu0
      %v4724 = vadd.f32 %v4635, %v4723
      %4725 = vmatmul.bf16.gmra.mxu0 %v1066
      %v4726 = vpop.f32.mrf.mxu0
      %v4727 = vadd.f32 %v4638, %v4726
      %v4728 = vpop.f32.mrf.mxu0
      %v4729 = vadd.f32 %v4640, %v4728
      %4730 = vmatmul.bf16.gmra.mxu0 %v1073
      %v4731 = vpop.f32.mrf.mxu0
      %v4732 = vadd.f32 %v4643, %v4731
      %v4733 = vpop.f32.mrf.mxu0
      %v4734 = vadd.f32 %v4645, %v4733
      %4735 = vmatmul.bf16.gmra.mxu0 %v1080
      %v4736 = vpop.f32.mrf.mxu0
      %v4737 = vadd.f32 %v4648, %v4736
      %v4738 = vpop.f32.mrf.mxu0
      %v4739 = vadd.f32 %v4650, %v4738
      %4740 = vmatmul.bf16.gmra.mxu0 %v1087
      %v4741 = vpop.f32.mrf.mxu0
      %v4742 = vadd.f32 %v4653, %v4741
      %v4743 = vpop.f32.mrf.mxu0
      %v4744 = vadd.f32 %v4655, %v4743
      %4745 = vmatmul.bf16.gmra.mxu0 %v1094
      %v4746 = vpop.f32.mrf.mxu0
      %v4747 = vadd.f32 %v4658, %v4746
      %v4748 = vpop.f32.mrf.mxu0
      %v4749 = vadd.f32 %v4660, %v4748
      %4750 = vmatmul.bf16.gmra.mxu0 %v1101
      %v4751 = vpop.f32.mrf.mxu0
      %v4752 = vadd.f32 %v4663, %v4751
      %v4753 = vpop.f32.mrf.mxu0
      %v4754 = vadd.f32 %v4665, %v4753
      %4755 = vmatmul.bf16.gmra.mxu0 %v1108
      %v4756 = vpop.f32.mrf.mxu0
      %v4757 = vadd.f32 %v4668, %v4756
      %v4758 = vpop.f32.mrf.mxu0
      %v4759 = vadd.f32 %v4670, %v4758
      %4760 = vmatmul.bf16.gmra.mxu0 %v1115
      %v4761 = vpop.f32.mrf.mxu0
      %v4762 = vadd.f32 %v4673, %v4761
      %v4763 = vpop.f32.mrf.mxu0
      %v4764 = vadd.f32 %v4675, %v4763
      %4765 = vmatmul.bf16.gmra.mxu0 %v1122
      %v4766 = vpop.f32.mrf.mxu0
      %v4767 = vadd.f32 %v4678, %v4766
      %v4768 = vpop.f32.mrf.mxu0
      %v4769 = vadd.f32 %v4680, %v4768
      %4770 = vmatmul.bf16.gmra.mxu0 %v1129
      %v4771 = vpop.f32.mrf.mxu0
      %v4772 = vadd.f32 %v4683, %v4771
      %v4773 = vpop.f32.mrf.mxu0
      %v4774 = vadd.f32 %v4685, %v4773
      %4775 = vmatmul.bf16.gmra.mxu0 %v1136
      %v4776 = vpop.f32.mrf.mxu0
      %v4777 = vadd.f32 %v4688, %v4776
      %v4778 = vpop.f32.mrf.mxu0
      %v4779 = vadd.f32 %v4690, %v4778
      %4780 = vmatmul.bf16.gmra.mxu0 %v1143
      %v4781 = vpop.f32.mrf.mxu0
      %v4782 = vadd.f32 %v4693, %v4781
      %v4783 = vpop.f32.mrf.mxu0
      %v4784 = vadd.f32 %v4695, %v4783
      %4785 = vmatmul.bf16.gmra.mxu0 %v1150
      %v4786 = vpop.f32.mrf.mxu0
      %v4787 = vadd.f32 %v4698, %v4786
      %v4788 = vpop.f32.mrf.mxu0
      %v4789 = vadd.f32 %v4700, %v4788
      %4790 = vmatmul.bf16.gmra.mxu0 %v1157
      %v4791 = vpop.f32.mrf.mxu0
      %v4792 = vadd.f32 %v4703, %v4791
      %v4793 = vpop.f32.mrf.mxu0
      %v4794 = vadd.f32 %v4705, %v4793
      %4795 = vmatmul.bf16.gmra.mxu0 %v1164
      %v4796 = vpop.f32.mrf.mxu0
      %v4797 = vadd.f32 %v4708, %v4796
      %v4798 = vpop.f32.mrf.mxu0
      %v4799 = vadd.f32 %v4710, %v4798
      %4800 = vdwg.mxu0
      %4801 = vmatpush.bf16.msra.mxu0 %v2173
      %4802 = vmatpush.bf16.msra.mxu0 %v2169
      %4803 = vmatpush.bf16.msra.mxu0 %v2165
      %4804 = vmatpush.bf16.msra.mxu0 %v2161
      %4805 = vmatpush.bf16.msra.mxu0 %v2157
      %4806 = vmatpush.bf16.msra.mxu0 %v2153
      %4807 = vmatpush.bf16.msra.mxu0 %v2149
      %4808 = vmatpush.bf16.msra.mxu0 %v2145
      %4809 = vmatmul.bf16.gmra.mxu0 %v1060
      %v4810 = vpop.f32.mrf.mxu0
      %v4811 = vadd.f32 %v4722, %v4810
      %v4812 = vpop.f32.mrf.mxu0
      %v4813 = vadd.f32 %v4724, %v4812
      %4814 = vmatmul.bf16.gmra.mxu0 %v1067
      %v4815 = vpop.f32.mrf.mxu0
      %v4816 = vadd.f32 %v4727, %v4815
      %v4817 = vpop.f32.mrf.mxu0
      %v4818 = vadd.f32 %v4729, %v4817
      %4819 = vmatmul.bf16.gmra.mxu0 %v1074
      %v4820 = vpop.f32.mrf.mxu0
      %v4821 = vadd.f32 %v4732, %v4820
      %v4822 = vpop.f32.mrf.mxu0
      %v4823 = vadd.f32 %v4734, %v4822
      %4824 = vmatmul.bf16.gmra.mxu0 %v1081
      %v4825 = vpop.f32.mrf.mxu0
      %v4826 = vadd.f32 %v4737, %v4825
      %v4827 = vpop.f32.mrf.mxu0
      %v4828 = vadd.f32 %v4739, %v4827
      %4829 = vmatmul.bf16.gmra.mxu0 %v1088
      %v4830 = vpop.f32.mrf.mxu0
      %v4831 = vadd.f32 %v4742, %v4830
      %v4832 = vpop.f32.mrf.mxu0
      %v4833 = vadd.f32 %v4744, %v4832
      %4834 = vmatmul.bf16.gmra.mxu0 %v1095
      %v4835 = vpop.f32.mrf.mxu0
      %v4836 = vadd.f32 %v4747, %v4835
      %v4837 = vpop.f32.mrf.mxu0
      %v4838 = vadd.f32 %v4749, %v4837
      %4839 = vmatmul.bf16.gmra.mxu0 %v1102
      %v4840 = vpop.f32.mrf.mxu0
      %v4841 = vadd.f32 %v4752, %v4840
      %v4842 = vpop.f32.mrf.mxu0
      %v4843 = vadd.f32 %v4754, %v4842
      %4844 = vmatmul.bf16.gmra.mxu0 %v1109
      %v4845 = vpop.f32.mrf.mxu0
      %v4846 = vadd.f32 %v4757, %v4845
      %v4847 = vpop.f32.mrf.mxu0
      %v4848 = vadd.f32 %v4759, %v4847
      %4849 = vmatmul.bf16.gmra.mxu0 %v1116
      %v4850 = vpop.f32.mrf.mxu0
      %v4851 = vadd.f32 %v4762, %v4850
      %v4852 = vpop.f32.mrf.mxu0
      %v4853 = vadd.f32 %v4764, %v4852
      %4854 = vmatmul.bf16.gmra.mxu0 %v1123
      %v4855 = vpop.f32.mrf.mxu0
      %v4856 = vadd.f32 %v4767, %v4855
      %v4857 = vpop.f32.mrf.mxu0
      %v4858 = vadd.f32 %v4769, %v4857
      %4859 = vmatmul.bf16.gmra.mxu0 %v1130
      %v4860 = vpop.f32.mrf.mxu0
      %v4861 = vadd.f32 %v4772, %v4860
      %v4862 = vpop.f32.mrf.mxu0
      %v4863 = vadd.f32 %v4774, %v4862
      %4864 = vmatmul.bf16.gmra.mxu0 %v1137
      %v4865 = vpop.f32.mrf.mxu0
      %v4866 = vadd.f32 %v4777, %v4865
      %v4867 = vpop.f32.mrf.mxu0
      %v4868 = vadd.f32 %v4779, %v4867
      %4869 = vmatmul.bf16.gmra.mxu0 %v1144
      %v4870 = vpop.f32.mrf.mxu0
      %v4871 = vadd.f32 %v4782, %v4870
      %v4872 = vpop.f32.mrf.mxu0
      %v4873 = vadd.f32 %v4784, %v4872
      %4874 = vmatmul.bf16.gmra.mxu0 %v1151
      %v4875 = vpop.f32.mrf.mxu0
      %v4876 = vadd.f32 %v4787, %v4875
      %v4877 = vpop.f32.mrf.mxu0
      %v4878 = vadd.f32 %v4789, %v4877
      %4879 = vmatmul.bf16.gmra.mxu0 %v1158
      %v4880 = vpop.f32.mrf.mxu0
      %v4881 = vadd.f32 %v4792, %v4880
      %v4882 = vpop.f32.mrf.mxu0
      %v4883 = vadd.f32 %v4794, %v4882
      %4884 = vmatmul.bf16.gmra.mxu0 %v1165
      %v4885 = vpop.f32.mrf.mxu0
      %v4886 = vadd.f32 %v4797, %v4885
      %v4887 = vpop.f32.mrf.mxu0
      %v4888 = vadd.f32 %v4799, %v4887
      %4889 = vdwg.mxu0
      %v4890 = vmax.f32 %v2942, 0.0
      %v4891 = vmax.f32 %v3565, 0.0
      %v4892 = vmax.f32 %v4188, 0.0
      %v4893 = vmax.f32 %v4811, 0.0
      %v4894 = vmax.f32 %v2944, 0.0
      %v4895 = vmax.f32 %v3567, 0.0
      %v4896 = vmax.f32 %v4190, 0.0
      %v4897 = vmax.f32 %v4813, 0.0
      %v4898 = vmax.f32 %v2947, 0.0
      %v4899 = vmax.f32 %v3570, 0.0
      %v4900 = vmax.f32 %v4193, 0.0
      %v4901 = vmax.f32 %v4816, 0.0
      %v4902 = vmax.f32 %v2949, 0.0
      %v4903 = vmax.f32 %v3572, 0.0
      %v4904 = vmax.f32 %v4195, 0.0
      %v4905 = vmax.f32 %v4818, 0.0
      %v4906 = vmax.f32 %v2952, 0.0
      %v4907 = vmax.f32 %v3575, 0.0
      %v4908 = vmax.f32 %v4198, 0.0
      %v4909 = vmax.f32 %v4821, 0.0
      %v4910 = vmax.f32 %v2954, 0.0
      %v4911 = vmax.f32 %v3577, 0.0
      %v4912 = vmax.f32 %v4200, 0.0
      %v4913 = vmax.f32 %v4823, 0.0
      %v4914 = vmax.f32 %v2957, 0.0
      %v4915 = vmax.f32 %v3580, 0.0
      %v4916 = vmax.f32 %v4203, 0.0
      %v4917 = vmax.f32 %v4826, 0.0
      %v4918 = vmax.f32 %v2959, 0.0
      %v4919 = vmax.f32 %v3582, 0.0
      %v4920 = vmax.f32 %v4205, 0.0
      %v4921 = vmax.f32 %v4828, 0.0
      %v4922 = vmax.f32 %v2962, 0.0
      %v4923 = vmax.f32 %v3585, 0.0
      %v4924 = vmax.f32 %v4208, 0.0
      %v4925 = vmax.f32 %v4831, 0.0
      %v4926 = vmax.f32 %v2964, 0.0
      %v4927 = vmax.f32 %v3587, 0.0
      %v4928 = vmax.f32 %v4210, 0.0
      %v4929 = vmax.f32 %v4833, 0.0
      %v4930 = vmax.f32 %v2967, 0.0
      %v4931 = vmax.f32 %v3590, 0.0
      %v4932 = vmax.f32 %v4213, 0.0
      %v4933 = vmax.f32 %v4836, 0.0
      %v4934 = vmax.f32 %v2969, 0.0
      %v4935 = vmax.f32 %v3592, 0.0
      %v4936 = vmax.f32 %v4215, 0.0
      %v4937 = vmax.f32 %v4838, 0.0
      %v4938 = vmax.f32 %v2972, 0.0
      %v4939 = vmax.f32 %v3595, 0.0
      %v4940 = vmax.f32 %v4218, 0.0
      %v4941 = vmax.f32 %v4841, 0.0
      %v4942 = vmax.f32 %v2974, 0.0
      %v4943 = vmax.f32 %v3597, 0.0
      %v4944 = vmax.f32 %v4220, 0.0
      %v4945 = vmax.f32 %v4843, 0.0
      %v4946 = vmax.f32 %v2977, 0.0
      %v4947 = vmax.f32 %v3600, 0.0
      %v4948 = vmax.f32 %v4223, 0.0
      %v4949 = vmax.f32 %v4846, 0.0
      %v4950 = vmax.f32 %v2979, 0.0
      %v4951 = vmax.f32 %v3602, 0.0
      %v4952 = vmax.f32 %v4225, 0.0
      %v4953 = vmax.f32 %v4848, 0.0
      %v4954 = vmax.f32 %v2982, 0.0
      %v4955 = vmax.f32 %v3605, 0.0
      %v4956 = vmax.f32 %v4228, 0.0
      %v4957 = vmax.f32 %v4851, 0.0
      %v4958 = vmax.f32 %v2984, 0.0
      %v4959 = vmax.f32 %v3607, 0.0
      %v4960 = vmax.f32 %v4230, 0.0
      %v4961 = vmax.f32 %v4853, 0.0
      %v4962 = vmax.f32 %v2987, 0.0
      %v4963 = vmax.f32 %v3610, 0.0
      %v4964 = vmax.f32 %v4233, 0.0
      %v4965 = vmax.f32 %v4856, 0.0
      %v4966 = vmax.f32 %v2989, 0.0
      %v4967 = vmax.f32 %v3612, 0.0
      %v4968 = vmax.f32 %v4235, 0.0
      %v4969 = vmax.f32 %v4858, 0.0
      %v4970 = vmax.f32 %v2992, 0.0
      %v4971 = vmax.f32 %v3615, 0.0
      %v4972 = vmax.f32 %v4238, 0.0
      %v4973 = vmax.f32 %v4861, 0.0
      %v4974 = vmax.f32 %v2994, 0.0
      %v4975 = vmax.f32 %v3617, 0.0
      %v4976 = vmax.f32 %v4240, 0.0
      %v4977 = vmax.f32 %v4863, 0.0
      %v4978 = vmax.f32 %v2997, 0.0
      %v4979 = vmax.f32 %v3620, 0.0
      %v4980 = vmax.f32 %v4243, 0.0
      %v4981 = vmax.f32 %v4866, 0.0
      %v4982 = vmax.f32 %v2999, 0.0
      %v4983 = vmax.f32 %v3622, 0.0
      %v4984 = vmax.f32 %v4245, 0.0
      %v4985 = vmax.f32 %v4868, 0.0
      %v4986 = vmax.f32 %v3002, 0.0
      %v4987 = vmax.f32 %v3625, 0.0
      %v4988 = vmax.f32 %v4248, 0.0
      %v4989 = vmax.f32 %v4871, 0.0
      %v4990 = vmax.f32 %v3004, 0.0
      %v4991 = vmax.f32 %v3627, 0.0
      %v4992 = vmax.f32 %v4250, 0.0
      %v4993 = vmax.f32 %v4873, 0.0
      %v4994 = vmax.f32 %v3007, 0.0
      %v4995 = vmax.f32 %v3630, 0.0
      %v4996 = vmax.f32 %v4253, 0.0
      %v4997 = vmax.f32 %v4876, 0.0
      %v4998 = vmax.f32 %v3009, 0.0
      %v4999 = vmax.f32 %v3632, 0.0
      %v5000 = vmax.f32 %v4255, 0.0
      %v5001 = vmax.f32 %v4878, 0.0
      %v5002 = vmax.f32 %v3012, 0.0
      %v5003 = vmax.f32 %v3635, 0.0
      %v5004 = vmax.f32 %v4258, 0.0
      %v5005 = vmax.f32 %v4881, 0.0
      %v5006 = vmax.f32 %v3014, 0.0
      %v5007 = vmax.f32 %v3637, 0.0
      %v5008 = vmax.f32 %v4260, 0.0
      %v5009 = vmax.f32 %v4883, 0.0
      %v5010 = vmax.f32 %v3017, 0.0
      %v5011 = vmax.f32 %v3640, 0.0
      %v5012 = vmax.f32 %v4263, 0.0
      %v5013 = vmax.f32 %v4886, 0.0
      %v5014 = vmax.f32 %v3019, 0.0
      %v5015 = vmax.f32 %v3642, 0.0
      %v5016 = vmax.f32 %v4265, 0.0
      %v5017 = vmax.f32 %v4888, 0.0
      %v5018 = vpack.c.bf16 %v4894, %v4890
      %v5019 = vpack.c.bf16 %v4895, %v4891
      %v5020 = vpack.c.bf16 %v4896, %v4892
      %v5021 = vpack.c.bf16 %v4897, %v4893
      %v5022 = vpack.c.bf16 %v4902, %v4898
      %v5023 = vpack.c.bf16 %v4903, %v4899
      %v5024 = vpack.c.bf16 %v4904, %v4900
      %v5025 = vpack.c.bf16 %v4905, %v4901
      %v5026 = vpack.c.bf16 %v4910, %v4906
      %v5027 = vpack.c.bf16 %v4911, %v4907
      %v5028 = vpack.c.bf16 %v4912, %v4908
      %v5029 = vpack.c.bf16 %v4913, %v4909
      %v5030 = vpack.c.bf16 %v4918, %v4914
      %v5031 = vpack.c.bf16 %v4919, %v4915
      %v5032 = vpack.c.bf16 %v4920, %v4916
      %v5033 = vpack.c.bf16 %v4921, %v4917
      %v5034 = vpack.c.bf16 %v4926, %v4922
      %v5035 = vpack.c.bf16 %v4927, %v4923
      %v5036 = vpack.c.bf16 %v4928, %v4924
      %v5037 = vpack.c.bf16 %v4929, %v4925
      %v5038 = vpack.c.bf16 %v4934, %v4930
      %v5039 = vpack.c.bf16 %v4935, %v4931
      %v5040 = vpack.c.bf16 %v4936, %v4932
      %v5041 = vpack.c.bf16 %v4937, %v4933
      %v5042 = vpack.c.bf16 %v4942, %v4938
      %v5043 = vpack.c.bf16 %v4943, %v4939
      %v5044 = vpack.c.bf16 %v4944, %v4940
      %v5045 = vpack.c.bf16 %v4945, %v4941
      %v5046 = vpack.c.bf16 %v4950, %v4946
      %v5047 = vpack.c.bf16 %v4951, %v4947
      %v5048 = vpack.c.bf16 %v4952, %v4948
      %v5049 = vpack.c.bf16 %v4953, %v4949
      %v5050 = vpack.c.bf16 %v4958, %v4954
      %v5051 = vpack.c.bf16 %v4959, %v4955
      %v5052 = vpack.c.bf16 %v4960, %v4956
      %v5053 = vpack.c.bf16 %v4961, %v4957
      %v5054 = vpack.c.bf16 %v4966, %v4962
      %v5055 = vpack.c.bf16 %v4967, %v4963
      %v5056 = vpack.c.bf16 %v4968, %v4964
      %v5057 = vpack.c.bf16 %v4969, %v4965
      %v5058 = vpack.c.bf16 %v4974, %v4970
      %v5059 = vpack.c.bf16 %v4975, %v4971
      %v5060 = vpack.c.bf16 %v4976, %v4972
      %v5061 = vpack.c.bf16 %v4977, %v4973
      %v5062 = vpack.c.bf16 %v4982, %v4978
      %v5063 = vpack.c.bf16 %v4983, %v4979
      %v5064 = vpack.c.bf16 %v4984, %v4980
      %v5065 = vpack.c.bf16 %v4985, %v4981
      %v5066 = vpack.c.bf16 %v4990, %v4986
      %v5067 = vpack.c.bf16 %v4991, %v4987
      %v5068 = vpack.c.bf16 %v4992, %v4988
      %v5069 = vpack.c.bf16 %v4993, %v4989
      %v5070 = vpack.c.bf16 %v4998, %v4994
      %v5071 = vpack.c.bf16 %v4999, %v4995
      %v5072 = vpack.c.bf16 %v5000, %v4996
      %v5073 = vpack.c.bf16 %v5001, %v4997
      %v5074 = vpack.c.bf16 %v5006, %v5002
      %v5075 = vpack.c.bf16 %v5007, %v5003
      %v5076 = vpack.c.bf16 %v5008, %v5004
      %v5077 = vpack.c.bf16 %v5009, %v5005
      %v5078 = vpack.c.bf16 %v5014, %v5010
      %v5079 = vpack.c.bf16 %v5015, %v5011
      %v5080 = vpack.c.bf16 %v5016, %v5012
      %v5081 = vpack.c.bf16 %v5017, %v5013
      %v5082 = vld [vmem:[%s3] sm:$0xf]
      %v5083 = vld [vmem:[%s3 + $0x4] sm:$0xf]
      %v5084 = vld [vmem:[%s3 + $0x8] sm:$0xf]
      %v5085 = vld [vmem:[%s3 + $0xc] sm:$0xf]
      %v5086 = vld [vmem:[%s3 + $0x10] sm:$0xf]
      %v5087 = vld [vmem:[%s3 + $0x14] sm:$0xf]
      %v5088 = vld [vmem:[%s3 + $0x18] sm:$0xf]
      %v5089 = vld [vmem:[%s3 + $0x1c] sm:$0xf]
      %v5090 = vld [vmem:[%s3 + $0x20] sm:$0xf]
      %v5091 = vld [vmem:[%s3 + $0x24] sm:$0xf]
      %v5092 = vld [vmem:[%s3 + $0x28] sm:$0xf]
      %v5093 = vld [vmem:[%s3 + $0x2c] sm:$0xf]
      %v5094 = vld [vmem:[%s3 + $0x30] sm:$0xf]
      %v5095 = vld [vmem:[%s3 + $0x34] sm:$0xf]
      %v5096 = vld [vmem:[%s3 + $0x38] sm:$0xf]
      %v5097 = vld [vmem:[%s3 + $0x3c] sm:$0xf]
      %v5098 = vld [vmem:[%s3 + $0x40] sm:$0xf]
      %v5099 = vld [vmem:[%s3 + $0x44] sm:$0xf]
      %v5100 = vld [vmem:[%s3 + $0x48] sm:$0xf]
      %v5101 = vld [vmem:[%s3 + $0x4c] sm:$0xf]
      %v5102 = vld [vmem:[%s3 + $0x50] sm:$0xf]
      %v5103 = vld [vmem:[%s3 + $0x54] sm:$0xf]
      %v5104 = vld [vmem:[%s3 + $0x58] sm:$0xf]
      %v5105 = vld [vmem:[%s3 + $0x5c] sm:$0xf]
      %v5106 = vld [vmem:[%s3 + $0x60] sm:$0xf]
      %v5107 = vld [vmem:[%s3 + $0x64] sm:$0xf]
      %v5108 = vld [vmem:[%s3 + $0x68] sm:$0xf]
      %v5109 = vld [vmem:[%s3 + $0x6c] sm:$0xf]
      %v5110 = vld [vmem:[%s3 + $0x70] sm:$0xf]
      %v5111 = vld [vmem:[%s3 + $0x74] sm:$0xf]
      %v5112 = vld [vmem:[%s3 + $0x78] sm:$0xf]
      %v5113 = vld [vmem:[%s3 + $0x7c] sm:$0xf]
      %v5114 = vld [vmem:[%s3 + $0x80] sm:$0xf]
      %v5115 = vld [vmem:[%s3 + $0x84] sm:$0xf]
      %v5116 = vld [vmem:[%s3 + $0x88] sm:$0xf]
      %v5117 = vld [vmem:[%s3 + $0x8c] sm:$0xf]
      %v5118 = vld [vmem:[%s3 + $0x90] sm:$0xf]
      %v5119 = vld [vmem:[%s3 + $0x94] sm:$0xf]
      %v5120 = vld [vmem:[%s3 + $0x98] sm:$0xf]
      %v5121 = vld [vmem:[%s3 + $0x9c] sm:$0xf]
      %v5122 = vld [vmem:[%s3 + $0xa0] sm:$0xf]
      %v5123 = vld [vmem:[%s3 + $0xa4] sm:$0xf]
      %v5124 = vld [vmem:[%s3 + $0xa8] sm:$0xf]
      %v5125 = vld [vmem:[%s3 + $0xac] sm:$0xf]
      %v5126 = vld [vmem:[%s3 + $0xb0] sm:$0xf]
      %v5127 = vld [vmem:[%s3 + $0xb4] sm:$0xf]
      %v5128 = vld [vmem:[%s3 + $0xb8] sm:$0xf]
      %v5129 = vld [vmem:[%s3 + $0xbc] sm:$0xf]
      %v5130 = vld [vmem:[%s3 + $0xc0] sm:$0xf]
      %v5131 = vld [vmem:[%s3 + $0xc4] sm:$0xf]
      %v5132 = vld [vmem:[%s3 + $0xc8] sm:$0xf]
      %v5133 = vld [vmem:[%s3 + $0xcc] sm:$0xf]
      %v5134 = vld [vmem:[%s3 + $0xd0] sm:$0xf]
      %v5135 = vld [vmem:[%s3 + $0xd4] sm:$0xf]
      %v5136 = vld [vmem:[%s3 + $0xd8] sm:$0xf]
      %v5137 = vld [vmem:[%s3 + $0xdc] sm:$0xf]
      %v5138 = vld [vmem:[%s3 + $0xe0] sm:$0xf]
      %v5139 = vld [vmem:[%s3 + $0xe4] sm:$0xf]
      %v5140 = vld [vmem:[%s3 + $0xe8] sm:$0xf]
      %v5141 = vld [vmem:[%s3 + $0xec] sm:$0xf]
      %v5142 = vld [vmem:[%s3 + $0xf0] sm:$0xf]
      %v5143 = vld [vmem:[%s3 + $0xf4] sm:$0xf]
      %v5144 = vld [vmem:[%s3 + $0xf8] sm:$0xf]
      %v5145 = vld [vmem:[%s3 + $0xfc] sm:$0xf]
      %v5146 = vld [vmem:[%s4] sm:$0x1]
      %v5148 = vperm.slane %v5146, 0
      %v5214 = vunpack.c.l.b16 %v5082
      %v5215 = vunpack.c.l.b16 %v5083
      %v5216 = vunpack.c.l.b16 %v5084
      %v5217 = vunpack.c.l.b16 %v5085
      %v5218 = vunpack.c.l.b16 %v5086
      %v5219 = vunpack.c.l.b16 %v5087
      %v5220 = vunpack.c.l.b16 %v5088
      %v5221 = vunpack.c.l.b16 %v5089
      %v5222 = vunpack.c.l.b16 %v5090
      %v5223 = vunpack.c.l.b16 %v5091
      %v5224 = vunpack.c.l.b16 %v5092
      %v5225 = vunpack.c.l.b16 %v5093
      %v5226 = vunpack.c.l.b16 %v5094
      %v5227 = vunpack.c.l.b16 %v5095
      %v5228 = vunpack.c.l.b16 %v5096
      %v5229 = vunpack.c.l.b16 %v5097
      %v5230 = vunpack.c.l.b16 %v5098
      %v5231 = vunpack.c.l.b16 %v5099
      %v5232 = vunpack.c.l.b16 %v5100
      %v5233 = vunpack.c.l.b16 %v5101
      %v5234 = vunpack.c.l.b16 %v5102
      %v5235 = vunpack.c.l.b16 %v5103
      %v5236 = vunpack.c.l.b16 %v5104
      %v5237 = vunpack.c.l.b16 %v5105
      %v5238 = vunpack.c.l.b16 %v5106
      %v5239 = vunpack.c.l.b16 %v5107
      %v5240 = vunpack.c.l.b16 %v5108
      %v5241 = vunpack.c.l.b16 %v5109
      %v5242 = vunpack.c.l.b16 %v5110
      %v5243 = vunpack.c.l.b16 %v5111
      %v5244 = vunpack.c.l.b16 %v5112
      %v5245 = vunpack.c.l.b16 %v5113
      %v5246 = vunpack.c.l.b16 %v5114
      %v5247 = vunpack.c.l.b16 %v5115
      %v5248 = vunpack.c.l.b16 %v5116
      %v5249 = vunpack.c.l.b16 %v5117
      %v5250 = vunpack.c.l.b16 %v5118
      %v5251 = vunpack.c.l.b16 %v5119
      %v5252 = vunpack.c.l.b16 %v5120
      %v5253 = vunpack.c.l.b16 %v5121
      %v5254 = vunpack.c.l.b16 %v5122
      %v5255 = vunpack.c.l.b16 %v5123
      %v5256 = vunpack.c.l.b16 %v5124
      %v5257 = vunpack.c.l.b16 %v5125
      %v5258 = vunpack.c.l.b16 %v5126
      %v5259 = vunpack.c.l.b16 %v5127
      %v5260 = vunpack.c.l.b16 %v5128
      %v5261 = vunpack.c.l.b16 %v5129
      %v5262 = vunpack.c.l.b16 %v5130
      %v5263 = vunpack.c.l.b16 %v5131
      %v5264 = vunpack.c.l.b16 %v5132
      %v5265 = vunpack.c.l.b16 %v5133
      %v5266 = vunpack.c.l.b16 %v5134
      %v5267 = vunpack.c.l.b16 %v5135
      %v5268 = vunpack.c.l.b16 %v5136
      %v5269 = vunpack.c.l.b16 %v5137
      %v5270 = vunpack.c.l.b16 %v5138
      %v5271 = vunpack.c.l.b16 %v5139
      %v5272 = vunpack.c.l.b16 %v5140
      %v5273 = vunpack.c.l.b16 %v5141
      %v5274 = vunpack.c.l.b16 %v5142
      %v5275 = vunpack.c.l.b16 %v5143
      %v5276 = vunpack.c.l.b16 %v5144
      %v5277 = vunpack.c.l.b16 %v5145
      %v5278 = vpack.c.b16 %v5215, %v5214
      %v5279 = vpack.c.b16 %v5217, %v5216
      %v5280 = vpack.c.b16 %v5219, %v5218
      %v5281 = vpack.c.b16 %v5221, %v5220
      %v5282 = vpack.c.b16 %v5223, %v5222
      %v5283 = vpack.c.b16 %v5225, %v5224
      %v5284 = vpack.c.b16 %v5227, %v5226
      %v5285 = vpack.c.b16 %v5229, %v5228
      %v5286 = vpack.c.b16 %v5231, %v5230
      %v5287 = vpack.c.b16 %v5233, %v5232
      %v5288 = vpack.c.b16 %v5235, %v5234
      %v5289 = vpack.c.b16 %v5237, %v5236
      %v5290 = vpack.c.b16 %v5239, %v5238
      %v5291 = vpack.c.b16 %v5241, %v5240
      %v5292 = vpack.c.b16 %v5243, %v5242
      %v5293 = vpack.c.b16 %v5245, %v5244
      %v5294 = vpack.c.b16 %v5247, %v5246
      %v5295 = vpack.c.b16 %v5249, %v5248
      %v5296 = vpack.c.b16 %v5251, %v5250
      %v5297 = vpack.c.b16 %v5253, %v5252
      %v5298 = vpack.c.b16 %v5255, %v5254
      %v5299 = vpack.c.b16 %v5257, %v5256
      %v5300 = vpack.c.b16 %v5259, %v5258
      %v5301 = vpack.c.b16 %v5261, %v5260
      %v5302 = vpack.c.b16 %v5263, %v5262
      %v5303 = vpack.c.b16 %v5265, %v5264
      %v5304 = vpack.c.b16 %v5267, %v5266
      %v5305 = vpack.c.b16 %v5269, %v5268
      %v5306 = vpack.c.b16 %v5271, %v5270
      %v5307 = vpack.c.b16 %v5273, %v5272
      %v5308 = vpack.c.b16 %v5275, %v5274
      %v5309 = vpack.c.b16 %v5277, %v5276
      %5342 = vmatpush.bf16.msra.mxu0 %v5285
      %5343 = vmatpush.bf16.msra.mxu0 %v5284
      %5344 = vmatpush.bf16.msra.mxu0 %v5283
      %5345 = vmatpush.bf16.msra.mxu0 %v5282
      %5346 = vmatpush.bf16.msra.mxu0 %v5281
      %5347 = vmatpush.bf16.msra.mxu0 %v5280
      %5348 = vmatpush.bf16.msra.mxu0 %v5279
      %5349 = vmatpush.bf16.msra.mxu0 %v5278
      %5350 = vmatmul.bf16.gmra.mxu0 %v5018
      %v5351 = vpop.f32.mrf.mxu0
      %v5352 = vadd.f32 %v5148, %v5351
      %v5353 = vpop.f32.mrf.mxu0
      %v5354 = vadd.f32 %v5148, %v5353
      %5355 = vmatmul.bf16.gmra.mxu0 %v5022
      %v5356 = vpop.f32.mrf.mxu0
      %v5357 = vadd.f32 %v5148, %v5356
      %v5358 = vpop.f32.mrf.mxu0
      %v5359 = vadd.f32 %v5148, %v5358
      %5360 = vmatmul.bf16.gmra.mxu0 %v5026
      %v5361 = vpop.f32.mrf.mxu0
      %v5362 = vadd.f32 %v5148, %v5361
      %v5363 = vpop.f32.mrf.mxu0
      %v5364 = vadd.f32 %v5148, %v5363
      %5365 = vmatmul.bf16.gmra.mxu0 %v5030
      %v5366 = vpop.f32.mrf.mxu0
      %v5367 = vadd.f32 %v5148, %v5366
      %v5368 = vpop.f32.mrf.mxu0
      %v5369 = vadd.f32 %v5148, %v5368
      %5370 = vmatmul.bf16.gmra.mxu0 %v5034
      %v5371 = vpop.f32.mrf.mxu0
      %v5372 = vadd.f32 %v5148, %v5371
      %v5373 = vpop.f32.mrf.mxu0
      %v5374 = vadd.f32 %v5148, %v5373
      %5375 = vmatmul.bf16.gmra.mxu0 %v5038
      %v5376 = vpop.f32.mrf.mxu0
      %v5377 = vadd.f32 %v5148, %v5376
      %v5378 = vpop.f32.mrf.mxu0
      %v5379 = vadd.f32 %v5148, %v5378
      %5380 = vmatmul.bf16.gmra.mxu0 %v5042
      %v5381 = vpop.f32.mrf.mxu0
      %v5382 = vadd.f32 %v5148, %v5381
      %v5383 = vpop.f32.mrf.mxu0
      %v5384 = vadd.f32 %v5148, %v5383
      %5385 = vmatmul.bf16.gmra.mxu0 %v5046
      %v5386 = vpop.f32.mrf.mxu0
      %v5387 = vadd.f32 %v5148, %v5386
      %v5388 = vpop.f32.mrf.mxu0
      %v5389 = vadd.f32 %v5148, %v5388
      %5390 = vmatmul.bf16.gmra.mxu0 %v5050
      %v5391 = vpop.f32.mrf.mxu0
      %v5392 = vadd.f32 %v5148, %v5391
      %v5393 = vpop.f32.mrf.mxu0
      %v5394 = vadd.f32 %v5148, %v5393
      %5395 = vmatmul.bf16.gmra.mxu0 %v5054
      %v5396 = vpop.f32.mrf.mxu0
      %v5397 = vadd.f32 %v5148, %v5396
      %v5398 = vpop.f32.mrf.mxu0
      %v5399 = vadd.f32 %v5148, %v5398
      %5400 = vmatmul.bf16.gmra.mxu0 %v5058
      %v5401 = vpop.f32.mrf.mxu0
      %v5402 = vadd.f32 %v5148, %v5401
      %v5403 = vpop.f32.mrf.mxu0
      %v5404 = vadd.f32 %v5148, %v5403
      %5405 = vmatmul.bf16.gmra.mxu0 %v5062
      %v5406 = vpop.f32.mrf.mxu0
      %v5407 = vadd.f32 %v5148, %v5406
      %v5408 = vpop.f32.mrf.mxu0
      %v5409 = vadd.f32 %v5148, %v5408
      %5410 = vmatmul.bf16.gmra.mxu0 %v5066
      %v5411 = vpop.f32.mrf.mxu0
      %v5412 = vadd.f32 %v5148, %v5411
      %v5413 = vpop.f32.mrf.mxu0
      %v5414 = vadd.f32 %v5148, %v5413
      %5415 = vmatmul.bf16.gmra.mxu0 %v5070
      %v5416 = vpop.f32.mrf.mxu0
      %v5417 = vadd.f32 %v5148, %v5416
      %v5418 = vpop.f32.mrf.mxu0
      %v5419 = vadd.f32 %v5148, %v5418
      %5420 = vmatmul.bf16.gmra.mxu0 %v5074
      %v5421 = vpop.f32.mrf.mxu0
      %v5422 = vadd.f32 %v5148, %v5421
      %v5423 = vpop.f32.mrf.mxu0
      %v5424 = vadd.f32 %v5148, %v5423
      %5425 = vmatmul.bf16.gmra.mxu0 %v5078
      %v5426 = vpop.f32.mrf.mxu0
      %v5427 = vadd.f32 %v5148, %v5426
      %v5428 = vpop.f32.mrf.mxu0
      %v5429 = vadd.f32 %v5148, %v5428
      %5430 = vdwg.mxu0
      %5431 = vmatpush.bf16.msra.mxu0 %v5293
      %5432 = vmatpush.bf16.msra.mxu0 %v5292
      %5433 = vmatpush.bf16.msra.mxu0 %v5291
      %5434 = vmatpush.bf16.msra.mxu0 %v5290
      %5435 = vmatpush.bf16.msra.mxu0 %v5289
      %5436 = vmatpush.bf16.msra.mxu0 %v5288
      %5437 = vmatpush.bf16.msra.mxu0 %v5287
      %5438 = vmatpush.bf16.msra.mxu0 %v5286
      %5439 = vmatmul.bf16.gmra.mxu0 %v5019
      %v5440 = vpop.f32.mrf.mxu0
      %v5441 = vadd.f32 %v5352, %v5440
      %v5442 = vpop.f32.mrf.mxu0
      %v5443 = vadd.f32 %v5354, %v5442
      %5444 = vmatmul.bf16.gmra.mxu0 %v5023
      %v5445 = vpop.f32.mrf.mxu0
      %v5446 = vadd.f32 %v5357, %v5445
      %v5447 = vpop.f32.mrf.mxu0
      %v5448 = vadd.f32 %v5359, %v5447
      %5449 = vmatmul.bf16.gmra.mxu0 %v5027
      %v5450 = vpop.f32.mrf.mxu0
      %v5451 = vadd.f32 %v5362, %v5450
      %v5452 = vpop.f32.mrf.mxu0
      %v5453 = vadd.f32 %v5364, %v5452
      %5454 = vmatmul.bf16.gmra.mxu0 %v5031
      %v5455 = vpop.f32.mrf.mxu0
      %v5456 = vadd.f32 %v5367, %v5455
      %v5457 = vpop.f32.mrf.mxu0
      %v5458 = vadd.f32 %v5369, %v5457
      %5459 = vmatmul.bf16.gmra.mxu0 %v5035
      %v5460 = vpop.f32.mrf.mxu0
      %v5461 = vadd.f32 %v5372, %v5460
      %v5462 = vpop.f32.mrf.mxu0
      %v5463 = vadd.f32 %v5374, %v5462
      %5464 = vmatmul.bf16.gmra.mxu0 %v5039
      %v5465 = vpop.f32.mrf.mxu0
      %v5466 = vadd.f32 %v5377, %v5465
      %v5467 = vpop.f32.mrf.mxu0
      %v5468 = vadd.f32 %v5379, %v5467
      %5469 = vmatmul.bf16.gmra.mxu0 %v5043
      %v5470 = vpop.f32.mrf.mxu0
      %v5471 = vadd.f32 %v5382, %v5470
      %v5472 = vpop.f32.mrf.mxu0
      %v5473 = vadd.f32 %v5384, %v5472
      %5474 = vmatmul.bf16.gmra.mxu0 %v5047
      %v5475 = vpop.f32.mrf.mxu0
      %v5476 = vadd.f32 %v5387, %v5475
      %v5477 = vpop.f32.mrf.mxu0
      %v5478 = vadd.f32 %v5389, %v5477
      %5479 = vmatmul.bf16.gmra.mxu0 %v5051
      %v5480 = vpop.f32.mrf.mxu0
      %v5481 = vadd.f32 %v5392, %v5480
      %v5482 = vpop.f32.mrf.mxu0
      %v5483 = vadd.f32 %v5394, %v5482
      %5484 = vmatmul.bf16.gmra.mxu0 %v5055
      %v5485 = vpop.f32.mrf.mxu0
      %v5486 = vadd.f32 %v5397, %v5485
      %v5487 = vpop.f32.mrf.mxu0
      %v5488 = vadd.f32 %v5399, %v5487
      %5489 = vmatmul.bf16.gmra.mxu0 %v5059
      %v5490 = vpop.f32.mrf.mxu0
      %v5491 = vadd.f32 %v5402, %v5490
      %v5492 = vpop.f32.mrf.mxu0
      %v5493 = vadd.f32 %v5404, %v5492
      %5494 = vmatmul.bf16.gmra.mxu0 %v5063
      %v5495 = vpop.f32.mrf.mxu0
      %v5496 = vadd.f32 %v5407, %v5495
      %v5497 = vpop.f32.mrf.mxu0
      %v5498 = vadd.f32 %v5409, %v5497
      %5499 = vmatmul.bf16.gmra.mxu0 %v5067
      %v5500 = vpop.f32.mrf.mxu0
      %v5501 = vadd.f32 %v5412, %v5500
      %v5502 = vpop.f32.mrf.mxu0
      %v5503 = vadd.f32 %v5414, %v5502
      %5504 = vmatmul.bf16.gmra.mxu0 %v5071
      %v5505 = vpop.f32.mrf.mxu0
      %v5506 = vadd.f32 %v5417, %v5505
      %v5507 = vpop.f32.mrf.mxu0
      %v5508 = vadd.f32 %v5419, %v5507
      %5509 = vmatmul.bf16.gmra.mxu0 %v5075
      %v5510 = vpop.f32.mrf.mxu0
      %v5511 = vadd.f32 %v5422, %v5510
      %v5512 = vpop.f32.mrf.mxu0
      %v5513 = vadd.f32 %v5424, %v5512
      %5514 = vmatmul.bf16.gmra.mxu0 %v5079
      %v5515 = vpop.f32.mrf.mxu0
      %v5516 = vadd.f32 %v5427, %v5515
      %v5517 = vpop.f32.mrf.mxu0
      %v5518 = vadd.f32 %v5429, %v5517
      %5519 = vdwg.mxu0
      %5520 = vmatpush.bf16.msra.mxu0 %v5301
      %5521 = vmatpush.bf16.msra.mxu0 %v5300
      %5522 = vmatpush.bf16.msra.mxu0 %v5299
      %5523 = vmatpush.bf16.msra.mxu0 %v5298
      %5524 = vmatpush.bf16.msra.mxu0 %v5297
      %5525 = vmatpush.bf16.msra.mxu0 %v5296
      %5526 = vmatpush.bf16.msra.mxu0 %v5295
      %5527 = vmatpush.bf16.msra.mxu0 %v5294
      %5528 = vmatmul.bf16.gmra.mxu0 %v5020
      %v5529 = vpop.f32.mrf.mxu0
      %v5530 = vadd.f32 %v5441, %v5529
      %v5531 = vpop.f32.mrf.mxu0
      %v5532 = vadd.f32 %v5443, %v5531
      %5533 = vmatmul.bf16.gmra.mxu0 %v5024
      %v5534 = vpop.f32.mrf.mxu0
      %v5535 = vadd.f32 %v5446, %v5534
      %v5536 = vpop.f32.mrf.mxu0
      %v5537 = vadd.f32 %v5448, %v5536
      %5538 = vmatmul.bf16.gmra.mxu0 %v5028
      %v5539 = vpop.f32.mrf.mxu0
      %v5540 = vadd.f32 %v5451, %v5539
      %v5541 = vpop.f32.mrf.mxu0
      %v5542 = vadd.f32 %v5453, %v5541
      %5543 = vmatmul.bf16.gmra.mxu0 %v5032
      %v5544 = vpop.f32.mrf.mxu0
      %v5545 = vadd.f32 %v5456, %v5544
      %v5546 = vpop.f32.mrf.mxu0
      %v5547 = vadd.f32 %v5458, %v5546
      %5548 = vmatmul.bf16.gmra.mxu0 %v5036
      %v5549 = vpop.f32.mrf.mxu0
      %v5550 = vadd.f32 %v5461, %v5549
      %v5551 = vpop.f32.mrf.mxu0
      %v5552 = vadd.f32 %v5463, %v5551
      %5553 = vmatmul.bf16.gmra.mxu0 %v5040
      %v5554 = vpop.f32.mrf.mxu0
      %v5555 = vadd.f32 %v5466, %v5554
      %v5556 = vpop.f32.mrf.mxu0
      %v5557 = vadd.f32 %v5468, %v5556
      %5558 = vmatmul.bf16.gmra.mxu0 %v5044
      %v5559 = vpop.f32.mrf.mxu0
      %v5560 = vadd.f32 %v5471, %v5559
      %v5561 = vpop.f32.mrf.mxu0
      %v5562 = vadd.f32 %v5473, %v5561
      %5563 = vmatmul.bf16.gmra.mxu0 %v5048
      %v5564 = vpop.f32.mrf.mxu0
      %v5565 = vadd.f32 %v5476, %v5564
      %v5566 = vpop.f32.mrf.mxu0
      %v5567 = vadd.f32 %v5478, %v5566
      %5568 = vmatmul.bf16.gmra.mxu0 %v5052
      %v5569 = vpop.f32.mrf.mxu0
      %v5570 = vadd.f32 %v5481, %v5569
      %v5571 = vpop.f32.mrf.mxu0
      %v5572 = vadd.f32 %v5483, %v5571
      %5573 = vmatmul.bf16.gmra.mxu0 %v5056
      %v5574 = vpop.f32.mrf.mxu0
      %v5575 = vadd.f32 %v5486, %v5574
      %v5576 = vpop.f32.mrf.mxu0
      %v5577 = vadd.f32 %v5488, %v5576
      %5578 = vmatmul.bf16.gmra.mxu0 %v5060
      %v5579 = vpop.f32.mrf.mxu0
      %v5580 = vadd.f32 %v5491, %v5579
      %v5581 = vpop.f32.mrf.mxu0
      %v5582 = vadd.f32 %v5493, %v5581
      %5583 = vmatmul.bf16.gmra.mxu0 %v5064
      %v5584 = vpop.f32.mrf.mxu0
      %v5585 = vadd.f32 %v5496, %v5584
      %v5586 = vpop.f32.mrf.mxu0
      %v5587 = vadd.f32 %v5498, %v5586
      %5588 = vmatmul.bf16.gmra.mxu0 %v5068
      %v5589 = vpop.f32.mrf.mxu0
      %v5590 = vadd.f32 %v5501, %v5589
      %v5591 = vpop.f32.mrf.mxu0
      %v5592 = vadd.f32 %v5503, %v5591
      %5593 = vmatmul.bf16.gmra.mxu0 %v5072
      %v5594 = vpop.f32.mrf.mxu0
      %v5595 = vadd.f32 %v5506, %v5594
      %v5596 = vpop.f32.mrf.mxu0
      %v5597 = vadd.f32 %v5508, %v5596
      %5598 = vmatmul.bf16.gmra.mxu0 %v5076
      %v5599 = vpop.f32.mrf.mxu0
      %v5600 = vadd.f32 %v5511, %v5599
      %v5601 = vpop.f32.mrf.mxu0
      %v5602 = vadd.f32 %v5513, %v5601
      %5603 = vmatmul.bf16.gmra.mxu0 %v5080
      %v5604 = vpop.f32.mrf.mxu0
      %v5605 = vadd.f32 %v5516, %v5604
      %v5606 = vpop.f32.mrf.mxu0
      %v5607 = vadd.f32 %v5518, %v5606
      %5608 = vdwg.mxu0
      %5609 = vmatpush.bf16.msra.mxu0 %v5309
      %5610 = vmatpush.bf16.msra.mxu0 %v5308
      %5611 = vmatpush.bf16.msra.mxu0 %v5307
      %5612 = vmatpush.bf16.msra.mxu0 %v5306
      %5613 = vmatpush.bf16.msra.mxu0 %v5305
      %5614 = vmatpush.bf16.msra.mxu0 %v5304
      %5615 = vmatpush.bf16.msra.mxu0 %v5303
      %5616 = vmatpush.bf16.msra.mxu0 %v5302
      %5617 = vmatmul.bf16.gmra.mxu0 %v5021
      %v5618 = vpop.f32.mrf.mxu0
      %v5619 = vadd.f32 %v5530, %v5618
      %v5620 = vpop.f32.mrf.mxu0
      %v5621 = vadd.f32 %v5532, %v5620
      %5622 = vmatmul.bf16.gmra.mxu0 %v5025
      %v5623 = vpop.f32.mrf.mxu0
      %v5624 = vadd.f32 %v5535, %v5623
      %v5625 = vpop.f32.mrf.mxu0
      %v5626 = vadd.f32 %v5537, %v5625
      %5627 = vmatmul.bf16.gmra.mxu0 %v5029
      %v5628 = vpop.f32.mrf.mxu0
      %v5629 = vadd.f32 %v5540, %v5628
      %v5630 = vpop.f32.mrf.mxu0
      %v5631 = vadd.f32 %v5542, %v5630
      %5632 = vmatmul.bf16.gmra.mxu0 %v5033
      %v5633 = vpop.f32.mrf.mxu0
      %v5634 = vadd.f32 %v5545, %v5633
      %v5635 = vpop.f32.mrf.mxu0
      %v5636 = vadd.f32 %v5547, %v5635
      %5637 = vmatmul.bf16.gmra.mxu0 %v5037
      %v5638 = vpop.f32.mrf.mxu0
      %v5639 = vadd.f32 %v5550, %v5638
      %v5640 = vpop.f32.mrf.mxu0
      %v5641 = vadd.f32 %v5552, %v5640
      %5642 = vmatmul.bf16.gmra.mxu0 %v5041
      %v5643 = vpop.f32.mrf.mxu0
      %v5644 = vadd.f32 %v5555, %v5643
      %v5645 = vpop.f32.mrf.mxu0
      %v5646 = vadd.f32 %v5557, %v5645
      %5647 = vmatmul.bf16.gmra.mxu0 %v5045
      %v5648 = vpop.f32.mrf.mxu0
      %v5649 = vadd.f32 %v5560, %v5648
      %v5650 = vpop.f32.mrf.mxu0
      %v5651 = vadd.f32 %v5562, %v5650
      %5652 = vmatmul.bf16.gmra.mxu0 %v5049
      %v5653 = vpop.f32.mrf.mxu0
      %v5654 = vadd.f32 %v5565, %v5653
      %v5655 = vpop.f32.mrf.mxu0
      %v5656 = vadd.f32 %v5567, %v5655
      %5657 = vmatmul.bf16.gmra.mxu0 %v5053
      %v5658 = vpop.f32.mrf.mxu0
      %v5659 = vadd.f32 %v5570, %v5658
      %v5660 = vpop.f32.mrf.mxu0
      %v5661 = vadd.f32 %v5572, %v5660
      %5662 = vmatmul.bf16.gmra.mxu0 %v5057
      %v5663 = vpop.f32.mrf.mxu0
      %v5664 = vadd.f32 %v5575, %v5663
      %v5665 = vpop.f32.mrf.mxu0
      %v5666 = vadd.f32 %v5577, %v5665
      %5667 = vmatmul.bf16.gmra.mxu0 %v5061
      %v5668 = vpop.f32.mrf.mxu0
      %v5669 = vadd.f32 %v5580, %v5668
      %v5670 = vpop.f32.mrf.mxu0
      %v5671 = vadd.f32 %v5582, %v5670
      %5672 = vmatmul.bf16.gmra.mxu0 %v5065
      %v5673 = vpop.f32.mrf.mxu0
      %v5674 = vadd.f32 %v5585, %v5673
      %v5675 = vpop.f32.mrf.mxu0
      %v5676 = vadd.f32 %v5587, %v5675
      %5677 = vmatmul.bf16.gmra.mxu0 %v5069
      %v5678 = vpop.f32.mrf.mxu0
      %v5679 = vadd.f32 %v5590, %v5678
      %v5680 = vpop.f32.mrf.mxu0
      %v5681 = vadd.f32 %v5592, %v5680
      %5682 = vmatmul.bf16.gmra.mxu0 %v5073
      %v5683 = vpop.f32.mrf.mxu0
      %v5684 = vadd.f32 %v5595, %v5683
      %v5685 = vpop.f32.mrf.mxu0
      %v5686 = vadd.f32 %v5597, %v5685
      %5687 = vmatmul.bf16.gmra.mxu0 %v5077
      %v5688 = vpop.f32.mrf.mxu0
      %v5689 = vadd.f32 %v5600, %v5688
      %v5690 = vpop.f32.mrf.mxu0
      %v5691 = vadd.f32 %v5602, %v5690
      %5692 = vmatmul.bf16.gmra.mxu0 %v5081
      %v5693 = vpop.f32.mrf.mxu0
      %v5694 = vadd.f32 %v5605, %v5693
      %v5695 = vpop.f32.mrf.mxu0
      %v5696 = vadd.f32 %v5607, %v5695
      %5697 = vdwg.mxu0
      %v5698 = vmax.f32 %v5619, 0.0
      %v5699 = vmax.f32 %v5621, 0.0
      %v5700 = vmax.f32 %v5624, 0.0
      %v5701 = vmax.f32 %v5626, 0.0
      %v5702 = vmax.f32 %v5629, 0.0
      %v5703 = vmax.f32 %v5631, 0.0
      %v5704 = vmax.f32 %v5634, 0.0
      %v5705 = vmax.f32 %v5636, 0.0
      %v5706 = vmax.f32 %v5639, 0.0
      %v5707 = vmax.f32 %v5641, 0.0
      %v5708 = vmax.f32 %v5644, 0.0
      %v5709 = vmax.f32 %v5646, 0.0
      %v5710 = vmax.f32 %v5649, 0.0
      %v5711 = vmax.f32 %v5651, 0.0
      %v5712 = vmax.f32 %v5654, 0.0
      %v5713 = vmax.f32 %v5656, 0.0
      %v5714 = vmax.f32 %v5659, 0.0
      %v5715 = vmax.f32 %v5661, 0.0
      %v5716 = vmax.f32 %v5664, 0.0
      %v5717 = vmax.f32 %v5666, 0.0
      %v5718 = vmax.f32 %v5669, 0.0
      %v5719 = vmax.f32 %v5671, 0.0
      %v5720 = vmax.f32 %v5674, 0.0
      %v5721 = vmax.f32 %v5676, 0.0
      %v5722 = vmax.f32 %v5679, 0.0
      %v5723 = vmax.f32 %v5681, 0.0
      %v5724 = vmax.f32 %v5684, 0.0
      %v5725 = vmax.f32 %v5686, 0.0
      %v5726 = vmax.f32 %v5689, 0.0
      %v5727 = vmax.f32 %v5691, 0.0
      %v5728 = vmax.f32 %v5694, 0.0
      %v5729 = vmax.f32 %v5696, 0.0
      %v5730 = vpack.c.bf16 %v5699, %v5698
      %v5731 = vpack.c.bf16 %v5701, %v5700
      %v5732 = vpack.c.bf16 %v5703, %v5702
      %v5733 = vpack.c.bf16 %v5705, %v5704
      %v5734 = vpack.c.bf16 %v5707, %v5706
      %v5735 = vpack.c.bf16 %v5709, %v5708
      %v5736 = vpack.c.bf16 %v5711, %v5710
      %v5737 = vpack.c.bf16 %v5713, %v5712
      %v5738 = vpack.c.bf16 %v5715, %v5714
      %v5739 = vpack.c.bf16 %v5717, %v5716
      %v5740 = vpack.c.bf16 %v5719, %v5718
      %v5741 = vpack.c.bf16 %v5721, %v5720
      %v5742 = vpack.c.bf16 %v5723, %v5722
      %v5743 = vpack.c.bf16 %v5725, %v5724
      %v5744 = vpack.c.bf16 %v5727, %v5726
      %v5745 = vpack.c.bf16 %v5729, %v5728
      %v5746 = vld [vmem:[%s5] sm:$0xf]
      %v5747 = vld [vmem:[%s5 + $0x4] sm:$0xf]
      %v5748 = vld [vmem:[%s5 + $0x8] sm:$0xf]
      %v5749 = vld [vmem:[%s5 + $0xc] sm:$0xf]
      %v5750 = vld [vmem:[%s5 + $0x10] sm:$0xf]
      %v5751 = vld [vmem:[%s5 + $0x14] sm:$0xf]
      %v5752 = vld [vmem:[%s5 + $0x18] sm:$0xf]
      %v5753 = vld [vmem:[%s5 + $0x1c] sm:$0xf]
      %v5754 = vld [vmem:[%s5 + $0x20] sm:$0xf]
      %v5755 = vld [vmem:[%s5 + $0x24] sm:$0xf]
      %v5756 = vld [vmem:[%s5 + $0x28] sm:$0xf]
      %v5757 = vld [vmem:[%s5 + $0x2c] sm:$0xf]
      %v5758 = vld [vmem:[%s5 + $0x30] sm:$0xf]
      %v5759 = vld [vmem:[%s5 + $0x34] sm:$0xf]
      %v5760 = vld [vmem:[%s5 + $0x38] sm:$0xf]
      %v5761 = vld [vmem:[%s5 + $0x3c] sm:$0xf]
      %v5762 = vld [vmem:[%s6] sm:$0x1]
      %v5764 = vperm.slane %v5762, 0
      %v5782 = vunpack.c.l.b16 %v5746
      %v5783 = vunpack.c.l.b16 %v5747
      %v5784 = vunpack.c.l.b16 %v5748
      %v5785 = vunpack.c.l.b16 %v5749
      %v5786 = vunpack.c.l.b16 %v5750
      %v5787 = vunpack.c.l.b16 %v5751
      %v5788 = vunpack.c.l.b16 %v5752
      %v5789 = vunpack.c.l.b16 %v5753
      %v5790 = vunpack.c.l.b16 %v5754
      %v5791 = vunpack.c.l.b16 %v5755
      %v5792 = vunpack.c.l.b16 %v5756
      %v5793 = vunpack.c.l.b16 %v5757
      %v5794 = vunpack.c.l.b16 %v5758
      %v5795 = vunpack.c.l.b16 %v5759
      %v5796 = vunpack.c.l.b16 %v5760
      %v5797 = vunpack.c.l.b16 %v5761
      %v5798 = vpack.c.b16 %v5783, %v5782
      %v5799 = vpack.c.b16 %v5785, %v5784
      %v5800 = vpack.c.b16 %v5787, %v5786
      %v5801 = vpack.c.b16 %v5789, %v5788
      %v5802 = vpack.c.b16 %v5791, %v5790
      %v5803 = vpack.c.b16 %v5793, %v5792
      %v5804 = vpack.c.b16 %v5795, %v5794
      %v5805 = vpack.c.b16 %v5797, %v5796
      %5814 = vmatpush.bf16.msra.mxu0 %v5805
      %5815 = vmatpush.bf16.msra.mxu0 %v5804
      %5816 = vmatpush.bf16.msra.mxu0 %v5803
      %5817 = vmatpush.bf16.msra.mxu0 %v5802
      %5818 = vmatpush.bf16.msra.mxu0 %v5801
      %5819 = vmatpush.bf16.msra.mxu0 %v5800
      %5820 = vmatpush.bf16.msra.mxu0 %v5799
      %5821 = vmatpush.bf16.msra.mxu0 %v5798
      %5822 = vmatmul.bf16.gmra.mxu0 %v5730
      %v5823 = vpop.f32.mrf.mxu0
      %v5824 = vadd.f32 %v5764, %v5823
      %v5825 = vpop.f32.mrf.mxu0
      %v5826 = vadd.f32 %v5764, %v5825
      %5827 = vmatmul.bf16.gmra.mxu0 %v5731
      %v5828 = vpop.f32.mrf.mxu0
      %v5829 = vadd.f32 %v5764, %v5828
      %v5830 = vpop.f32.mrf.mxu0
      %v5831 = vadd.f32 %v5764, %v5830
      %5832 = vmatmul.bf16.gmra.mxu0 %v5732
      %v5833 = vpop.f32.mrf.mxu0
      %v5834 = vadd.f32 %v5764, %v5833
      %v5835 = vpop.f32.mrf.mxu0
      %v5836 = vadd.f32 %v5764, %v5835
      %5837 = vmatmul.bf16.gmra.mxu0 %v5733
      %v5838 = vpop.f32.mrf.mxu0
      %v5839 = vadd.f32 %v5764, %v5838
      %v5840 = vpop.f32.mrf.mxu0
      %v5841 = vadd.f32 %v5764, %v5840
      %5842 = vmatmul.bf16.gmra.mxu0 %v5734
      %v5843 = vpop.f32.mrf.mxu0
      %v5844 = vadd.f32 %v5764, %v5843
      %v5845 = vpop.f32.mrf.mxu0
      %v5846 = vadd.f32 %v5764, %v5845
      %5847 = vmatmul.bf16.gmra.mxu0 %v5735
      %v5848 = vpop.f32.mrf.mxu0
      %v5849 = vadd.f32 %v5764, %v5848
      %v5850 = vpop.f32.mrf.mxu0
      %v5851 = vadd.f32 %v5764, %v5850
      %5852 = vmatmul.bf16.gmra.mxu0 %v5736
      %v5853 = vpop.f32.mrf.mxu0
      %v5854 = vadd.f32 %v5764, %v5853
      %v5855 = vpop.f32.mrf.mxu0
      %v5856 = vadd.f32 %v5764, %v5855
      %5857 = vmatmul.bf16.gmra.mxu0 %v5737
      %v5858 = vpop.f32.mrf.mxu0
      %v5859 = vadd.f32 %v5764, %v5858
      %v5860 = vpop.f32.mrf.mxu0
      %v5861 = vadd.f32 %v5764, %v5860
      %5862 = vmatmul.bf16.gmra.mxu0 %v5738
      %v5863 = vpop.f32.mrf.mxu0
      %v5864 = vadd.f32 %v5764, %v5863
      %v5865 = vpop.f32.mrf.mxu0
      %v5866 = vadd.f32 %v5764, %v5865
      %5867 = vmatmul.bf16.gmra.mxu0 %v5739
      %v5868 = vpop.f32.mrf.mxu0
      %v5869 = vadd.f32 %v5764, %v5868
      %v5870 = vpop.f32.mrf.mxu0
      %v5871 = vadd.f32 %v5764, %v5870
      %5872 = vmatmul.bf16.gmra.mxu0 %v5740
      %v5873 = vpop.f32.mrf.mxu0
      %v5874 = vadd.f32 %v5764, %v5873
      %v5875 = vpop.f32.mrf.mxu0
      %v5876 = vadd.f32 %v5764, %v5875
      %5877 = vmatmul.bf16.gmra.mxu0 %v5741
      %v5878 = vpop.f32.mrf.mxu0
      %v5879 = vadd.f32 %v5764, %v5878
      %v5880 = vpop.f32.mrf.mxu0
      %v5881 = vadd.f32 %v5764, %v5880
      %5882 = vmatmul.bf16.gmra.mxu0 %v5742
      %v5883 = vpop.f32.mrf.mxu0
      %v5884 = vadd.f32 %v5764, %v5883
      %v5885 = vpop.f32.mrf.mxu0
      %v5886 = vadd.f32 %v5764, %v5885
      %5887 = vmatmul.bf16.gmra.mxu0 %v5743
      %v5888 = vpop.f32.mrf.mxu0
      %v5889 = vadd.f32 %v5764, %v5888
      %v5890 = vpop.f32.mrf.mxu0
      %v5891 = vadd.f32 %v5764, %v5890
      %5892 = vmatmul.bf16.gmra.mxu0 %v5744
      %v5893 = vpop.f32.mrf.mxu0
      %v5894 = vadd.f32 %v5764, %v5893
      %v5895 = vpop.f32.mrf.mxu0
      %v5896 = vadd.f32 %v5764, %v5895
      %5897 = vmatmul.bf16.gmra.mxu0 %v5745
      %v5898 = vpop.f32.mrf.mxu0
      %v5899 = vadd.f32 %v5764, %v5898
      %v5900 = vpop.f32.mrf.mxu0
      %v5901 = vadd.f32 %v5764, %v5900
      %5902 = vdwg.mxu0
      %v5903 = vmax.f32 %v5824, 0.0
      %v5904 = vmax.f32 %v5826, 0.0
      %v5905 = vmax.f32 %v5829, 0.0
      %v5906 = vmax.f32 %v5831, 0.0
      %v5907 = vmax.f32 %v5834, 0.0
      %v5908 = vmax.f32 %v5836, 0.0
      %v5909 = vmax.f32 %v5839, 0.0
      %v5910 = vmax.f32 %v5841, 0.0
      %v5911 = vmax.f32 %v5844, 0.0
      %v5912 = vmax.f32 %v5846, 0.0
      %v5913 = vmax.f32 %v5849, 0.0
      %v5914 = vmax.f32 %v5851, 0.0
      %v5915 = vmax.f32 %v5854, 0.0
      %v5916 = vmax.f32 %v5856, 0.0
      %v5917 = vmax.f32 %v5859, 0.0
      %v5918 = vmax.f32 %v5861, 0.0
      %v5919 = vmax.f32 %v5864, 0.0
      %v5920 = vmax.f32 %v5866, 0.0
      %v5921 = vmax.f32 %v5869, 0.0
      %v5922 = vmax.f32 %v5871, 0.0
      %v5923 = vmax.f32 %v5874, 0.0
      %v5924 = vmax.f32 %v5876, 0.0
      %v5925 = vmax.f32 %v5879, 0.0
      %v5926 = vmax.f32 %v5881, 0.0
      %v5927 = vmax.f32 %v5884, 0.0
      %v5928 = vmax.f32 %v5886, 0.0
      %v5929 = vmax.f32 %v5889, 0.0
      %v5930 = vmax.f32 %v5891, 0.0
      %v5931 = vmax.f32 %v5894, 0.0
      %v5932 = vmax.f32 %v5896, 0.0
      %v5933 = vmax.f32 %v5899, 0.0
      %v5934 = vmax.f32 %v5901, 0.0
      %v5935 = vpack.c.bf16 %v5904, %v5903
      %v5936 = vpack.c.bf16 %v5906, %v5905
      %v5937 = vpack.c.bf16 %v5908, %v5907
      %v5938 = vpack.c.bf16 %v5910, %v5909
      %v5939 = vpack.c.bf16 %v5912, %v5911
      %v5940 = vpack.c.bf16 %v5914, %v5913
      %v5941 = vpack.c.bf16 %v5916, %v5915
      %v5942 = vpack.c.bf16 %v5918, %v5917
      %v5943 = vpack.c.bf16 %v5920, %v5919
      %v5944 = vpack.c.bf16 %v5922, %v5921
      %v5945 = vpack.c.bf16 %v5924, %v5923
      %v5946 = vpack.c.bf16 %v5926, %v5925
      %v5947 = vpack.c.bf16 %v5928, %v5927
      %v5948 = vpack.c.bf16 %v5930, %v5929
      %v5949 = vpack.c.bf16 %v5932, %v5931
      %v5950 = vpack.c.bf16 %v5934, %v5933
      %v5951 = vld [vmem:[%s7] sm:$0xf]
      %v5952 = vld [vmem:[%s7 + $0x4] sm:$0xf]
      %v5953 = vld [vmem:[%s7 + $0x8] sm:$0xf]
      %v5954 = vld [vmem:[%s7 + $0xc] sm:$0xf]
      %v5955 = vld [vmem:[%s7 + $0x10] sm:$0xf]
      %v5956 = vld [vmem:[%s7 + $0x14] sm:$0xf]
      %v5957 = vld [vmem:[%s7 + $0x18] sm:$0xf]
      %v5958 = vld [vmem:[%s7 + $0x1c] sm:$0xf]
      %v5959 = vld [vmem:[%s8] sm:$0x1]
      %v5961 = vperm.slane %v5959, 0
      %v5971 = vunpack.c.l.b16 %v5951
      %v5972 = vunpack.c.l.b16 %v5952
      %v5973 = vunpack.c.l.b16 %v5953
      %v5974 = vunpack.c.l.b16 %v5954
      %v5975 = vunpack.c.l.b16 %v5955
      %v5976 = vunpack.c.l.b16 %v5956
      %v5977 = vunpack.c.l.b16 %v5957
      %v5978 = vunpack.c.l.b16 %v5958
      %v5979 = vpack.c.b16 %v5972, %v5971
      %v5980 = vpack.c.b16 %v5974, %v5973
      %v5981 = vpack.c.b16 %v5976, %v5975
      %v5982 = vpack.c.b16 %v5978, %v5977
      %vm5987 = vcmask 523264
      %v5989 = vsel %vm5987, %v5935, 0
      %v5992 = vsel %vm5987, %v5936, 0
      %v5995 = vsel %vm5987, %v5937, 0
      %v5998 = vsel %vm5987, %v5938, 0
      %v6001 = vsel %vm5987, %v5939, 0
      %v6004 = vsel %vm5987, %v5940, 0
      %v6007 = vsel %vm5987, %v5941, 0
      %v6010 = vsel %vm5987, %v5942, 0
      %v6013 = vsel %vm5987, %v5943, 0
      %v6016 = vsel %vm5987, %v5944, 0
      %v6019 = vsel %vm5987, %v5945, 0
      %v6022 = vsel %vm5987, %v5946, 0
      %v6025 = vsel %vm5987, %v5947, 0
      %v6028 = vsel %vm5987, %v5948, 0
      %v6031 = vsel %vm5987, %v5949, 0
      %v6034 = vsel %vm5987, %v5950, 0
      %6036 = vmatpush.bf16.msra.mxu0 0
      %6037 = vmatpush.bf16.msra.mxu0 0
      %6038 = vmatpush.bf16.msra.mxu0 0
      %6039 = vmatpush.bf16.msra.mxu0 0
      %6040 = vmatpush.bf16.msra.mxu0 %v5982
      %6041 = vmatpush.bf16.msra.mxu0 %v5981
      %6042 = vmatpush.bf16.msra.mxu0 %v5980
      %6043 = vmatpush.bf16.msra.mxu0 %v5979
      %6044 = vmatmul.bf16.gmra.mxu0 %v5989
      %v6045 = vpop.f32.mrf.mxu0
      %v6046 = vadd.f32 %v5961, %v6045
      %v6047 = vpop.f32.mrf.mxu0
      %v6048 = vadd.f32 %v5961, %v6047
      %6049 = vmatmul.bf16.gmra.mxu0 %v5992
      %v6050 = vpop.f32.mrf.mxu0
      %v6051 = vadd.f32 %v5961, %v6050
      %v6052 = vpop.f32.mrf.mxu0
      %v6053 = vadd.f32 %v5961, %v6052
      %6054 = vmatmul.bf16.gmra.mxu0 %v5995
      %v6055 = vpop.f32.mrf.mxu0
      %v6056 = vadd.f32 %v5961, %v6055
      %v6057 = vpop.f32.mrf.mxu0
      %v6058 = vadd.f32 %v5961, %v6057
      %6059 = vmatmul.bf16.gmra.mxu0 %v5998
      %v6060 = vpop.f32.mrf.mxu0
      %v6061 = vadd.f32 %v5961, %v6060
      %v6062 = vpop.f32.mrf.mxu0
      %v6063 = vadd.f32 %v5961, %v6062
      %6064 = vmatmul.bf16.gmra.mxu0 %v6001
      %v6065 = vpop.f32.mrf.mxu0
      %v6066 = vadd.f32 %v5961, %v6065
      %v6067 = vpop.f32.mrf.mxu0
      %v6068 = vadd.f32 %v5961, %v6067
      %6069 = vmatmul.bf16.gmra.mxu0 %v6004
      %v6070 = vpop.f32.mrf.mxu0
      %v6071 = vadd.f32 %v5961, %v6070
      %v6072 = vpop.f32.mrf.mxu0
      %v6073 = vadd.f32 %v5961, %v6072
      %6074 = vmatmul.bf16.gmra.mxu0 %v6007
      %v6075 = vpop.f32.mrf.mxu0
      %v6076 = vadd.f32 %v5961, %v6075
      %v6077 = vpop.f32.mrf.mxu0
      %v6078 = vadd.f32 %v5961, %v6077
      %6079 = vmatmul.bf16.gmra.mxu0 %v6010
      %v6080 = vpop.f32.mrf.mxu0
      %v6081 = vadd.f32 %v5961, %v6080
      %v6082 = vpop.f32.mrf.mxu0
      %v6083 = vadd.f32 %v5961, %v6082
      %6084 = vmatmul.bf16.gmra.mxu0 %v6013
      %v6085 = vpop.f32.mrf.mxu0
      %v6086 = vadd.f32 %v5961, %v6085
      %v6087 = vpop.f32.mrf.mxu0
      %v6088 = vadd.f32 %v5961, %v6087
      %6089 = vmatmul.bf16.gmra.mxu0 %v6016
      %v6090 = vpop.f32.mrf.mxu0
      %v6091 = vadd.f32 %v5961, %v6090
      %v6092 = vpop.f32.mrf.mxu0
      %v6093 = vadd.f32 %v5961, %v6092
      %6094 = vmatmul.bf16.gmra.mxu0 %v6019
      %v6095 = vpop.f32.mrf.mxu0
      %v6096 = vadd.f32 %v5961, %v6095
      %v6097 = vpop.f32.mrf.mxu0
      %v6098 = vadd.f32 %v5961, %v6097
      %6099 = vmatmul.bf16.gmra.mxu0 %v6022
      %v6100 = vpop.f32.mrf.mxu0
      %v6101 = vadd.f32 %v5961, %v6100
      %v6102 = vpop.f32.mrf.mxu0
      %v6103 = vadd.f32 %v5961, %v6102
      %6104 = vmatmul.bf16.gmra.mxu0 %v6025
      %v6105 = vpop.f32.mrf.mxu0
      %v6106 = vadd.f32 %v5961, %v6105
      %v6107 = vpop.f32.mrf.mxu0
      %v6108 = vadd.f32 %v5961, %v6107
      %6109 = vmatmul.bf16.gmra.mxu0 %v6028
      %v6110 = vpop.f32.mrf.mxu0
      %v6111 = vadd.f32 %v5961, %v6110
      %v6112 = vpop.f32.mrf.mxu0
      %v6113 = vadd.f32 %v5961, %v6112
      %6114 = vmatmul.bf16.gmra.mxu0 %v6031
      %v6115 = vpop.f32.mrf.mxu0
      %v6116 = vadd.f32 %v5961, %v6115
      %v6117 = vpop.f32.mrf.mxu0
      %v6118 = vadd.f32 %v5961, %v6117
      %6119 = vmatmul.bf16.gmra.mxu0 %v6034
      %v6120 = vpop.f32.mrf.mxu0
      %v6121 = vadd.f32 %v5961, %v6120
      %v6122 = vpop.f32.mrf.mxu0
      %v6123 = vadd.f32 %v5961, %v6122
      %6124 = vdwg.mxu0
      %6125 = vst [vmem:[%s337] sm:$0xff] %v6046
      %6126 = vst [vmem:[%s337 + $0x8] sm:$0xff] %v6048
      %6127 = vst [vmem:[%s337 + $0x10] sm:$0xff] %v6051
      %6128 = vst [vmem:[%s337 + $0x18] sm:$0xff] %v6053
      %6129 = vst [vmem:[%s337 + $0x20] sm:$0xff] %v6056
      %6130 = vst [vmem:[%s337 + $0x28] sm:$0xff] %v6058
      %6131 = vst [vmem:[%s337 + $0x30] sm:$0xff] %v6061
      %6132 = vst [vmem:[%s337 + $0x38] sm:$0xff] %v6063
      %6133 = vst [vmem:[%s337 + $0x40] sm:$0xff] %v6066
      %6134 = vst [vmem:[%s337 + $0x48] sm:$0xff] %v6068
      %6135 = vst [vmem:[%s337 + $0x50] sm:$0xff] %v6071
      %6136 = vst [vmem:[%s337 + $0x58] sm:$0xff] %v6073
      %6137 = vst [vmem:[%s337 + $0x60] sm:$0xff] %v6076
      %6138 = vst [vmem:[%s337 + $0x68] sm:$0xff] %v6078
      %6139 = vst [vmem:[%s337 + $0x70] sm:$0xff] %v6081
      %6140 = vst [vmem:[%s337 + $0x78] sm:$0xff] %v6083
      %6141 = vst [vmem:[%s337 + $0x80] sm:$0xff] %v6086
      %6142 = vst [vmem:[%s337 + $0x88] sm:$0xff] %v6088
      %6143 = vst [vmem:[%s337 + $0x90] sm:$0xff] %v6091
      %6144 = vst [vmem:[%s337 + $0x98] sm:$0xff] %v6093
      %6145 = vst [vmem:[%s337 + $0xa0] sm:$0xff] %v6096
      %6146 = vst [vmem:[%s337 + $0xa8] sm:$0xff] %v6098
      %6147 = vst [vmem:[%s337 + $0xb0] sm:$0xff] %v6101
      %6148 = vst [vmem:[%s337 + $0xb8] sm:$0xff] %v6103
      %6149 = vst [vmem:[%s337 + $0xc0] sm:$0xff] %v6106
      %6150 = vst [vmem:[%s337 + $0xc8] sm:$0xff] %v6108
      %6151 = vst [vmem:[%s337 + $0xd0] sm:$0xff] %v6111
      %6152 = vst [vmem:[%s337 + $0xd8] sm:$0xff] %v6113
      %6153 = vst [vmem:[%s337 + $0xe0] sm:$0xff] %v6116
      %6154 = vst [vmem:[%s337 + $0xe8] sm:$0xff] %v6118
      %6155 = vst [vmem:[%s337 + $0xf0] sm:$0xff] %v6121
      %6156 = vst [vmem:[%s337 + $0xf8] sm:$0xff] %v6123
      %s6157 = smul.u32 32, %s20
      %p6158 = scmp.lt.s32.totalorder %s6157, 63
      %s6159 = scalar_select %p6158, %s6157, 63
      %s6160 = smul.addr %s6159, 8
      %s6161 = scalar_lea.vmem %s9, %s6160
      // Predicated region
      $region57: #{linear_model_forward.1} parent=55 // pred_check
        %p6162 = pneg %p232
      $region58: #{linear_model_forward.1} parent=55 // pred_check_branch
        %6164 = sbr.rel (%p6162) target = $region60
      $region59: #{linear_model_forward.1} parent=55 // pred_region
        %s6165 = smul.u32 32, %s20
      $region60: #{linear_model_forward.1} parent=55 // pred_fallthru
        _
    $region56: #{linear_model_forward.1} parent=5 // pred_fallthru
      _
    %p6166 = scmp.le.s32.totalorder 2, %s15
    // Predicated region
    $region61: #{linear_model_forward.1} parent=5 // pred_check
      %p6167 = pneg %p6166
    $region62: #{linear_model_forward.1} parent=5 // pred_check_branch
      %6169 = sbr.rel (%p6167) target = $region64
    $region63: #{linear_model_forward.1} parent=5 // pred_region
      %s6170 = ssub.s32 %s15, 2
      // Predicated region
      $region65: #{linear_model_forward.1} parent=63 // pred_check
        %p6171 = pneg %p238
      $region66: #{linear_model_forward.1} parent=63 // pred_check_branch
        %6173 = sbr.rel (%p6171) target = $region68
      $region67: #{linear_model_forward.1} parent=63 // pred_region
        %s6174 = smul.u32 32, %s21
        %p6175 = scmp.lt.s32.totalorder %s6174, 63
        %s6176 = scalar_select %p6175, %s6174, 63
        %s6177 = smul.addr %s6176, 8
        %s6178 = scalar_lea.vmem %s9, %s6177
      $region68: #{linear_model_forward.1} parent=63 // pred_fallthru
        _
    $region64: #{linear_model_forward.1} parent=5 // pred_fallthru
      _
  $region6: #{linear_model_forward.1} parent=0 // loop_footer
    %s19 = sadd.s32 1, %s15
  $region7: #{linear_model_forward.1} parent=0 // loop_footer_branch
    %14 = sbr.rel target = $region3
  $region8: #{linear_model_forward.1} parent=0 // loop_exit
    _

</llo_original>
